<compile_context>
chip_gen: v5e
topology: v5e:2x2
jax: 0.10.0
libtpu: 0.0.40
codegen_flags: <defaults>
</compile_context>

<pallas_src>
import jax
import jax.numpy as jnp
from jax.experimental import pallas as pl
from jax.experimental.pallas import tpu as pltpu


# ------------------------------ fused kernel --------------------------------

def cnn_fused_kernel(p1_ref, w1_ref, b1_ref, w2_ref, b2_ref,
                     f1w_ref, f1b_ref, f2w_ref, f2b_ref,
                     out_ref, h1_ref):
    f32 = jnp.float32

    def pool_selectors(n_out, n_in):
        # even/odd column selectors: (Se @ m)[r] = m[2r], (So @ m)[r] = m[2r+1]
        r = jax.lax.broadcasted_iota(jnp.int32, (n_out, n_in), 0)
        c = jax.lax.broadcasted_iota(jnp.int32, (n_out, n_in), 1)
        return (c == 2 * r).astype(f32), (c == 2 * r + 1).astype(f32)

    se1, so1 = pool_selectors(12, 24)
    se2, so2 = pool_selectors(4, 8)

    w1 = w1_ref[...]                         # (25, 10)
    b1 = b1_ref[...]                         # (1, 10)

    # ---- conv1 (5x5, 1->10) + bias + ReLU + 2x2 max-pool, one pooled row/iter
    # p1 rows are (oh*24 + ow); rows [48*oh2, 48*oh2+48) are conv1-output rows
    # 2*oh2 and 2*oh2+1 of the 24x24 conv1 output.
    for oh2 in range(12):
        p = p1_ref[48 * oh2:48 * oh2 + 48, :]                          # (48, 25)
        y = jnp.maximum(jnp.dot(p, w1, preferred_element_type=f32) + b1, 0.0)
        m = jnp.maximum(y[0:24, :], y[24:48, :])                       # H-pool (24, 10)
        h1_ref[oh2] = jnp.maximum(
            jnp.dot(se1, m, preferred_element_type=f32),
            jnp.dot(so1, m, preferred_element_type=f32))               # W-pool (12, 10)

    # ---- conv2 (5x5, 10->20) + bias + ReLU: tap-accumulated MXU matmuls ----
    h1 = h1_ref[...]                                                   # (12, 12, 10), one load
    acc2 = jnp.zeros((64, 20), f32)                                    # rows = oh*8 + ow
    for i in range(5):
        for j in range(5):
            tap = jnp.concatenate(
                [h1[oh + i, j:j + 8, :] for oh in range(8)], axis=0)   # (64, 10)
            acc2 = acc2 + jnp.dot(tap, w2_ref[i * 5 + j],
                                  preferred_element_type=f32)          # (64, 20)
    y2 = jnp.maximum(acc2 + b2_ref[...], 0.0)

    # ---- 2x2 max-pool + (torch NCHW) flatten folded into fc1 weights + fc1 --
    fc1 = f1b_ref[...]                                                 # (1, 50)
    for oh2 in range(4):
        m = jnp.maximum(y2[16 * oh2:16 * oh2 + 8, :],
                        y2[16 * oh2 + 8:16 * oh2 + 16, :])             # (8, 20)
        pr = jnp.maximum(jnp.dot(se2, m, preferred_element_type=f32),
                         jnp.dot(so2, m, preferred_element_type=f32))  # (4, 20)
        for w in range(4):
            fc1 = fc1 + jnp.dot(pr[w:w + 1, :], f1w_ref[4 * oh2 + w],
                                preferred_element_type=f32)            # (1, 50)
    h3 = jnp.maximum(fc1, 0.0)
    # TODO(synk): dropout(p=0.5) is identity here (inference semantics); no RNG mask.

    # ---- fc2 + softmax ------------------------------------------------------
    logits = jnp.dot(h3, f2w_ref[...], preferred_element_type=f32) + f2b_ref[...]
    mx = jnp.max(logits, axis=-1, keepdims=True)
    e = jnp.exp(logits - mx)
    s = jnp.sum(e, axis=-1, keepdims=True)
    out_ref[...] = e * pl.reciprocal(s, approx=True)


# ------------------------------ wrapper --------------------------------------

def cnn_forward(x_nchw, kp):
    B = x_nchw.shape[0]
    x = x_nchw[:, 0, :, :]                                            # (B, 28, 28), C_in = 1

    # im2col for the input layer only (XLA glue; read once, pipelined by BlockSpec).
    cols = [x[:, i:i + 24, j:j + 24] for i in range(5) for j in range(5)]
    p1 = jnp.stack(cols, axis=-1).reshape(B, 576, 25)                 # rows = oh*24+ow, cols = kh*5+kw

    def full(shape):
        zeros = (0,) * len(shape)
        return pl.BlockSpec(shape, lambda b: zeros)

    out = pl.pallas_call(
        cnn_fused_kernel,
        out_shape=jax.ShapeDtypeStruct((B, 1, 10), jnp.float32),
        grid=(B,),
        in_specs=[
            pl.BlockSpec((None, 576, 25), lambda b: (b, 0, 0)),       # per-image conv1 patches
            full((25, 10)), full((1, 10)),                            # conv1 weight / bias
            full((25, 10, 20)), full((1, 20)),                        # conv2 weight / bias
            full((16, 20, 50)), full((1, 50)),                        # fc1 weight (h,w,c-major) / bias
            full((50, 10)), full((1, 10)),                            # fc2 weight / bias
        ],
        out_specs=pl.BlockSpec((None, 1, 10), lambda b: (b, 0, 0)),
        scratch_shapes=[pltpu.VMEM((12, 12, 10), jnp.float32)],       # pool1 output (VMEM resident)
        compiler_params=pltpu.CompilerParams(
            dimension_semantics=("parallel",)),
    )(p1, kp["w1m"], kp["b1"], kp["w2m"], kp["b2"],
      kp["f1w"], kp["f1b"], kp["f2w"], kp["f2b"])
    return out.reshape(B, 10)


# ------------------------------ params ---------------------------------------

def init_torch_params(key):
    ks = jax.random.split(key, 8)
    return {
        "conv1_w": 0.1 * jax.random.normal(ks[0], (10, 1, 5, 5), jnp.float32),
        "conv1_b": 0.1 * jax.random.normal(ks[1], (10,), jnp.float32),
        "conv2_w": 0.1 * jax.random.normal(ks[2], (20, 10, 5, 5), jnp.float32),
        "conv2_b": 0.1 * jax.random.normal(ks[3], (20,), jnp.float32),
        "fc1_w": 0.05 * jax.random.normal(ks[4], (50, 320), jnp.float32),
        "fc1_b": 0.05 * jax.random.normal(ks[5], (50,), jnp.float32),
        "fc2_w": 0.05 * jax.random.normal(ks[6], (10, 50), jnp.float32),
        "fc2_b": 0.05 * jax.random.normal(ks[7], (10,), jnp.float32),
    }


def prepare_kernel_params(p):
    return {
        # conv weights in im2col matmul form: (kh, kw, ic, oc)
        "w1m": jnp.transpose(p["conv1_w"], (2, 3, 1, 0)).reshape(25, 10),
        "b1": p["conv1_b"].reshape(1, 10),
        "w2m": jnp.transpose(p["conv2_w"], (2, 3, 1, 0)).reshape(25, 10, 20),
        "b2": p["conv2_b"].reshape(1, 20),
        # fc1 rows reordered from torch's (c, h, w) flatten order to (h, w, c)
        "f1w": jnp.transpose(p["fc1_w"].reshape(50, 20, 4, 4),
                             (2, 3, 1, 0)).reshape(16, 20, 50),
        "f1b": p["fc1_b"].reshape(1, 50),
        "f2w": p["fc2_w"].T,                                          # (50, 10)
        "f2b": p["fc2_b"].reshape(1, 10),
    }


# ------------------------------ pure-JAX reference ----------------------------

def reference_forward(x, p):
    hi = jax.lax.Precision.HIGHEST
    dn = ("NCHW", "OIHW", "NCHW")
    y = jax.lax.conv_general_dilated(x, p["conv1_w"], (1, 1), "VALID",
                                     dimension_numbers=dn, precision=hi)
    y = jnp.maximum(y + p["conv1_b"].reshape(1, 10, 1, 1), 0.0)
    y = jax.lax.reduce_window(y, -jnp.inf, jax.lax.max,
                              (1, 1, 2, 2), (1, 1, 2, 2), "VALID")
    y = jax.lax.conv_general_dilated(y, p["conv2_w"], (1, 1), "VALID",
                                     dimension_numbers=dn, precision=hi)
    y = jnp.maximum(y + p["conv2_b"].reshape(1, 20, 1, 1), 0.0)
    y = jax.lax.reduce_window(y, -jnp.inf, jax.lax.max,
                              (1, 1, 2, 2), (1, 1, 2, 2), "VALID")
    flat = y.reshape(y.shape[0], 320)                                 # torch (c, h, w) order
    h = jnp.maximum(jnp.dot(flat, p["fc1_w"].T, precision=hi) + p["fc1_b"], 0.0)
    logits = jnp.dot(h, p["fc2_w"].T, precision=hi) + p["fc2_b"]
    return jax.nn.softmax(logits, axis=1)


if __name__ == "__main__":
    key = jax.random.PRNGKey(0)
    k_x, k_p = jax.random.split(key)
    x = jax.random.normal(k_x, (2, 1, 28, 28), jnp.float32)           # NCHW, like PyTorch
    torch_params = init_torch_params(k_p)
    kernel_params = prepare_kernel_params(torch_params)

    out = jax.block_until_ready(jax.jit(cnn_forward)(x, kernel_params))
    ref = jax.block_until_ready(jax.jit(reference_forward)(x, torch_params))

    assert out.shape == (2, 10)
    assert bool(jnp.allclose(jnp.sum(out, axis=1), 1.0, atol=5e-3))
    assert bool(jnp.allclose(out, ref, atol=1e-2)), float(jnp.max(jnp.abs(out - ref)))
    print("KERNEL_OK")
</pallas_src>

<mosaic_0001>
module attributes {stable_mosaic.version = 11 : i64} {
  func.func @cnn_fused_kernel(%arg0: i32, %arg1: memref<1x576x25xf32, #tpu.memory_space<vmem>>, %arg2: memref<25x10xf32, #tpu.memory_space<vmem>>, %arg3: memref<1x10xf32, #tpu.memory_space<vmem>>, %arg4: memref<25x10x20xf32, #tpu.memory_space<vmem>>, %arg5: memref<1x20xf32, #tpu.memory_space<vmem>>, %arg6: memref<16x20x50xf32, #tpu.memory_space<vmem>>, %arg7: memref<1x50xf32, #tpu.memory_space<vmem>>, %arg8: memref<50x10xf32, #tpu.memory_space<vmem>>, %arg9: memref<1x10xf32, #tpu.memory_space<vmem>>, %arg10: memref<1x1x10xf32, #tpu.memory_space<vmem>>, %arg11: memref<12x12x10xf32, #tpu.memory_space<vmem>>) attributes {dimension_semantics = [#tpu.dimension_semantics<parallel>], iteration_bounds = array<i64: 2>, scalar_prefetch = 0 : i64, scratch_operands = 1 : i64, tpu.core_type = #tpu.core_type<tc>, window_params = [{transform_indices = @transform_0, window_bounds = array<i64: 1, 576, 25>}, {pipeline_mode = #tpu.pipeline_mode<synchronous>, transform_indices = @transform_1, window_bounds = array<i64: 25, 10>}, {pipeline_mode = #tpu.pipeline_mode<synchronous>, transform_indices = @transform_2, window_bounds = array<i64: 1, 10>}, {pipeline_mode = #tpu.pipeline_mode<synchronous>, transform_indices = @transform_3, window_bounds = array<i64: 25, 10, 20>}, {pipeline_mode = #tpu.pipeline_mode<synchronous>, transform_indices = @transform_4, window_bounds = array<i64: 1, 20>}, {pipeline_mode = #tpu.pipeline_mode<synchronous>, transform_indices = @transform_5, window_bounds = array<i64: 16, 20, 50>}, {pipeline_mode = #tpu.pipeline_mode<synchronous>, transform_indices = @transform_6, window_bounds = array<i64: 1, 50>}, {pipeline_mode = #tpu.pipeline_mode<synchronous>, transform_indices = @transform_7, window_bounds = array<i64: 50, 10>}, {pipeline_mode = #tpu.pipeline_mode<synchronous>, transform_indices = @transform_8, window_bounds = array<i64: 1, 10>}, {transform_indices = @transform_9, window_bounds = array<i64: 1, 1, 10>}]} {
    %0 = tpu.iota {dimensions = array<i32: 0>} : vector<12x24xi32>
    %1 = tpu.iota {dimensions = array<i32: 1>} : vector<12x24xi32>
    %c2_i32 = arith.constant 2 : i32
    %2 = vector.broadcast %c2_i32 : i32 to vector<12x24xi32>
    %3 = arith.muli %2, %0 : vector<12x24xi32>
    %4 = arith.cmpi eq, %1, %3 : vector<12x24xi32>
    %5 = arith.extui %4 : vector<12x24xi1> to vector<12x24xi32>
    %6 = arith.sitofp %5 : vector<12x24xi32> to vector<12x24xf32>
    %c2_i32_0 = arith.constant 2 : i32
    %7 = vector.broadcast %c2_i32_0 : i32 to vector<12x24xi32>
    %8 = arith.muli %7, %0 : vector<12x24xi32>
    %c1_i32 = arith.constant 1 : i32
    %9 = vector.broadcast %c1_i32 : i32 to vector<12x24xi32>
    %10 = arith.addi %8, %9 : vector<12x24xi32>
    %11 = arith.cmpi eq, %1, %10 : vector<12x24xi32>
    %12 = arith.extui %11 : vector<12x24xi1> to vector<12x24xi32>
    %13 = arith.sitofp %12 : vector<12x24xi32> to vector<12x24xf32>
    %14 = tpu.iota {dimensions = array<i32: 0>} : vector<4x8xi32>
    %15 = tpu.iota {dimensions = array<i32: 1>} : vector<4x8xi32>
    %c2_i32_1 = arith.constant 2 : i32
    %16 = vector.broadcast %c2_i32_1 : i32 to vector<4x8xi32>
    %17 = arith.muli %16, %14 : vector<4x8xi32>
    %18 = arith.cmpi eq, %15, %17 : vector<4x8xi32>
    %19 = arith.extui %18 : vector<4x8xi1> to vector<4x8xi32>
    %20 = arith.sitofp %19 : vector<4x8xi32> to vector<4x8xf32>
    %c2_i32_2 = arith.constant 2 : i32
    %21 = vector.broadcast %c2_i32_2 : i32 to vector<4x8xi32>
    %22 = arith.muli %21, %14 : vector<4x8xi32>
    %c1_i32_3 = arith.constant 1 : i32
    %23 = vector.broadcast %c1_i32_3 : i32 to vector<4x8xi32>
    %24 = arith.addi %22, %23 : vector<4x8xi32>
    %25 = arith.cmpi eq, %15, %24 : vector<4x8xi32>
    %26 = arith.extui %25 : vector<4x8xi1> to vector<4x8xi32>
    %27 = arith.sitofp %26 : vector<4x8xi32> to vector<4x8xf32>
    %c0 = arith.constant 0 : index
    %c0_4 = arith.constant 0 : index
    %28 = vector.load %arg2[%c0, %c0_4] : memref<25x10xf32, #tpu.memory_space<vmem>>, vector<25x10xf32>
    %c0_5 = arith.constant 0 : index
    %c0_6 = arith.constant 0 : index
    %29 = vector.load %arg3[%c0_5, %c0_6] : memref<1x10xf32, #tpu.memory_space<vmem>>, vector<1x10xf32>
    %c0_7 = arith.constant 0 : index
    %c0_8 = arith.constant 0 : index
    %c0_9 = arith.constant 0 : index
    %30 = vector.load %arg1[%c0_7, %c0_8, %c0_9] : memref<1x576x25xf32, #tpu.memory_space<vmem>>, vector<1x48x25xf32>
    %31 = vector.shape_cast %30 : vector<1x48x25xf32> to vector<48x25xf32>
    %cst = arith.constant dense<0.000000e+00> : vector<48x10xf32>
    %32 = tpu.matmul %31, %28, %cst {dimension_numbers = #tpu.dot_dimension_numbers<[1], [0], [0], [1], [0, 0, 1, 1], [], []>} : vector<48x25xf32>, vector<25x10xf32>, vector<48x10xf32> -> vector<48x10xf32>
    %33 = vector.broadcast %29 : vector<1x10xf32> to vector<48x10xf32>
    %34 = arith.addf %32, %33 : vector<48x10xf32>
    %cst_10 = arith.constant 0.000000e+00 : f32
    %35 = vector.broadcast %cst_10 : f32 to vector<48x10xf32>
    %36 = arith.maximumf %34, %35 : vector<48x10xf32>
    %37 = vector.extract_strided_slice %36 {offsets = [0, 0], sizes = [24, 10], strides = [1, 1]} : vector<48x10xf32> to vector<24x10xf32>
    %38 = vector.extract_strided_slice %36 {offsets = [24, 0], sizes = [24, 10], strides = [1, 1]} : vector<48x10xf32> to vector<24x10xf32>
    %39 = arith.maximumf %37, %38 : vector<24x10xf32>
    %cst_11 = arith.constant dense<0.000000e+00> : vector<12x10xf32>
    %40 = tpu.matmul %6, %39, %cst_11 {dimension_numbers = #tpu.dot_dimension_numbers<[1], [0], [0], [1], [0, 0, 1, 1], [], []>} : vector<12x24xf32>, vector<24x10xf32>, vector<12x10xf32> -> vector<12x10xf32>
    %cst_12 = arith.constant dense<0.000000e+00> : vector<12x10xf32>
    %41 = tpu.matmul %13, %39, %cst_12 {dimension_numbers = #tpu.dot_dimension_numbers<[1], [0], [0], [1], [0, 0, 1, 1], [], []>} : vector<12x24xf32>, vector<24x10xf32>, vector<12x10xf32> -> vector<12x10xf32>
    %42 = arith.maximumf %40, %41 : vector<12x10xf32>
    %c0_13 = arith.constant 0 : index
    %c0_14 = arith.constant 0 : index
    %c0_15 = arith.constant 0 : index
    %43 = vector.load %arg11[%c0_13, %c0_14, %c0_15] : memref<12x12x10xf32, #tpu.memory_space<vmem>>, vector<1x12x10xf32>
    %44 = vector.shape_cast %43 : vector<1x12x10xf32> to vector<12x10xf32>
    %45 = vector.shape_cast %42 : vector<12x10xf32> to vector<1x12x10xf32>
    tpu.vector_store %arg11[%c0_13, %c0_14, %c0_15], %45 {strides = array<i32>} : memref<12x12x10xf32, #tpu.memory_space<vmem>>, vector<1x12x10xf32>,
    %c0_16 = arith.constant 0 : index
    %c48 = arith.constant 48 : index
    %c0_17 = arith.constant 0 : index
    %46 = vector.load %arg1[%c0_16, %c48, %c0_17] : memref<1x576x25xf32, #tpu.memory_space<vmem>>, vector<1x48x25xf32>
    %47 = vector.shape_cast %46 : vector<1x48x25xf32> to vector<48x25xf32>
    %cst_18 = arith.constant dense<0.000000e+00> : vector<48x10xf32>
    %48 = tpu.matmul %47, %28, %cst_18 {dimension_numbers = #tpu.dot_dimension_numbers<[1], [0], [0], [1], [0, 0, 1, 1], [], []>} : vector<48x25xf32>, vector<25x10xf32>, vector<48x10xf32> -> vector<48x10xf32>
    %49 = vector.broadcast %29 : vector<1x10xf32> to vector<48x10xf32>
    %50 = arith.addf %48, %49 : vector<48x10xf32>
    %cst_19 = arith.constant 0.000000e+00 : f32
    %51 = vector.broadcast %cst_19 : f32 to vector<48x10xf32>
    %52 = arith.maximumf %50, %51 : vector<48x10xf32>
    %53 = vector.extract_strided_slice %52 {offsets = [0, 0], sizes = [24, 10], strides = [1, 1]} : vector<48x10xf32> to vector<24x10xf32>
    %54 = vector.extract_strided_slice %52 {offsets = [24, 0], sizes = [24, 10], strides = [1, 1]} : vector<48x10xf32> to vector<24x10xf32>
    %55 = arith.maximumf %53, %54 : vector<24x10xf32>
    %cst_20 = arith.constant dense<0.000000e+00> : vector<12x10xf32>
    %56 = tpu.matmul %6, %55, %cst_20 {dimension_numbers = #tpu.dot_dimension_numbers<[1], [0], [0], [1], [0, 0, 1, 1], [], []>} : vector<12x24xf32>, vector<24x10xf32>, vector<12x10xf32> -> vector<12x10xf32>
    %cst_21 = arith.constant dense<0.000000e+00> : vector<12x10xf32>
    %57 = tpu.matmul %13, %55, %cst_21 {dimension_numbers = #tpu.dot_dimension_numbers<[1], [0], [0], [1], [0, 0, 1, 1], [], []>} : vector<12x24xf32>, vector<24x10xf32>, vector<12x10xf32> -> vector<12x10xf32>
    %58 = arith.maximumf %56, %57 : vector<12x10xf32>
    %c1 = arith.constant 1 : index
    %c0_22 = arith.constant 0 : index
    %c0_23 = arith.constant 0 : index
    %59 = vector.load %arg11[%c1, %c0_22, %c0_23] : memref<12x12x10xf32, #tpu.memory_space<vmem>>, vector<1x12x10xf32>
    %60 = vector.shape_cast %59 : vector<1x12x10xf32> to vector<12x10xf32>
    %61 = vector.shape_cast %58 : vector<12x10xf32> to vector<1x12x10xf32>
    tpu.vector_store %arg11[%c1, %c0_22, %c0_23], %61 {strides = array<i32>} : memref<12x12x10xf32, #tpu.memory_space<vmem>>, vector<1x12x10xf32>,
    %c0_24 = arith.constant 0 : index
    %c96 = arith.constant 96 : index
    %c0_25 = arith.constant 0 : index
    %62 = vector.load %arg1[%c0_24, %c96, %c0_25] : memref<1x576x25xf32, #tpu.memory_space<vmem>>, vector<1x48x25xf32>
    %63 = vector.shape_cast %62 : vector<1x48x25xf32> to vector<48x25xf32>
    %cst_26 = arith.constant dense<0.000000e+00> : vector<48x10xf32>
    %64 = tpu.matmul %63, %28, %cst_26 {dimension_numbers = #tpu.dot_dimension_numbers<[1], [0], [0], [1], [0, 0, 1, 1], [], []>} : vector<48x25xf32>, vector<25x10xf32>, vector<48x10xf32> -> vector<48x10xf32>
    %65 = vector.broadcast %29 : vector<1x10xf32> to vector<48x10xf32>
    %66 = arith.addf %64, %65 : vector<48x10xf32>
    %cst_27 = arith.constant 0.000000e+00 : f32
    %67 = vector.broadcast %cst_27 : f32 to vector<48x10xf32>
    %68 = arith.maximumf %66, %67 : vector<48x10xf32>
    %69 = vector.extract_strided_slice %68 {offsets = [0, 0], sizes = [24, 10], strides = [1, 1]} : vector<48x10xf32> to vector<24x10xf32>
    %70 = vector.extract_strided_slice %68 {offsets = [24, 0], sizes = [24, 10], strides = [1, 1]} : vector<48x10xf32> to vector<24x10xf32>
    %71 = arith.maximumf %69, %70 : vector<24x10xf32>
    %cst_28 = arith.constant dense<0.000000e+00> : vector<12x10xf32>
    %72 = tpu.matmul %6, %71, %cst_28 {dimension_numbers = #tpu.dot_dimension_numbers<[1], [0], [0], [1], [0, 0, 1, 1], [], []>} : vector<12x24xf32>, vector<24x10xf32>, vector<12x10xf32> -> vector<12x10xf32>
    %cst_29 = arith.constant dense<0.000000e+00> : vector<12x10xf32>
    %73 = tpu.matmul %13, %71, %cst_29 {dimension_numbers = #tpu.dot_dimension_numbers<[1], [0], [0], [1], [0, 0, 1, 1], [], []>} : vector<12x24xf32>, vector<24x10xf32>, vector<12x10xf32> -> vector<12x10xf32>
    %74 = arith.maximumf %72, %73 : vector<12x10xf32>
    %c2 = arith.constant 2 : index
    %c0_30 = arith.constant 0 : index
    %c0_31 = arith.constant 0 : index
    %75 = vector.load %arg11[%c2, %c0_30, %c0_31] : memref<12x12x10xf32, #tpu.memory_space<vmem>>, vector<1x12x10xf32>
    %76 = vector.shape_cast %75 : vector<1x12x10xf32> to vector<12x10xf32>
    %77 = vector.shape_cast %74 : vector<12x10xf32> to vector<1x12x10xf32>
    tpu.vector_store %arg11[%c2, %c0_30, %c0_31], %77 {strides = array<i32>} : memref<12x12x10xf32, #tpu.memory_space<vmem>>, vector<1x12x10xf32>,
    %c0_32 = arith.constant 0 : index
    %c144 = arith.constant 144 : index
    %c0_33 = arith.constant 0 : index
    %78 = vector.load %arg1[%c0_32, %c144, %c0_33] : memref<1x576x25xf32, #tpu.memory_space<vmem>>, vector<1x48x25xf32>
    %79 = vector.shape_cast %78 : vector<1x48x25xf32> to vector<48x25xf32>
    %cst_34 = arith.constant dense<0.000000e+00> : vector<48x10xf32>
    %80 = tpu.matmul %79, %28, %cst_34 {dimension_numbers = #tpu.dot_dimension_numbers<[1], [0], [0], [1], [0, 0, 1, 1], [], []>} : vector<48x25xf32>, vector<25x10xf32>, vector<48x10xf32> -> vector<48x10xf32>
    %81 = vector.broadcast %29 : vector<1x10xf32> to vector<48x10xf32>
    %82 = arith.addf %80, %81 : vector<48x10xf32>
    %cst_35 = arith.constant 0.000000e+00 : f32
    %83 = vector.broadcast %cst_35 : f32 to vector<48x10xf32>
    %84 = arith.maximumf %82, %83 : vector<48x10xf32>
    %85 = vector.extract_strided_slice %84 {offsets = [0, 0], sizes = [24, 10], strides = [1, 1]} : vector<48x10xf32> to vector<24x10xf32>
    %86 = vector.extract_strided_slice %84 {offsets = [24, 0], sizes = [24, 10], strides = [1, 1]} : vector<48x10xf32> to vector<24x10xf32>
    %87 = arith.maximumf %85, %86 : vector<24x10xf32>
    %cst_36 = arith.constant dense<0.000000e+00> : vector<12x10xf32>
    %88 = tpu.matmul %6, %87, %cst_36 {dimension_numbers = #tpu.dot_dimension_numbers<[1], [0], [0], [1], [0, 0, 1, 1], [], []>} : vector<12x24xf32>, vector<24x10xf32>, vector<12x10xf32> -> vector<12x10xf32>
    %cst_37 = arith.constant dense<0.000000e+00> : vector<12x10xf32>
    %89 = tpu.matmul %13, %87, %cst_37 {dimension_numbers = #tpu.dot_dimension_numbers<[1], [0], [0], [1], [0, 0, 1, 1], [], []>} : vector<12x24xf32>, vector<24x10xf32>, vector<12x10xf32> -> vector<12x10xf32>
    %90 = arith.maximumf %88, %89 : vector<12x10xf32>
    %c3 = arith.constant 3 : index
    %c0_38 = arith.constant 0 : index
    %c0_39 = arith.constant 0 : index
    %91 = vector.load %arg11[%c3, %c0_38, %c0_39] : memref<12x12x10xf32, #tpu.memory_space<vmem>>, vector<1x12x10xf32>
    %92 = vector.shape_cast %91 : vector<1x12x10xf32> to vector<12x10xf32>
    %93 = vector.shape_cast %90 : vector<12x10xf32> to vector<1x12x10xf32>
    tpu.vector_store %arg11[%c3, %c0_38, %c0_39], %93 {strides = array<i32>} : memref<12x12x10xf32, #tpu.memory_space<vmem>>, vector<1x12x10xf32>,
    %c0_40 = arith.constant 0 : index
    %c192 = arith.constant 192 : index
    %c0_41 = arith.constant 0 : index
    %94 = vector.load %arg1[%c0_40, %c192, %c0_41] : memref<1x576x25xf32, #tpu.memory_space<vmem>>, vector<1x48x25xf32>
    %95 = vector.shape_cast %94 : vector<1x48x25xf32> to vector<48x25xf32>
    %cst_42 = arith.constant dense<0.000000e+00> : vector<48x10xf32>
    %96 = tpu.matmul %95, %28, %cst_42 {dimension_numbers = #tpu.dot_dimension_numbers<[1], [0], [0], [1], [0, 0, 1, 1], [], []>} : vector<48x25xf32>, vector<25x10xf32>, vector<48x10xf32> -> vector<48x10xf32>
    %97 = vector.broadcast %29 : vector<1x10xf32> to vector<48x10xf32>
    %98 = arith.addf %96, %97 : vector<48x10xf32>
    %cst_43 = arith.constant 0.000000e+00 : f32
    %99 = vector.broadcast %cst_43 : f32 to vector<48x10xf32>
    %100 = arith.maximumf %98, %99 : vector<48x10xf32>
    %101 = vector.extract_strided_slice %100 {offsets = [0, 0], sizes = [24, 10], strides = [1, 1]} : vector<48x10xf32> to vector<24x10xf32>
    %102 = vector.extract_strided_slice %100 {offsets = [24, 0], sizes = [24, 10], strides = [1, 1]} : vector<48x10xf32> to vector<24x10xf32>
    %103 = arith.maximumf %101, %102 : vector<24x10xf32>
    %cst_44 = arith.constant dense<0.000000e+00> : vector<12x10xf32>
    %104 = tpu.matmul %6, %103, %cst_44 {dimension_numbers = #tpu.dot_dimension_numbers<[1], [0], [0], [1], [0, 0, 1, 1], [], []>} : vector<12x24xf32>, vector<24x10xf32>, vector<12x10xf32> -> vector<12x10xf32>
    %cst_45 = arith.constant dense<0.000000e+00> : vector<12x10xf32>
    %105 = tpu.matmul %13, %103, %cst_45 {dimension_numbers = #tpu.dot_dimension_numbers<[1], [0], [0], [1], [0, 0, 1, 1], [], []>} : vector<12x24xf32>, vector<24x10xf32>, vector<12x10xf32> -> vector<12x10xf32>
    %106 = arith.maximumf %104, %105 : vector<12x10xf32>
    %c4 = arith.constant 4 : index
    %c0_46 = arith.constant 0 : index
    %c0_47 = arith.constant 0 : index
    %107 = vector.load %arg11[%c4, %c0_46, %c0_47] : memref<12x12x10xf32, #tpu.memory_space<vmem>>, vector<1x12x10xf32>
    %108 = vector.shape_cast %107 : vector<1x12x10xf32> to vector<12x10xf32>
    %109 = vector.shape_cast %106 : vector<12x10xf32> to vector<1x12x10xf32>
    tpu.vector_store %arg11[%c4, %c0_46, %c0_47], %109 {strides = array<i32>} : memref<12x12x10xf32, #tpu.memory_space<vmem>>, vector<1x12x10xf32>,
    %c0_48 = arith.constant 0 : index
    %c240 = arith.constant 240 : index
    %c0_49 = arith.constant 0 : index
    %110 = vector.load %arg1[%c0_48, %c240, %c0_49] : memref<1x576x25xf32, #tpu.memory_space<vmem>>, vector<1x48x25xf32>
    %111 = vector.shape_cast %110 : vector<1x48x25xf32> to vector<48x25xf32>
    %cst_50 = arith.constant dense<0.000000e+00> : vector<48x10xf32>
    %112 = tpu.matmul %111, %28, %cst_50 {dimension_numbers = #tpu.dot_dimension_numbers<[1], [0], [0], [1], [0, 0, 1, 1], [], []>} : vector<48x25xf32>, vector<25x10xf32>, vector<48x10xf32> -> vector<48x10xf32>
    %113 = vector.broadcast %29 : vector<1x10xf32> to vector<48x10xf32>
    %114 = arith.addf %112, %113 : vector<48x10xf32>
    %cst_51 = arith.constant 0.000000e+00 : f32
    %115 = vector.broadcast %cst_51 : f32 to vector<48x10xf32>
    %116 = arith.maximumf %114, %115 : vector<48x10xf32>
    %117 = vector.extract_strided_slice %116 {offsets = [0, 0], sizes = [24, 10], strides = [1, 1]} : vector<48x10xf32> to vector<24x10xf32>
    %118 = vector.extract_strided_slice %116 {offsets = [24, 0], sizes = [24, 10], strides = [1, 1]} : vector<48x10xf32> to vector<24x10xf32>
    %119 = arith.maximumf %117, %118 : vector<24x10xf32>
    %cst_52 = arith.constant dense<0.000000e+00> : vector<12x10xf32>
    %120 = tpu.matmul %6, %119, %cst_52 {dimension_numbers = #tpu.dot_dimension_numbers<[1], [0], [0], [1], [0, 0, 1, 1], [], []>} : vector<12x24xf32>, vector<24x10xf32>, vector<12x10xf32> -> vector<12x10xf32>
    %cst_53 = arith.constant dense<0.000000e+00> : vector<12x10xf32>
    %121 = tpu.matmul %13, %119, %cst_53 {dimension_numbers = #tpu.dot_dimension_numbers<[1], [0], [0], [1], [0, 0, 1, 1], [], []>} : vector<12x24xf32>, vector<24x10xf32>, vector<12x10xf32> -> vector<12x10xf32>
    %122 = arith.maximumf %120, %121 : vector<12x10xf32>
    %c5 = arith.constant 5 : index
    %c0_54 = arith.constant 0 : index
    %c0_55 = arith.constant 0 : index
    %123 = vector.load %arg11[%c5, %c0_54, %c0_55] : memref<12x12x10xf32, #tpu.memory_space<vmem>>, vector<1x12x10xf32>
    %124 = vector.shape_cast %123 : vector<1x12x10xf32> to vector<12x10xf32>
    %125 = vector.shape_cast %122 : vector<12x10xf32> to vector<1x12x10xf32>
    tpu.vector_store %arg11[%c5, %c0_54, %c0_55], %125 {strides = array<i32>} : memref<12x12x10xf32, #tpu.memory_space<vmem>>, vector<1x12x10xf32>,
    %c0_56 = arith.constant 0 : index
    %c288 = arith.constant 288 : index
    %c0_57 = arith.constant 0 : index
    %126 = vector.load %arg1[%c0_56, %c288, %c0_57] : memref<1x576x25xf32, #tpu.memory_space<vmem>>, vector<1x48x25xf32>
    %127 = vector.shape_cast %126 : vector<1x48x25xf32> to vector<48x25xf32>
    %cst_58 = arith.constant dense<0.000000e+00> : vector<48x10xf32>
    %128 = tpu.matmul %127, %28, %cst_58 {dimension_numbers = #tpu.dot_dimension_numbers<[1], [0], [0], [1], [0, 0, 1, 1], [], []>} : vector<48x25xf32>, vector<25x10xf32>, vector<48x10xf32> -> vector<48x10xf32>
    %129 = vector.broadcast %29 : vector<1x10xf32> to vector<48x10xf32>
    %130 = arith.addf %128, %129 : vector<48x10xf32>
    %cst_59 = arith.constant 0.000000e+00 : f32
    %131 = vector.broadcast %cst_59 : f32 to vector<48x10xf32>
    %132 = arith.maximumf %130, %131 : vector<48x10xf32>
    %133 = vector.extract_strided_slice %132 {offsets = [0, 0], sizes = [24, 10], strides = [1, 1]} : vector<48x10xf32> to vector<24x10xf32>
    %134 = vector.extract_strided_slice %132 {offsets = [24, 0], sizes = [24, 10], strides = [1, 1]} : vector<48x10xf32> to vector<24x10xf32>
    %135 = arith.maximumf %133, %134 : vector<24x10xf32>
    %cst_60 = arith.constant dense<0.000000e+00> : vector<12x10xf32>
    %136 = tpu.matmul %6, %135, %cst_60 {dimension_numbers = #tpu.dot_dimension_numbers<[1], [0], [0], [1], [0, 0, 1, 1], [], []>} : vector<12x24xf32>, vector<24x10xf32>, vector<12x10xf32> -> vector<12x10xf32>
    %cst_61 = arith.constant dense<0.000000e+00> : vector<12x10xf32>
    %137 = tpu.matmul %13, %135, %cst_61 {dimension_numbers = #tpu.dot_dimension_numbers<[1], [0], [0], [1], [0, 0, 1, 1], [], []>} : vector<12x24xf32>, vector<24x10xf32>, vector<12x10xf32> -> vector<12x10xf32>
    %138 = arith.maximumf %136, %137 : vector<12x10xf32>
    %c6 = arith.constant 6 : index
    %c0_62 = arith.constant 0 : index
    %c0_63 = arith.constant 0 : index
    %139 = vector.load %arg11[%c6, %c0_62, %c0_63] : memref<12x12x10xf32, #tpu.memory_space<vmem>>, vector<1x12x10xf32>
    %140 = vector.shape_cast %139 : vector<1x12x10xf32> to vector<12x10xf32>
    %141 = vector.shape_cast %138 : vector<12x10xf32> to vector<1x12x10xf32>
    tpu.vector_store %arg11[%c6, %c0_62, %c0_63], %141 {strides = array<i32>} : memref<12x12x10xf32, #tpu.memory_space<vmem>>, vector<1x12x10xf32>,
    %c0_64 = arith.constant 0 : index
    %c336 = arith.constant 336 : index
    %c0_65 = arith.constant 0 : index
    %142 = vector.load %arg1[%c0_64, %c336, %c0_65] : memref<1x576x25xf32, #tpu.memory_space<vmem>>, vector<1x48x25xf32>
    %143 = vector.shape_cast %142 : vector<1x48x25xf32> to vector<48x25xf32>
    %cst_66 = arith.constant dense<0.000000e+00> : vector<48x10xf32>
    %144 = tpu.matmul %143, %28, %cst_66 {dimension_numbers = #tpu.dot_dimension_numbers<[1], [0], [0], [1], [0, 0, 1, 1], [], []>} : vector<48x25xf32>, vector<25x10xf32>, vector<48x10xf32> -> vector<48x10xf32>
    %145 = vector.broadcast %29 : vector<1x10xf32> to vector<48x10xf32>
    %146 = arith.addf %144, %145 : vector<48x10xf32>
    %cst_67 = arith.constant 0.000000e+00 : f32
    %147 = vector.broadcast %cst_67 : f32 to vector<48x10xf32>
    %148 = arith.maximumf %146, %147 : vector<48x10xf32>
    %149 = vector.extract_strided_slice %148 {offsets = [0, 0], sizes = [24, 10], strides = [1, 1]} : vector<48x10xf32> to vector<24x10xf32>
    %150 = vector.extract_strided_slice %148 {offsets = [24, 0], sizes = [24, 10], strides = [1, 1]} : vector<48x10xf32> to vector<24x10xf32>
    %151 = arith.maximumf %149, %150 : vector<24x10xf32>
    %cst_68 = arith.constant dense<0.000000e+00> : vector<12x10xf32>
    %152 = tpu.matmul %6, %151, %cst_68 {dimension_numbers = #tpu.dot_dimension_numbers<[1], [0], [0], [1], [0, 0, 1, 1], [], []>} : vector<12x24xf32>, vector<24x10xf32>, vector<12x10xf32> -> vector<12x10xf32>
    %cst_69 = arith.constant dense<0.000000e+00> : vector<12x10xf32>
    %153 = tpu.matmul %13, %151, %cst_69 {dimension_numbers = #tpu.dot_dimension_numbers<[1], [0], [0], [1], [0, 0, 1, 1], [], []>} : vector<12x24xf32>, vector<24x10xf32>, vector<12x10xf32> -> vector<12x10xf32>
    %154 = arith.maximumf %152, %153 : vector<12x10xf32>
    %c7 = arith.constant 7 : index
    %c0_70 = arith.constant 0 : index
    %c0_71 = arith.constant 0 : index
    %155 = vector.load %arg11[%c7, %c0_70, %c0_71] : memref<12x12x10xf32, #tpu.memory_space<vmem>>, vector<1x12x10xf32>
    %156 = vector.shape_cast %155 : vector<1x12x10xf32> to vector<12x10xf32>
    %157 = vector.shape_cast %154 : vector<12x10xf32> to vector<1x12x10xf32>
    tpu.vector_store %arg11[%c7, %c0_70, %c0_71], %157 {strides = array<i32>} : memref<12x12x10xf32, #tpu.memory_space<vmem>>, vector<1x12x10xf32>,
    %c0_72 = arith.constant 0 : index
    %c384 = arith.constant 384 : index
    %c0_73 = arith.constant 0 : index
    %158 = vector.load %arg1[%c0_72, %c384, %c0_73] : memref<1x576x25xf32, #tpu.memory_space<vmem>>, vector<1x48x25xf32>
    %159 = vector.shape_cast %158 : vector<1x48x25xf32> to vector<48x25xf32>
    %cst_74 = arith.constant dense<0.000000e+00> : vector<48x10xf32>
    %160 = tpu.matmul %159, %28, %cst_74 {dimension_numbers = #tpu.dot_dimension_numbers<[1], [0], [0], [1], [0, 0, 1, 1], [], []>} : vector<48x25xf32>, vector<25x10xf32>, vector<48x10xf32> -> vector<48x10xf32>
    %161 = vector.broadcast %29 : vector<1x10xf32> to vector<48x10xf32>
    %162 = arith.addf %160, %161 : vector<48x10xf32>
    %cst_75 = arith.constant 0.000000e+00 : f32
    %163 = vector.broadcast %cst_75 : f32 to vector<48x10xf32>
    %164 = arith.maximumf %162, %163 : vector<48x10xf32>
    %165 = vector.extract_strided_slice %164 {offsets = [0, 0], sizes = [24, 10], strides = [1, 1]} : vector<48x10xf32> to vector<24x10xf32>
    %166 = vector.extract_strided_slice %164 {offsets = [24, 0], sizes = [24, 10], strides = [1, 1]} : vector<48x10xf32> to vector<24x10xf32>
    %167 = arith.maximumf %165, %166 : vector<24x10xf32>
    %cst_76 = arith.constant dense<0.000000e+00> : vector<12x10xf32>
    %168 = tpu.matmul %6, %167, %cst_76 {dimension_numbers = #tpu.dot_dimension_numbers<[1], [0], [0], [1], [0, 0, 1, 1], [], []>} : vector<12x24xf32>, vector<24x10xf32>, vector<12x10xf32> -> vector<12x10xf32>
    %cst_77 = arith.constant dense<0.000000e+00> : vector<12x10xf32>
    %169 = tpu.matmul %13, %167, %cst_77 {dimension_numbers = #tpu.dot_dimension_numbers<[1], [0], [0], [1], [0, 0, 1, 1], [], []>} : vector<12x24xf32>, vector<24x10xf32>, vector<12x10xf32> -> vector<12x10xf32>
    %170 = arith.maximumf %168, %169 : vector<12x10xf32>
    %c8 = arith.constant 8 : index
    %c0_78 = arith.constant 0 : index
    %c0_79 = arith.constant 0 : index
    %171 = vector.load %arg11[%c8, %c0_78, %c0_79] : memref<12x12x10xf32, #tpu.memory_space<vmem>>, vector<1x12x10xf32>
    %172 = vector.shape_cast %171 : vector<1x12x10xf32> to vector<12x10xf32>
    %173 = vector.shape_cast %170 : vector<12x10xf32> to vector<1x12x10xf32>
    tpu.vector_store %arg11[%c8, %c0_78, %c0_79], %173 {strides = array<i32>} : memref<12x12x10xf32, #tpu.memory_space<vmem>>, vector<1x12x10xf32>,
    %c0_80 = arith.constant 0 : index
    %c432 = arith.constant 432 : index
    %c0_81 = arith.constant 0 : index
    %174 = vector.load %arg1[%c0_80, %c432, %c0_81] : memref<1x576x25xf32, #tpu.memory_space<vmem>>, vector<1x48x25xf32>
    %175 = vector.shape_cast %174 : vector<1x48x25xf32> to vector<48x25xf32>
    %cst_82 = arith.constant dense<0.000000e+00> : vector<48x10xf32>
    %176 = tpu.matmul %175, %28, %cst_82 {dimension_numbers = #tpu.dot_dimension_numbers<[1], [0], [0], [1], [0, 0, 1, 1], [], []>} : vector<48x25xf32>, vector<25x10xf32>, vector<48x10xf32> -> vector<48x10xf32>
    %177 = vector.broadcast %29 : vector<1x10xf32> to vector<48x10xf32>
    %178 = arith.addf %176, %177 : vector<48x10xf32>
    %cst_83 = arith.constant 0.000000e+00 : f32
    %179 = vector.broadcast %cst_83 : f32 to vector<48x10xf32>
    %180 = arith.maximumf %178, %179 : vector<48x10xf32>
    %181 = vector.extract_strided_slice %180 {offsets = [0, 0], sizes = [24, 10], strides = [1, 1]} : vector<48x10xf32> to vector<24x10xf32>
    %182 = vector.extract_strided_slice %180 {offsets = [24, 0], sizes = [24, 10], strides = [1, 1]} : vector<48x10xf32> to vector<24x10xf32>
    %183 = arith.maximumf %181, %182 : vector<24x10xf32>
    %cst_84 = arith.constant dense<0.000000e+00> : vector<12x10xf32>
    %184 = tpu.matmul %6, %183, %cst_84 {dimension_numbers = #tpu.dot_dimension_numbers<[1], [0], [0], [1], [0, 0, 1, 1], [], []>} : vector<12x24xf32>, vector<24x10xf32>, vector<12x10xf32> -> vector<12x10xf32>
    %cst_85 = arith.constant dense<0.000000e+00> : vector<12x10xf32>
    %185 = tpu.matmul %13, %183, %cst_85 {dimension_numbers = #tpu.dot_dimension_numbers<[1], [0], [0], [1], [0, 0, 1, 1], [], []>} : vector<12x24xf32>, vector<24x10xf32>, vector<12x10xf32> -> vector<12x10xf32>
    %186 = arith.maximumf %184, %185 : vector<12x10xf32>
    %c9 = arith.constant 9 : index
    %c0_86 = arith.constant 0 : index
    %c0_87 = arith.constant 0 : index
    %187 = vector.load %arg11[%c9, %c0_86, %c0_87] : memref<12x12x10xf32, #tpu.memory_space<vmem>>, vector<1x12x10xf32>
    %188 = vector.shape_cast %187 : vector<1x12x10xf32> to vector<12x10xf32>
    %189 = vector.shape_cast %186 : vector<12x10xf32> to vector<1x12x10xf32>
    tpu.vector_store %arg11[%c9, %c0_86, %c0_87], %189 {strides = array<i32>} : memref<12x12x10xf32, #tpu.memory_space<vmem>>, vector<1x12x10xf32>,
    %c0_88 = arith.constant 0 : index
    %c480 = arith.constant 480 : index
    %c0_89 = arith.constant 0 : index
    %190 = vector.load %arg1[%c0_88, %c480, %c0_89] : memref<1x576x25xf32, #tpu.memory_space<vmem>>, vector<1x48x25xf32>
    %191 = vector.shape_cast %190 : vector<1x48x25xf32> to vector<48x25xf32>
    %cst_90 = arith.constant dense<0.000000e+00> : vector<48x10xf32>
    %192 = tpu.matmul %191, %28, %cst_90 {dimension_numbers = #tpu.dot_dimension_numbers<[1], [0], [0], [1], [0, 0, 1, 1], [], []>} : vector<48x25xf32>, vector<25x10xf32>, vector<48x10xf32> -> vector<48x10xf32>
    %193 = vector.broadcast %29 : vector<1x10xf32> to vector<48x10xf32>
    %194 = arith.addf %192, %193 : vector<48x10xf32>
    %cst_91 = arith.constant 0.000000e+00 : f32
    %195 = vector.broadcast %cst_91 : f32 to vector<48x10xf32>
    %196 = arith.maximumf %194, %195 : vector<48x10xf32>
    %197 = vector.extract_strided_slice %196 {offsets = [0, 0], sizes = [24, 10], strides = [1, 1]} : vector<48x10xf32> to vector<24x10xf32>
    %198 = vector.extract_strided_slice %196 {offsets = [24, 0], sizes = [24, 10], strides = [1, 1]} : vector<48x10xf32> to vector<24x10xf32>
    %199 = arith.maximumf %197, %198 : vector<24x10xf32>
    %cst_92 = arith.constant dense<0.000000e+00> : vector<12x10xf32>
    %200 = tpu.matmul %6, %199, %cst_92 {dimension_numbers = #tpu.dot_dimension_numbers<[1], [0], [0], [1], [0, 0, 1, 1], [], []>} : vector<12x24xf32>, vector<24x10xf32>, vector<12x10xf32> -> vector<12x10xf32>
    %cst_93 = arith.constant dense<0.000000e+00> : vector<12x10xf32>
    %201 = tpu.matmul %13, %199, %cst_93 {dimension_numbers = #tpu.dot_dimension_numbers<[1], [0], [0], [1], [0, 0, 1, 1], [], []>} : vector<12x24xf32>, vector<24x10xf32>, vector<12x10xf32> -> vector<12x10xf32>
    %202 = arith.maximumf %200, %201 : vector<12x10xf32>
    %c10 = arith.constant 10 : index
    %c0_94 = arith.constant 0 : index
    %c0_95 = arith.constant 0 : index
    %203 = vector.load %arg11[%c10, %c0_94, %c0_95] : memref<12x12x10xf32, #tpu.memory_space<vmem>>, vector<1x12x10xf32>
    %204 = vector.shape_cast %203 : vector<1x12x10xf32> to vector<12x10xf32>
    %205 = vector.shape_cast %202 : vector<12x10xf32> to vector<1x12x10xf32>
    tpu.vector_store %arg11[%c10, %c0_94, %c0_95], %205 {strides = array<i32>} : memref<12x12x10xf32, #tpu.memory_space<vmem>>, vector<1x12x10xf32>,
    %c0_96 = arith.constant 0 : index
    %c528 = arith.constant 528 : index
    %c0_97 = arith.constant 0 : index
    %206 = vector.load %arg1[%c0_96, %c528, %c0_97] : memref<1x576x25xf32, #tpu.memory_space<vmem>>, vector<1x48x25xf32>
    %207 = vector.shape_cast %206 : vector<1x48x25xf32> to vector<48x25xf32>
    %cst_98 = arith.constant dense<0.000000e+00> : vector<48x10xf32>
    %208 = tpu.matmul %207, %28, %cst_98 {dimension_numbers = #tpu.dot_dimension_numbers<[1], [0], [0], [1], [0, 0, 1, 1], [], []>} : vector<48x25xf32>, vector<25x10xf32>, vector<48x10xf32> -> vector<48x10xf32>
    %209 = vector.broadcast %29 : vector<1x10xf32> to vector<48x10xf32>
    %210 = arith.addf %208, %209 : vector<48x10xf32>
    %cst_99 = arith.constant 0.000000e+00 : f32
    %211 = vector.broadcast %cst_99 : f32 to vector<48x10xf32>
    %212 = arith.maximumf %210, %211 : vector<48x10xf32>
    %213 = vector.extract_strided_slice %212 {offsets = [0, 0], sizes = [24, 10], strides = [1, 1]} : vector<48x10xf32> to vector<24x10xf32>
    %214 = vector.extract_strided_slice %212 {offsets = [24, 0], sizes = [24, 10], strides = [1, 1]} : vector<48x10xf32> to vector<24x10xf32>
    %215 = arith.maximumf %213, %214 : vector<24x10xf32>
    %cst_100 = arith.constant dense<0.000000e+00> : vector<12x10xf32>
    %216 = tpu.matmul %6, %215, %cst_100 {dimension_numbers = #tpu.dot_dimension_numbers<[1], [0], [0], [1], [0, 0, 1, 1], [], []>} : vector<12x24xf32>, vector<24x10xf32>, vector<12x10xf32> -> vector<12x10xf32>
    %cst_101 = arith.constant dense<0.000000e+00> : vector<12x10xf32>
    %217 = tpu.matmul %13, %215, %cst_101 {dimension_numbers = #tpu.dot_dimension_numbers<[1], [0], [0], [1], [0, 0, 1, 1], [], []>} : vector<12x24xf32>, vector<24x10xf32>, vector<12x10xf32> -> vector<12x10xf32>
    %218 = arith.maximumf %216, %217 : vector<12x10xf32>
    %c11 = arith.constant 11 : index
    %c0_102 = arith.constant 0 : index
    %c0_103 = arith.constant 0 : index
    %219 = vector.load %arg11[%c11, %c0_102, %c0_103] : memref<12x12x10xf32, #tpu.memory_space<vmem>>, vector<1x12x10xf32>
    %220 = vector.shape_cast %219 : vector<1x12x10xf32> to vector<12x10xf32>
    %221 = vector.shape_cast %218 : vector<12x10xf32> to vector<1x12x10xf32>
    tpu.vector_store %arg11[%c11, %c0_102, %c0_103], %221 {strides = array<i32>} : memref<12x12x10xf32, #tpu.memory_space<vmem>>, vector<1x12x10xf32>,
    %c0_104 = arith.constant 0 : index
    %c0_105 = arith.constant 0 : index
    %c0_106 = arith.constant 0 : index
    %222 = vector.load %arg11[%c0_104, %c0_105, %c0_106] : memref<12x12x10xf32, #tpu.memory_space<vmem>>, vector<12x12x10xf32>
    %cst_107 = arith.constant 0.000000e+00 : f32
    %223 = vector.broadcast %cst_107 : f32 to vector<64x20xf32>
    %224 = vector.extract_strided_slice %222 {offsets = [0, 0, 0], sizes = [1, 8, 10], strides = [1, 1, 1]} : vector<12x12x10xf32> to vector<1x8x10xf32>
    %225 = vector.shape_cast %224 : vector<1x8x10xf32> to vector<8x10xf32>
    %226 = vector.extract_strided_slice %222 {offsets = [1, 0, 0], sizes = [1, 8, 10], strides = [1, 1, 1]} : vector<12x12x10xf32> to vector<1x8x10xf32>
    %227 = vector.shape_cast %226 : vector<1x8x10xf32> to vector<8x10xf32>
    %228 = vector.extract_strided_slice %222 {offsets = [2, 0, 0], sizes = [1, 8, 10], strides = [1, 1, 1]} : vector<12x12x10xf32> to vector<1x8x10xf32>
    %229 = vector.shape_cast %228 : vector<1x8x10xf32> to vector<8x10xf32>
    %230 = vector.extract_strided_slice %222 {offsets = [3, 0, 0], sizes = [1, 8, 10], strides = [1, 1, 1]} : vector<12x12x10xf32> to vector<1x8x10xf32>
    %231 = vector.shape_cast %230 : vector<1x8x10xf32> to vector<8x10xf32>
    %232 = vector.extract_strided_slice %222 {offsets = [4, 0, 0], sizes = [1, 8, 10], strides = [1, 1, 1]} : vector<12x12x10xf32> to vector<1x8x10xf32>
    %233 = vector.shape_cast %232 : vector<1x8x10xf32> to vector<8x10xf32>
    %234 = vector.extract_strided_slice %222 {offsets = [5, 0, 0], sizes = [1, 8, 10], strides = [1, 1, 1]} : vector<12x12x10xf32> to vector<1x8x10xf32>
    %235 = vector.shape_cast %234 : vector<1x8x10xf32> to vector<8x10xf32>
    %236 = vector.extract_strided_slice %222 {offsets = [6, 0, 0], sizes = [1, 8, 10], strides = [1, 1, 1]} : vector<12x12x10xf32> to vector<1x8x10xf32>
    %237 = vector.shape_cast %236 : vector<1x8x10xf32> to vector<8x10xf32>
    %238 = vector.extract_strided_slice %222 {offsets = [7, 0, 0], sizes = [1, 8, 10], strides = [1, 1, 1]} : vector<12x12x10xf32> to vector<1x8x10xf32>
    %239 = vector.shape_cast %238 : vector<1x8x10xf32> to vector<8x10xf32>
    %240 = tpu.concatenate %225, %227, %229, %231, %233, %235, %237, %239 in 0 : vector<8x10xf32>, vector<8x10xf32>, vector<8x10xf32>, vector<8x10xf32>, vector<8x10xf32>, vector<8x10xf32>, vector<8x10xf32>, vector<8x10xf32> -> vector<64x10xf32>
    %c0_108 = arith.constant 0 : index
    %c0_109 = arith.constant 0 : index
    %c0_110 = arith.constant 0 : index
    %241 = vector.load %arg4[%c0_108, %c0_109, %c0_110] : memref<25x10x20xf32, #tpu.memory_space<vmem>>, vector<1x10x20xf32>
    %242 = vector.shape_cast %241 : vector<1x10x20xf32> to vector<10x20xf32>
    %cst_111 = arith.constant dense<0.000000e+00> : vector<64x20xf32>
    %243 = tpu.matmul %240, %242, %cst_111 {dimension_numbers = #tpu.dot_dimension_numbers<[1], [0], [0], [1], [0, 0, 1, 1], [], []>} : vector<64x10xf32>, vector<10x20xf32>, vector<64x20xf32> -> vector<64x20xf32>
    %244 = arith.addf %223, %243 : vector<64x20xf32>
    %245 = vector.extract_strided_slice %222 {offsets = [0, 1, 0], sizes = [1, 8, 10], strides = [1, 1, 1]} : vector<12x12x10xf32> to vector<1x8x10xf32>
    %246 = vector.shape_cast %245 : vector<1x8x10xf32> to vector<8x10xf32>
    %247 = vector.extract_strided_slice %222 {offsets = [1, 1, 0], sizes = [1, 8, 10], strides = [1, 1, 1]} : vector<12x12x10xf32> to vector<1x8x10xf32>
    %248 = vector.shape_cast %247 : vector<1x8x10xf32> to vector<8x10xf32>
    %249 = vector.extract_strided_slice %222 {offsets = [2, 1, 0], sizes = [1, 8, 10], strides = [1, 1, 1]} : vector<12x12x10xf32> to vector<1x8x10xf32>
    %250 = vector.shape_cast %249 : vector<1x8x10xf32> to vector<8x10xf32>
    %251 = vector.extract_strided_slice %222 {offsets = [3, 1, 0], sizes = [1, 8, 10], strides = [1, 1, 1]} : vector<12x12x10xf32> to vector<1x8x10xf32>
    %252 = vector.shape_cast %251 : vector<1x8x10xf32> to vector<8x10xf32>
    %253 = vector.extract_strided_slice %222 {offsets = [4, 1, 0], sizes = [1, 8, 10], strides = [1, 1, 1]} : vector<12x12x10xf32> to vector<1x8x10xf32>
    %254 = vector.shape_cast %253 : vector<1x8x10xf32> to vector<8x10xf32>
    %255 = vector.extract_strided_slice %222 {offsets = [5, 1, 0], sizes = [1, 8, 10], strides = [1, 1, 1]} : vector<12x12x10xf32> to vector<1x8x10xf32>
    %256 = vector.shape_cast %255 : vector<1x8x10xf32> to vector<8x10xf32>
    %257 = vector.extract_strided_slice %222 {offsets = [6, 1, 0], sizes = [1, 8, 10], strides = [1, 1, 1]} : vector<12x12x10xf32> to vector<1x8x10xf32>
    %258 = vector.shape_cast %257 : vector<1x8x10xf32> to vector<8x10xf32>
    %259 = vector.extract_strided_slice %222 {offsets = [7, 1, 0], sizes = [1, 8, 10], strides = [1, 1, 1]} : vector<12x12x10xf32> to vector<1x8x10xf32>
    %260 = vector.shape_cast %259 : vector<1x8x10xf32> to vector<8x10xf32>
    %261 = tpu.concatenate %246, %248, %250, %252, %254, %256, %258, %260 in 0 : vector<8x10xf32>, vector<8x10xf32>, vector<8x10xf32>, vector<8x10xf32>, vector<8x10xf32>, vector<8x10xf32>, vector<8x10xf32>, vector<8x10xf32> -> vector<64x10xf32>
    %c1_112 = arith.constant 1 : index
    %c0_113 = arith.constant 0 : index
    %c0_114 = arith.constant 0 : index
    %262 = vector.load %arg4[%c1_112, %c0_113, %c0_114] : memref<25x10x20xf32, #tpu.memory_space<vmem>>, vector<1x10x20xf32>
    %263 = vector.shape_cast %262 : vector<1x10x20xf32> to vector<10x20xf32>
    %cst_115 = arith.constant dense<0.000000e+00> : vector<64x20xf32>
    %264 = tpu.matmul %261, %263, %cst_115 {dimension_numbers = #tpu.dot_dimension_numbers<[1], [0], [0], [1], [0, 0, 1, 1], [], []>} : vector<64x10xf32>, vector<10x20xf32>, vector<64x20xf32> -> vector<64x20xf32>
    %265 = arith.addf %244, %264 : vector<64x20xf32>
    %266 = vector.extract_strided_slice %222 {offsets = [0, 2, 0], sizes = [1, 8, 10], strides = [1, 1, 1]} : vector<12x12x10xf32> to vector<1x8x10xf32>
    %267 = vector.shape_cast %266 : vector<1x8x10xf32> to vector<8x10xf32>
    %268 = vector.extract_strided_slice %222 {offsets = [1, 2, 0], sizes = [1, 8, 10], strides = [1, 1, 1]} : vector<12x12x10xf32> to vector<1x8x10xf32>
    %269 = vector.shape_cast %268 : vector<1x8x10xf32> to vector<8x10xf32>
    %270 = vector.extract_strided_slice %222 {offsets = [2, 2, 0], sizes = [1, 8, 10], strides = [1, 1, 1]} : vector<12x12x10xf32> to vector<1x8x10xf32>
    %271 = vector.shape_cast %270 : vector<1x8x10xf32> to vector<8x10xf32>
    %272 = vector.extract_strided_slice %222 {offsets = [3, 2, 0], sizes = [1, 8, 10], strides = [1, 1, 1]} : vector<12x12x10xf32> to vector<1x8x10xf32>
    %273 = vector.shape_cast %272 : vector<1x8x10xf32> to vector<8x10xf32>
    %274 = vector.extract_strided_slice %222 {offsets = [4, 2, 0], sizes = [1, 8, 10], strides = [1, 1, 1]} : vector<12x12x10xf32> to vector<1x8x10xf32>
    %275 = vector.shape_cast %274 : vector<1x8x10xf32> to vector<8x10xf32>
    %276 = vector.extract_strided_slice %222 {offsets = [5, 2, 0], sizes = [1, 8, 10], strides = [1, 1, 1]} : vector<12x12x10xf32> to vector<1x8x10xf32>
    %277 = vector.shape_cast %276 : vector<1x8x10xf32> to vector<8x10xf32>
    %278 = vector.extract_strided_slice %222 {offsets = [6, 2, 0], sizes = [1, 8, 10], strides = [1, 1, 1]} : vector<12x12x10xf32> to vector<1x8x10xf32>
    %279 = vector.shape_cast %278 : vector<1x8x10xf32> to vector<8x10xf32>
    %280 = vector.extract_strided_slice %222 {offsets = [7, 2, 0], sizes = [1, 8, 10], strides = [1, 1, 1]} : vector<12x12x10xf32> to vector<1x8x10xf32>
    %281 = vector.shape_cast %280 : vector<1x8x10xf32> to vector<8x10xf32>
    %282 = tpu.concatenate %267, %269, %271, %273, %275, %277, %279, %281 in 0 : vector<8x10xf32>, vector<8x10xf32>, vector<8x10xf32>, vector<8x10xf32>, vector<8x10xf32>, vector<8x10xf32>, vector<8x10xf32>, vector<8x10xf32> -> vector<64x10xf32>
    %c2_116 = arith.constant 2 : index
    %c0_117 = arith.constant 0 : index
    %c0_118 = arith.constant 0 : index
    %283 = vector.load %arg4[%c2_116, %c0_117, %c0_118] : memref<25x10x20xf32, #tpu.memory_space<vmem>>, vector<1x10x20xf32>
    %284 = vector.shape_cast %283 : vector<1x10x20xf32> to vector<10x20xf32>
    %cst_119 = arith.constant dense<0.000000e+00> : vector<64x20xf32>
    %285 = tpu.matmul %282, %284, %cst_119 {dimension_numbers = #tpu.dot_dimension_numbers<[1], [0], [0], [1], [0, 0, 1, 1], [], []>} : vector<64x10xf32>, vector<10x20xf32>, vector<64x20xf32> -> vector<64x20xf32>
    %286 = arith.addf %265, %285 : vector<64x20xf32>
    %287 = vector.extract_strided_slice %222 {offsets = [0, 3, 0], sizes = [1, 8, 10], strides = [1, 1, 1]} : vector<12x12x10xf32> to vector<1x8x10xf32>
    %288 = vector.shape_cast %287 : vector<1x8x10xf32> to vector<8x10xf32>
    %289 = vector.extract_strided_slice %222 {offsets = [1, 3, 0], sizes = [1, 8, 10], strides = [1, 1, 1]} : vector<12x12x10xf32> to vector<1x8x10xf32>
    %290 = vector.shape_cast %289 : vector<1x8x10xf32> to vector<8x10xf32>
    %291 = vector.extract_strided_slice %222 {offsets = [2, 3, 0], sizes = [1, 8, 10], strides = [1, 1, 1]} : vector<12x12x10xf32> to vector<1x8x10xf32>
    %292 = vector.shape_cast %291 : vector<1x8x10xf32> to vector<8x10xf32>
    %293 = vector.extract_strided_slice %222 {offsets = [3, 3, 0], sizes = [1, 8, 10], strides = [1, 1, 1]} : vector<12x12x10xf32> to vector<1x8x10xf32>
    %294 = vector.shape_cast %293 : vector<1x8x10xf32> to vector<8x10xf32>
    %295 = vector.extract_strided_slice %222 {offsets = [4, 3, 0], sizes = [1, 8, 10], strides = [1, 1, 1]} : vector<12x12x10xf32> to vector<1x8x10xf32>
    %296 = vector.shape_cast %295 : vector<1x8x10xf32> to vector<8x10xf32>
    %297 = vector.extract_strided_slice %222 {offsets = [5, 3, 0], sizes = [1, 8, 10], strides = [1, 1, 1]} : vector<12x12x10xf32> to vector<1x8x10xf32>
    %298 = vector.shape_cast %297 : vector<1x8x10xf32> to vector<8x10xf32>
    %299 = vector.extract_strided_slice %222 {offsets = [6, 3, 0], sizes = [1, 8, 10], strides = [1, 1, 1]} : vector<12x12x10xf32> to vector<1x8x10xf32>
    %300 = vector.shape_cast %299 : vector<1x8x10xf32> to vector<8x10xf32>
    %301 = vector.extract_strided_slice %222 {offsets = [7, 3, 0], sizes = [1, 8, 10], strides = [1, 1, 1]} : vector<12x12x10xf32> to vector<1x8x10xf32>
    %302 = vector.shape_cast %301 : vector<1x8x10xf32> to vector<8x10xf32>
    %303 = tpu.concatenate %288, %290, %292, %294, %296, %298, %300, %302 in 0 : vector<8x10xf32>, vector<8x10xf32>, vector<8x10xf32>, vector<8x10xf32>, vector<8x10xf32>, vector<8x10xf32>, vector<8x10xf32>, vector<8x10xf32> -> vector<64x10xf32>
    %c3_120 = arith.constant 3 : index
    %c0_121 = arith.constant 0 : index
    %c0_122 = arith.constant 0 : index
    %304 = vector.load %arg4[%c3_120, %c0_121, %c0_122] : memref<25x10x20xf32, #tpu.memory_space<vmem>>, vector<1x10x20xf32>
    %305 = vector.shape_cast %304 : vector<1x10x20xf32> to vector<10x20xf32>
    %cst_123 = arith.constant dense<0.000000e+00> : vector<64x20xf32>
    %306 = tpu.matmul %303, %305, %cst_123 {dimension_numbers = #tpu.dot_dimension_numbers<[1], [0], [0], [1], [0, 0, 1, 1], [], []>} : vector<64x10xf32>, vector<10x20xf32>, vector<64x20xf32> -> vector<64x20xf32>
    %307 = arith.addf %286, %306 : vector<64x20xf32>
    %308 = vector.extract_strided_slice %222 {offsets = [0, 4, 0], sizes = [1, 8, 10], strides = [1, 1, 1]} : vector<12x12x10xf32> to vector<1x8x10xf32>
    %309 = vector.shape_cast %308 : vector<1x8x10xf32> to vector<8x10xf32>
    %310 = vector.extract_strided_slice %222 {offsets = [1, 4, 0], sizes = [1, 8, 10], strides = [1, 1, 1]} : vector<12x12x10xf32> to vector<1x8x10xf32>
    %311 = vector.shape_cast %310 : vector<1x8x10xf32> to vector<8x10xf32>
    %312 = vector.extract_strided_slice %222 {offsets = [2, 4, 0], sizes = [1, 8, 10], strides = [1, 1, 1]} : vector<12x12x10xf32> to vector<1x8x10xf32>
    %313 = vector.shape_cast %312 : vector<1x8x10xf32> to vector<8x10xf32>
    %314 = vector.extract_strided_slice %222 {offsets = [3, 4, 0], sizes = [1, 8, 10], strides = [1, 1, 1]} : vector<12x12x10xf32> to vector<1x8x10xf32>
    %315 = vector.shape_cast %314 : vector<1x8x10xf32> to vector<8x10xf32>
    %316 = vector.extract_strided_slice %222 {offsets = [4, 4, 0], sizes = [1, 8, 10], strides = [1, 1, 1]} : vector<12x12x10xf32> to vector<1x8x10xf32>
    %317 = vector.shape_cast %316 : vector<1x8x10xf32> to vector<8x10xf32>
    %318 = vector.extract_strided_slice %222 {offsets = [5, 4, 0], sizes = [1, 8, 10], strides = [1, 1, 1]} : vector<12x12x10xf32> to vector<1x8x10xf32>
    %319 = vector.shape_cast %318 : vector<1x8x10xf32> to vector<8x10xf32>
    %320 = vector.extract_strided_slice %222 {offsets = [6, 4, 0], sizes = [1, 8, 10], strides = [1, 1, 1]} : vector<12x12x10xf32> to vector<1x8x10xf32>
    %321 = vector.shape_cast %320 : vector<1x8x10xf32> to vector<8x10xf32>
    %322 = vector.extract_strided_slice %222 {offsets = [7, 4, 0], sizes = [1, 8, 10], strides = [1, 1, 1]} : vector<12x12x10xf32> to vector<1x8x10xf32>
    %323 = vector.shape_cast %322 : vector<1x8x10xf32> to vector<8x10xf32>
    %324 = tpu.concatenate %309, %311, %313, %315, %317, %319, %321, %323 in 0 : vector<8x10xf32>, vector<8x10xf32>, vector<8x10xf32>, vector<8x10xf32>, vector<8x10xf32>, vector<8x10xf32>, vector<8x10xf32>, vector<8x10xf32> -> vector<64x10xf32>
    %c4_124 = arith.constant 4 : index
    %c0_125 = arith.constant 0 : index
    %c0_126 = arith.constant 0 : index
    %325 = vector.load %arg4[%c4_124, %c0_125, %c0_126] : memref<25x10x20xf32, #tpu.memory_space<vmem>>, vector<1x10x20xf32>
    %326 = vector.shape_cast %325 : vector<1x10x20xf32> to vector<10x20xf32>
    %cst_127 = arith.constant dense<0.000000e+00> : vector<64x20xf32>
    %327 = tpu.matmul %324, %326, %cst_127 {dimension_numbers = #tpu.dot_dimension_numbers<[1], [0], [0], [1], [0, 0, 1, 1], [], []>} : vector<64x10xf32>, vector<10x20xf32>, vector<64x20xf32> -> vector<64x20xf32>
    %328 = arith.addf %307, %327 : vector<64x20xf32>
    %329 = vector.extract_strided_slice %222 {offsets = [1, 0, 0], sizes = [1, 8, 10], strides = [1, 1, 1]} : vector<12x12x10xf32> to vector<1x8x10xf32>
    %330 = vector.shape_cast %329 : vector<1x8x10xf32> to vector<8x10xf32>
    %331 = vector.extract_strided_slice %222 {offsets = [2, 0, 0], sizes = [1, 8, 10], strides = [1, 1, 1]} : vector<12x12x10xf32> to vector<1x8x10xf32>
    %332 = vector.shape_cast %331 : vector<1x8x10xf32> to vector<8x10xf32>
    %333 = vector.extract_strided_slice %222 {offsets = [3, 0, 0], sizes = [1, 8, 10], strides = [1, 1, 1]} : vector<12x12x10xf32> to vector<1x8x10xf32>
    %334 = vector.shape_cast %333 : vector<1x8x10xf32> to vector<8x10xf32>
    %335 = vector.extract_strided_slice %222 {offsets = [4, 0, 0], sizes = [1, 8, 10], strides = [1, 1, 1]} : vector<12x12x10xf32> to vector<1x8x10xf32>
    %336 = vector.shape_cast %335 : vector<1x8x10xf32> to vector<8x10xf32>
    %337 = vector.extract_strided_slice %222 {offsets = [5, 0, 0], sizes = [1, 8, 10], strides = [1, 1, 1]} : vector<12x12x10xf32> to vector<1x8x10xf32>
    %338 = vector.shape_cast %337 : vector<1x8x10xf32> to vector<8x10xf32>
    %339 = vector.extract_strided_slice %222 {offsets = [6, 0, 0], sizes = [1, 8, 10], strides = [1, 1, 1]} : vector<12x12x10xf32> to vector<1x8x10xf32>
    %340 = vector.shape_cast %339 : vector<1x8x10xf32> to vector<8x10xf32>
    %341 = vector.extract_strided_slice %222 {offsets = [7, 0, 0], sizes = [1, 8, 10], strides = [1, 1, 1]} : vector<12x12x10xf32> to vector<1x8x10xf32>
    %342 = vector.shape_cast %341 : vector<1x8x10xf32> to vector<8x10xf32>
    %343 = vector.extract_strided_slice %222 {offsets = [8, 0, 0], sizes = [1, 8, 10], strides = [1, 1, 1]} : vector<12x12x10xf32> to vector<1x8x10xf32>
    %344 = vector.shape_cast %343 : vector<1x8x10xf32> to vector<8x10xf32>
    %345 = tpu.concatenate %330, %332, %334, %336, %338, %340, %342, %344 in 0 : vector<8x10xf32>, vector<8x10xf32>, vector<8x10xf32>, vector<8x10xf32>, vector<8x10xf32>, vector<8x10xf32>, vector<8x10xf32>, vector<8x10xf32> -> vector<64x10xf32>
    %c5_128 = arith.constant 5 : index
    %c0_129 = arith.constant 0 : index
    %c0_130 = arith.constant 0 : index
    %346 = vector.load %arg4[%c5_128, %c0_129, %c0_130] : memref<25x10x20xf32, #tpu.memory_space<vmem>>, vector<1x10x20xf32>
    %347 = vector.shape_cast %346 : vector<1x10x20xf32> to vector<10x20xf32>
    %cst_131 = arith.constant dense<0.000000e+00> : vector<64x20xf32>
    %348 = tpu.matmul %345, %347, %cst_131 {dimension_numbers = #tpu.dot_dimension_numbers<[1], [0], [0], [1], [0, 0, 1, 1], [], []>} : vector<64x10xf32>, vector<10x20xf32>, vector<64x20xf32> -> vector<64x20xf32>
    %349 = arith.addf %328, %348 : vector<64x20xf32>
    %350 = vector.extract_strided_slice %222 {offsets = [1, 1, 0], sizes = [1, 8, 10], strides = [1, 1, 1]} : vector<12x12x10xf32> to vector<1x8x10xf32>
    %351 = vector.shape_cast %350 : vector<1x8x10xf32> to vector<8x10xf32>
    %352 = vector.extract_strided_slice %222 {offsets = [2, 1, 0], sizes = [1, 8, 10], strides = [1, 1, 1]} : vector<12x12x10xf32> to vector<1x8x10xf32>
    %353 = vector.shape_cast %352 : vector<1x8x10xf32> to vector<8x10xf32>
    %354 = vector.extract_strided_slice %222 {offsets = [3, 1, 0], sizes = [1, 8, 10], strides = [1, 1, 1]} : vector<12x12x10xf32> to vector<1x8x10xf32>
    %355 = vector.shape_cast %354 : vector<1x8x10xf32> to vector<8x10xf32>
    %356 = vector.extract_strided_slice %222 {offsets = [4, 1, 0], sizes = [1, 8, 10], strides = [1, 1, 1]} : vector<12x12x10xf32> to vector<1x8x10xf32>
    %357 = vector.shape_cast %356 : vector<1x8x10xf32> to vector<8x10xf32>
    %358 = vector.extract_strided_slice %222 {offsets = [5, 1, 0], sizes = [1, 8, 10], strides = [1, 1, 1]} : vector<12x12x10xf32> to vector<1x8x10xf32>
    %359 = vector.shape_cast %358 : vector<1x8x10xf32> to vector<8x10xf32>
    %360 = vector.extract_strided_slice %222 {offsets = [6, 1, 0], sizes = [1, 8, 10], strides = [1, 1, 1]} : vector<12x12x10xf32> to vector<1x8x10xf32>
    %361 = vector.shape_cast %360 : vector<1x8x10xf32> to vector<8x10xf32>
    %362 = vector.extract_strided_slice %222 {offsets = [7, 1, 0], sizes = [1, 8, 10], strides = [1, 1, 1]} : vector<12x12x10xf32> to vector<1x8x10xf32>
    %363 = vector.shape_cast %362 : vector<1x8x10xf32> to vector<8x10xf32>
    %364 = vector.extract_strided_slice %222 {offsets = [8, 1, 0], sizes = [1, 8, 10], strides = [1, 1, 1]} : vector<12x12x10xf32> to vector<1x8x10xf32>
    %365 = vector.shape_cast %364 : vector<1x8x10xf32> to vector<8x10xf32>
    %366 = tpu.concatenate %351, %353, %355, %357, %359, %361, %363, %365 in 0 : vector<8x10xf32>, vector<8x10xf32>, vector<8x10xf32>, vector<8x10xf32>, vector<8x10xf32>, vector<8x10xf32>, vector<8x10xf32>, vector<8x10xf32> -> vector<64x10xf32>
    %c6_132 = arith.constant 6 : index
    %c0_133 = arith.constant 0 : index
    %c0_134 = arith.constant 0 : index
    %367 = vector.load %arg4[%c6_132, %c0_133, %c0_134] : memref<25x10x20xf32, #tpu.memory_space<vmem>>, vector<1x10x20xf32>
    %368 = vector.shape_cast %367 : vector<1x10x20xf32> to vector<10x20xf32>
    %cst_135 = arith.constant dense<0.000000e+00> : vector<64x20xf32>
    %369 = tpu.matmul %366, %368, %cst_135 {dimension_numbers = #tpu.dot_dimension_numbers<[1], [0], [0], [1], [0, 0, 1, 1], [], []>} : vector<64x10xf32>, vector<10x20xf32>, vector<64x20xf32> -> vector<64x20xf32>
    %370 = arith.addf %349, %369 : vector<64x20xf32>
    %371 = vector.extract_strided_slice %222 {offsets = [1, 2, 0], sizes = [1, 8, 10], strides = [1, 1, 1]} : vector<12x12x10xf32> to vector<1x8x10xf32>
    %372 = vector.shape_cast %371 : vector<1x8x10xf32> to vector<8x10xf32>
    %373 = vector.extract_strided_slice %222 {offsets = [2, 2, 0], sizes = [1, 8, 10], strides = [1, 1, 1]} : vector<12x12x10xf32> to vector<1x8x10xf32>
    %374 = vector.shape_cast %373 : vector<1x8x10xf32> to vector<8x10xf32>
    %375 = vector.extract_strided_slice %222 {offsets = [3, 2, 0], sizes = [1, 8, 10], strides = [1, 1, 1]} : vector<12x12x10xf32> to vector<1x8x10xf32>
    %376 = vector.shape_cast %375 : vector<1x8x10xf32> to vector<8x10xf32>
    %377 = vector.extract_strided_slice %222 {offsets = [4, 2, 0], sizes = [1, 8, 10], strides = [1, 1, 1]} : vector<12x12x10xf32> to vector<1x8x10xf32>
    %378 = vector.shape_cast %377 : vector<1x8x10xf32> to vector<8x10xf32>
    %379 = vector.extract_strided_slice %222 {offsets = [5, 2, 0], sizes = [1, 8, 10], strides = [1, 1, 1]} : vector<12x12x10xf32> to vector<1x8x10xf32>
    %380 = vector.shape_cast %379 : vector<1x8x10xf32> to vector<8x10xf32>
    %381 = vector.extract_strided_slice %222 {offsets = [6, 2, 0], sizes = [1, 8, 10], strides = [1, 1, 1]} : vector<12x12x10xf32> to vector<1x8x10xf32>
    %382 = vector.shape_cast %381 : vector<1x8x10xf32> to vector<8x10xf32>
    %383 = vector.extract_strided_slice %222 {offsets = [7, 2, 0], sizes = [1, 8, 10], strides = [1, 1, 1]} : vector<12x12x10xf32> to vector<1x8x10xf32>
    %384 = vector.shape_cast %383 : vector<1x8x10xf32> to vector<8x10xf32>
    %385 = vector.extract_strided_slice %222 {offsets = [8, 2, 0], sizes = [1, 8, 10], strides = [1, 1, 1]} : vector<12x12x10xf32> to vector<1x8x10xf32>
    %386 = vector.shape_cast %385 : vector<1x8x10xf32> to vector<8x10xf32>
    %387 = tpu.concatenate %372, %374, %376, %378, %380, %382, %384, %386 in 0 : vector<8x10xf32>, vector<8x10xf32>, vector<8x10xf32>, vector<8x10xf32>, vector<8x10xf32>, vector<8x10xf32>, vector<8x10xf32>, vector<8x10xf32> -> vector<64x10xf32>
    %c7_136 = arith.constant 7 : index
    %c0_137 = arith.constant 0 : index
    %c0_138 = arith.constant 0 : index
    %388 = vector.load %arg4[%c7_136, %c0_137, %c0_138] : memref<25x10x20xf32, #tpu.memory_space<vmem>>, vector<1x10x20xf32>
    %389 = vector.shape_cast %388 : vector<1x10x20xf32> to vector<10x20xf32>
    %cst_139 = arith.constant dense<0.000000e+00> : vector<64x20xf32>
    %390 = tpu.matmul %387, %389, %cst_139 {dimension_numbers = #tpu.dot_dimension_numbers<[1], [0], [0], [1], [0, 0, 1, 1], [], []>} : vector<64x10xf32>, vector<10x20xf32>, vector<64x20xf32> -> vector<64x20xf32>
    %391 = arith.addf %370, %390 : vector<64x20xf32>
    %392 = vector.extract_strided_slice %222 {offsets = [1, 3, 0], sizes = [1, 8, 10], strides = [1, 1, 1]} : vector<12x12x10xf32> to vector<1x8x10xf32>
    %393 = vector.shape_cast %392 : vector<1x8x10xf32> to vector<8x10xf32>
    %394 = vector.extract_strided_slice %222 {offsets = [2, 3, 0], sizes = [1, 8, 10], strides = [1, 1, 1]} : vector<12x12x10xf32> to vector<1x8x10xf32>
    %395 = vector.shape_cast %394 : vector<1x8x10xf32> to vector<8x10xf32>
    %396 = vector.extract_strided_slice %222 {offsets = [3, 3, 0], sizes = [1, 8, 10], strides = [1, 1, 1]} : vector<12x12x10xf32> to vector<1x8x10xf32>
    %397 = vector.shape_cast %396 : vector<1x8x10xf32> to vector<8x10xf32>
    %398 = vector.extract_strided_slice %222 {offsets = [4, 3, 0], sizes = [1, 8, 10], strides = [1, 1, 1]} : vector<12x12x10xf32> to vector<1x8x10xf32>
    %399 = vector.shape_cast %398 : vector<1x8x10xf32> to vector<8x10xf32>
    %400 = vector.extract_strided_slice %222 {offsets = [5, 3, 0], sizes = [1, 8, 10], strides = [1, 1, 1]} : vector<12x12x10xf32> to vector<1x8x10xf32>
    %401 = vector.shape_cast %400 : vector<1x8x10xf32> to vector<8x10xf32>
    %402 = vector.extract_strided_slice %222 {offsets = [6, 3, 0], sizes = [1, 8, 10], strides = [1, 1, 1]} : vector<12x12x10xf32> to vector<1x8x10xf32>
    %403 = vector.shape_cast %402 : vector<1x8x10xf32> to vector<8x10xf32>
    %404 = vector.extract_strided_slice %222 {offsets = [7, 3, 0], sizes = [1, 8, 10], strides = [1, 1, 1]} : vector<12x12x10xf32> to vector<1x8x10xf32>
    %405 = vector.shape_cast %404 : vector<1x8x10xf32> to vector<8x10xf32>
    %406 = vector.extract_strided_slice %222 {offsets = [8, 3, 0], sizes = [1, 8, 10], strides = [1, 1, 1]} : vector<12x12x10xf32> to vector<1x8x10xf32>
    %407 = vector.shape_cast %406 : vector<1x8x10xf32> to vector<8x10xf32>
    %408 = tpu.concatenate %393, %395, %397, %399, %401, %403, %405, %407 in 0 : vector<8x10xf32>, vector<8x10xf32>, vector<8x10xf32>, vector<8x10xf32>, vector<8x10xf32>, vector<8x10xf32>, vector<8x10xf32>, vector<8x10xf32> -> vector<64x10xf32>
    %c8_140 = arith.constant 8 : index
    %c0_141 = arith.constant 0 : index
    %c0_142 = arith.constant 0 : index
    %409 = vector.load %arg4[%c8_140, %c0_141, %c0_142] : memref<25x10x20xf32, #tpu.memory_space<vmem>>, vector<1x10x20xf32>
    %410 = vector.shape_cast %409 : vector<1x10x20xf32> to vector<10x20xf32>
    %cst_143 = arith.constant dense<0.000000e+00> : vector<64x20xf32>
    %411 = tpu.matmul %408, %410, %cst_143 {dimension_numbers = #tpu.dot_dimension_numbers<[1], [0], [0], [1], [0, 0, 1, 1], [], []>} : vector<64x10xf32>, vector<10x20xf32>, vector<64x20xf32> -> vector<64x20xf32>
    %412 = arith.addf %391, %411 : vector<64x20xf32>
    %413 = vector.extract_strided_slice %222 {offsets = [1, 4, 0], sizes = [1, 8, 10], strides = [1, 1, 1]} : vector<12x12x10xf32> to vector<1x8x10xf32>
    %414 = vector.shape_cast %413 : vector<1x8x10xf32> to vector<8x10xf32>
    %415 = vector.extract_strided_slice %222 {offsets = [2, 4, 0], sizes = [1, 8, 10], strides = [1, 1, 1]} : vector<12x12x10xf32> to vector<1x8x10xf32>
    %416 = vector.shape_cast %415 : vector<1x8x10xf32> to vector<8x10xf32>
    %417 = vector.extract_strided_slice %222 {offsets = [3, 4, 0], sizes = [1, 8, 10], strides = [1, 1, 1]} : vector<12x12x10xf32> to vector<1x8x10xf32>
    %418 = vector.shape_cast %417 : vector<1x8x10xf32> to vector<8x10xf32>
    %419 = vector.extract_strided_slice %222 {offsets = [4, 4, 0], sizes = [1, 8, 10], strides = [1, 1, 1]} : vector<12x12x10xf32> to vector<1x8x10xf32>
    %420 = vector.shape_cast %419 : vector<1x8x10xf32> to vector<8x10xf32>
    %421 = vector.extract_strided_slice %222 {offsets = [5, 4, 0], sizes = [1, 8, 10], strides = [1, 1, 1]} : vector<12x12x10xf32> to vector<1x8x10xf32>
    %422 = vector.shape_cast %421 : vector<1x8x10xf32> to vector<8x10xf32>
    %423 = vector.extract_strided_slice %222 {offsets = [6, 4, 0], sizes = [1, 8, 10], strides = [1, 1, 1]} : vector<12x12x10xf32> to vector<1x8x10xf32>
    %424 = vector.shape_cast %423 : vector<1x8x10xf32> to vector<8x10xf32>
    %425 = vector.extract_strided_slice %222 {offsets = [7, 4, 0], sizes = [1, 8, 10], strides = [1, 1, 1]} : vector<12x12x10xf32> to vector<1x8x10xf32>
    %426 = vector.shape_cast %425 : vector<1x8x10xf32> to vector<8x10xf32>
    %427 = vector.extract_strided_slice %222 {offsets = [8, 4, 0], sizes = [1, 8, 10], strides = [1, 1, 1]} : vector<12x12x10xf32> to vector<1x8x10xf32>
    %428 = vector.shape_cast %427 : vector<1x8x10xf32> to vector<8x10xf32>
    %429 = tpu.concatenate %414, %416, %418, %420, %422, %424, %426, %428 in 0 : vector<8x10xf32>, vector<8x10xf32>, vector<8x10xf32>, vector<8x10xf32>, vector<8x10xf32>, vector<8x10xf32>, vector<8x10xf32>, vector<8x10xf32> -> vector<64x10xf32>
    %c9_144 = arith.constant 9 : index
    %c0_145 = arith.constant 0 : index
    %c0_146 = arith.constant 0 : index
    %430 = vector.load %arg4[%c9_144, %c0_145, %c0_146] : memref<25x10x20xf32, #tpu.memory_space<vmem>>, vector<1x10x20xf32>
    %431 = vector.shape_cast %430 : vector<1x10x20xf32> to vector<10x20xf32>
    %cst_147 = arith.constant dense<0.000000e+00> : vector<64x20xf32>
    %432 = tpu.matmul %429, %431, %cst_147 {dimension_numbers = #tpu.dot_dimension_numbers<[1], [0], [0], [1], [0, 0, 1, 1], [], []>} : vector<64x10xf32>, vector<10x20xf32>, vector<64x20xf32> -> vector<64x20xf32>
    %433 = arith.addf %412, %432 : vector<64x20xf32>
    %434 = vector.extract_strided_slice %222 {offsets = [2, 0, 0], sizes = [1, 8, 10], strides = [1, 1, 1]} : vector<12x12x10xf32> to vector<1x8x10xf32>
    %435 = vector.shape_cast %434 : vector<1x8x10xf32> to vector<8x10xf32>
    %436 = vector.extract_strided_slice %222 {offsets = [3, 0, 0], sizes = [1, 8, 10], strides = [1, 1, 1]} : vector<12x12x10xf32> to vector<1x8x10xf32>
    %437 = vector.shape_cast %436 : vector<1x8x10xf32> to vector<8x10xf32>
    %438 = vector.extract_strided_slice %222 {offsets = [4, 0, 0], sizes = [1, 8, 10], strides = [1, 1, 1]} : vector<12x12x10xf32> to vector<1x8x10xf32>
    %439 = vector.shape_cast %438 : vector<1x8x10xf32> to vector<8x10xf32>
    %440 = vector.extract_strided_slice %222 {offsets = [5, 0, 0], sizes = [1, 8, 10], strides = [1, 1, 1]} : vector<12x12x10xf32> to vector<1x8x10xf32>
    %441 = vector.shape_cast %440 : vector<1x8x10xf32> to vector<8x10xf32>
    %442 = vector.extract_strided_slice %222 {offsets = [6, 0, 0], sizes = [1, 8, 10], strides = [1, 1, 1]} : vector<12x12x10xf32> to vector<1x8x10xf32>
    %443 = vector.shape_cast %442 : vector<1x8x10xf32> to vector<8x10xf32>
    %444 = vector.extract_strided_slice %222 {offsets = [7, 0, 0], sizes = [1, 8, 10], strides = [1, 1, 1]} : vector<12x12x10xf32> to vector<1x8x10xf32>
    %445 = vector.shape_cast %444 : vector<1x8x10xf32> to vector<8x10xf32>
    %446 = vector.extract_strided_slice %222 {offsets = [8, 0, 0], sizes = [1, 8, 10], strides = [1, 1, 1]} : vector<12x12x10xf32> to vector<1x8x10xf32>
    %447 = vector.shape_cast %446 : vector<1x8x10xf32> to vector<8x10xf32>
    %448 = vector.extract_strided_slice %222 {offsets = [9, 0, 0], sizes = [1, 8, 10], strides = [1, 1, 1]} : vector<12x12x10xf32> to vector<1x8x10xf32>
    %449 = vector.shape_cast %448 : vector<1x8x10xf32> to vector<8x10xf32>
    %450 = tpu.concatenate %435, %437, %439, %441, %443, %445, %447, %449 in 0 : vector<8x10xf32>, vector<8x10xf32>, vector<8x10xf32>, vector<8x10xf32>, vector<8x10xf32>, vector<8x10xf32>, vector<8x10xf32>, vector<8x10xf32> -> vector<64x10xf32>
    %c10_148 = arith.constant 10 : index
    %c0_149 = arith.constant 0 : index
    %c0_150 = arith.constant 0 : index
    %451 = vector.load %arg4[%c10_148, %c0_149, %c0_150] : memref<25x10x20xf32, #tpu.memory_space<vmem>>, vector<1x10x20xf32>
    %452 = vector.shape_cast %451 : vector<1x10x20xf32> to vector<10x20xf32>
    %cst_151 = arith.constant dense<0.000000e+00> : vector<64x20xf32>
    %453 = tpu.matmul %450, %452, %cst_151 {dimension_numbers = #tpu.dot_dimension_numbers<[1], [0], [0], [1], [0, 0, 1, 1], [], []>} : vector<64x10xf32>, vector<10x20xf32>, vector<64x20xf32> -> vector<64x20xf32>
    %454 = arith.addf %433, %453 : vector<64x20xf32>
    %455 = vector.extract_strided_slice %222 {offsets = [2, 1, 0], sizes = [1, 8, 10], strides = [1, 1, 1]} : vector<12x12x10xf32> to vector<1x8x10xf32>
    %456 = vector.shape_cast %455 : vector<1x8x10xf32> to vector<8x10xf32>
    %457 = vector.extract_strided_slice %222 {offsets = [3, 1, 0], sizes = [1, 8, 10], strides = [1, 1, 1]} : vector<12x12x10xf32> to vector<1x8x10xf32>
    %458 = vector.shape_cast %457 : vector<1x8x10xf32> to vector<8x10xf32>
    %459 = vector.extract_strided_slice %222 {offsets = [4, 1, 0], sizes = [1, 8, 10], strides = [1, 1, 1]} : vector<12x12x10xf32> to vector<1x8x10xf32>
    %460 = vector.shape_cast %459 : vector<1x8x10xf32> to vector<8x10xf32>
    %461 = vector.extract_strided_slice %222 {offsets = [5, 1, 0], sizes = [1, 8, 10], strides = [1, 1, 1]} : vector<12x12x10xf32> to vector<1x8x10xf32>
    %462 = vector.shape_cast %461 : vector<1x8x10xf32> to vector<8x10xf32>
    %463 = vector.extract_strided_slice %222 {offsets = [6, 1, 0], sizes = [1, 8, 10], strides = [1, 1, 1]} : vector<12x12x10xf32> to vector<1x8x10xf32>
    %464 = vector.shape_cast %463 : vector<1x8x10xf32> to vector<8x10xf32>
    %465 = vector.extract_strided_slice %222 {offsets = [7, 1, 0], sizes = [1, 8, 10], strides = [1, 1, 1]} : vector<12x12x10xf32> to vector<1x8x10xf32>
    %466 = vector.shape_cast %465 : vector<1x8x10xf32> to vector<8x10xf32>
    %467 = vector.extract_strided_slice %222 {offsets = [8, 1, 0], sizes = [1, 8, 10], strides = [1, 1, 1]} : vector<12x12x10xf32> to vector<1x8x10xf32>
    %468 = vector.shape_cast %467 : vector<1x8x10xf32> to vector<8x10xf32>
    %469 = vector.extract_strided_slice %222 {offsets = [9, 1, 0], sizes = [1, 8, 10], strides = [1, 1, 1]} : vector<12x12x10xf32> to vector<1x8x10xf32>
    %470 = vector.shape_cast %469 : vector<1x8x10xf32> to vector<8x10xf32>
    %471 = tpu.concatenate %456, %458, %460, %462, %464, %466, %468, %470 in 0 : vector<8x10xf32>, vector<8x10xf32>, vector<8x10xf32>, vector<8x10xf32>, vector<8x10xf32>, vector<8x10xf32>, vector<8x10xf32>, vector<8x10xf32> -> vector<64x10xf32>
    %c11_152 = arith.constant 11 : index
    %c0_153 = arith.constant 0 : index
    %c0_154 = arith.constant 0 : index
    %472 = vector.load %arg4[%c11_152, %c0_153, %c0_154] : memref<25x10x20xf32, #tpu.memory_space<vmem>>, vector<1x10x20xf32>
    %473 = vector.shape_cast %472 : vector<1x10x20xf32> to vector<10x20xf32>
    %cst_155 = arith.constant dense<0.000000e+00> : vector<64x20xf32>
    %474 = tpu.matmul %471, %473, %cst_155 {dimension_numbers = #tpu.dot_dimension_numbers<[1], [0], [0], [1], [0, 0, 1, 1], [], []>} : vector<64x10xf32>, vector<10x20xf32>, vector<64x20xf32> -> vector<64x20xf32>
    %475 = arith.addf %454, %474 : vector<64x20xf32>
    %476 = vector.extract_strided_slice %222 {offsets = [2, 2, 0], sizes = [1, 8, 10], strides = [1, 1, 1]} : vector<12x12x10xf32> to vector<1x8x10xf32>
    %477 = vector.shape_cast %476 : vector<1x8x10xf32> to vector<8x10xf32>
    %478 = vector.extract_strided_slice %222 {offsets = [3, 2, 0], sizes = [1, 8, 10], strides = [1, 1, 1]} : vector<12x12x10xf32> to vector<1x8x10xf32>
    %479 = vector.shape_cast %478 : vector<1x8x10xf32> to vector<8x10xf32>
    %480 = vector.extract_strided_slice %222 {offsets = [4, 2, 0], sizes = [1, 8, 10], strides = [1, 1, 1]} : vector<12x12x10xf32> to vector<1x8x10xf32>
    %481 = vector.shape_cast %480 : vector<1x8x10xf32> to vector<8x10xf32>
    %482 = vector.extract_strided_slice %222 {offsets = [5, 2, 0], sizes = [1, 8, 10], strides = [1, 1, 1]} : vector<12x12x10xf32> to vector<1x8x10xf32>
    %483 = vector.shape_cast %482 : vector<1x8x10xf32> to vector<8x10xf32>
    %484 = vector.extract_strided_slice %222 {offsets = [6, 2, 0], sizes = [1, 8, 10], strides = [1, 1, 1]} : vector<12x12x10xf32> to vector<1x8x10xf32>
    %485 = vector.shape_cast %484 : vector<1x8x10xf32> to vector<8x10xf32>
    %486 = vector.extract_strided_slice %222 {offsets = [7, 2, 0], sizes = [1, 8, 10], strides = [1, 1, 1]} : vector<12x12x10xf32> to vector<1x8x10xf32>
    %487 = vector.shape_cast %486 : vector<1x8x10xf32> to vector<8x10xf32>
    %488 = vector.extract_strided_slice %222 {offsets = [8, 2, 0], sizes = [1, 8, 10], strides = [1, 1, 1]} : vector<12x12x10xf32> to vector<1x8x10xf32>
    %489 = vector.shape_cast %488 : vector<1x8x10xf32> to vector<8x10xf32>
    %490 = vector.extract_strided_slice %222 {offsets = [9, 2, 0], sizes = [1, 8, 10], strides = [1, 1, 1]} : vector<12x12x10xf32> to vector<1x8x10xf32>
    %491 = vector.shape_cast %490 : vector<1x8x10xf32> to vector<8x10xf32>
    %492 = tpu.concatenate %477, %479, %481, %483, %485, %487, %489, %491 in 0 : vector<8x10xf32>, vector<8x10xf32>, vector<8x10xf32>, vector<8x10xf32>, vector<8x10xf32>, vector<8x10xf32>, vector<8x10xf32>, vector<8x10xf32> -> vector<64x10xf32>
    %c12 = arith.constant 12 : index
    %c0_156 = arith.constant 0 : index
    %c0_157 = arith.constant 0 : index
    %493 = vector.load %arg4[%c12, %c0_156, %c0_157] : memref<25x10x20xf32, #tpu.memory_space<vmem>>, vector<1x10x20xf32>
    %494 = vector.shape_cast %493 : vector<1x10x20xf32> to vector<10x20xf32>
    %cst_158 = arith.constant dense<0.000000e+00> : vector<64x20xf32>
    %495 = tpu.matmul %492, %494, %cst_158 {dimension_numbers = #tpu.dot_dimension_numbers<[1], [0], [0], [1], [0, 0, 1, 1], [], []>} : vector<64x10xf32>, vector<10x20xf32>, vector<64x20xf32> -> vector<64x20xf32>
    %496 = arith.addf %475, %495 : vector<64x20xf32>
    %497 = vector.extract_strided_slice %222 {offsets = [2, 3, 0], sizes = [1, 8, 10], strides = [1, 1, 1]} : vector<12x12x10xf32> to vector<1x8x10xf32>
    %498 = vector.shape_cast %497 : vector<1x8x10xf32> to vector<8x10xf32>
    %499 = vector.extract_strided_slice %222 {offsets = [3, 3, 0], sizes = [1, 8, 10], strides = [1, 1, 1]} : vector<12x12x10xf32> to vector<1x8x10xf32>
    %500 = vector.shape_cast %499 : vector<1x8x10xf32> to vector<8x10xf32>
    %501 = vector.extract_strided_slice %222 {offsets = [4, 3, 0], sizes = [1, 8, 10], strides = [1, 1, 1]} : vector<12x12x10xf32> to vector<1x8x10xf32>
    %502 = vector.shape_cast %501 : vector<1x8x10xf32> to vector<8x10xf32>
    %503 = vector.extract_strided_slice %222 {offsets = [5, 3, 0], sizes = [1, 8, 10], strides = [1, 1, 1]} : vector<12x12x10xf32> to vector<1x8x10xf32>
    %504 = vector.shape_cast %503 : vector<1x8x10xf32> to vector<8x10xf32>
    %505 = vector.extract_strided_slice %222 {offsets = [6, 3, 0], sizes = [1, 8, 10], strides = [1, 1, 1]} : vector<12x12x10xf32> to vector<1x8x10xf32>
    %506 = vector.shape_cast %505 : vector<1x8x10xf32> to vector<8x10xf32>
    %507 = vector.extract_strided_slice %222 {offsets = [7, 3, 0], sizes = [1, 8, 10], strides = [1, 1, 1]} : vector<12x12x10xf32> to vector<1x8x10xf32>
    %508 = vector.shape_cast %507 : vector<1x8x10xf32> to vector<8x10xf32>
    %509 = vector.extract_strided_slice %222 {offsets = [8, 3, 0], sizes = [1, 8, 10], strides = [1, 1, 1]} : vector<12x12x10xf32> to vector<1x8x10xf32>
    %510 = vector.shape_cast %509 : vector<1x8x10xf32> to vector<8x10xf32>
    %511 = vector.extract_strided_slice %222 {offsets = [9, 3, 0], sizes = [1, 8, 10], strides = [1, 1, 1]} : vector<12x12x10xf32> to vector<1x8x10xf32>
    %512 = vector.shape_cast %511 : vector<1x8x10xf32> to vector<8x10xf32>
    %513 = tpu.concatenate %498, %500, %502, %504, %506, %508, %510, %512 in 0 : vector<8x10xf32>, vector<8x10xf32>, vector<8x10xf32>, vector<8x10xf32>, vector<8x10xf32>, vector<8x10xf32>, vector<8x10xf32>, vector<8x10xf32> -> vector<64x10xf32>
    %c13 = arith.constant 13 : index
    %c0_159 = arith.constant 0 : index
    %c0_160 = arith.constant 0 : index
    %514 = vector.load %arg4[%c13, %c0_159, %c0_160] : memref<25x10x20xf32, #tpu.memory_space<vmem>>, vector<1x10x20xf32>
    %515 = vector.shape_cast %514 : vector<1x10x20xf32> to vector<10x20xf32>
    %cst_161 = arith.constant dense<0.000000e+00> : vector<64x20xf32>
    %516 = tpu.matmul %513, %515, %cst_161 {dimension_numbers = #tpu.dot_dimension_numbers<[1], [0], [0], [1], [0, 0, 1, 1], [], []>} : vector<64x10xf32>, vector<10x20xf32>, vector<64x20xf32> -> vector<64x20xf32>
    %517 = arith.addf %496, %516 : vector<64x20xf32>
    %518 = vector.extract_strided_slice %222 {offsets = [2, 4, 0], sizes = [1, 8, 10], strides = [1, 1, 1]} : vector<12x12x10xf32> to vector<1x8x10xf32>
    %519 = vector.shape_cast %518 : vector<1x8x10xf32> to vector<8x10xf32>
    %520 = vector.extract_strided_slice %222 {offsets = [3, 4, 0], sizes = [1, 8, 10], strides = [1, 1, 1]} : vector<12x12x10xf32> to vector<1x8x10xf32>
    %521 = vector.shape_cast %520 : vector<1x8x10xf32> to vector<8x10xf32>
    %522 = vector.extract_strided_slice %222 {offsets = [4, 4, 0], sizes = [1, 8, 10], strides = [1, 1, 1]} : vector<12x12x10xf32> to vector<1x8x10xf32>
    %523 = vector.shape_cast %522 : vector<1x8x10xf32> to vector<8x10xf32>
    %524 = vector.extract_strided_slice %222 {offsets = [5, 4, 0], sizes = [1, 8, 10], strides = [1, 1, 1]} : vector<12x12x10xf32> to vector<1x8x10xf32>
    %525 = vector.shape_cast %524 : vector<1x8x10xf32> to vector<8x10xf32>
    %526 = vector.extract_strided_slice %222 {offsets = [6, 4, 0], sizes = [1, 8, 10], strides = [1, 1, 1]} : vector<12x12x10xf32> to vector<1x8x10xf32>
    %527 = vector.shape_cast %526 : vector<1x8x10xf32> to vector<8x10xf32>
    %528 = vector.extract_strided_slice %222 {offsets = [7, 4, 0], sizes = [1, 8, 10], strides = [1, 1, 1]} : vector<12x12x10xf32> to vector<1x8x10xf32>
    %529 = vector.shape_cast %528 : vector<1x8x10xf32> to vector<8x10xf32>
    %530 = vector.extract_strided_slice %222 {offsets = [8, 4, 0], sizes = [1, 8, 10], strides = [1, 1, 1]} : vector<12x12x10xf32> to vector<1x8x10xf32>
    %531 = vector.shape_cast %530 : vector<1x8x10xf32> to vector<8x10xf32>
    %532 = vector.extract_strided_slice %222 {offsets = [9, 4, 0], sizes = [1, 8, 10], strides = [1, 1, 1]} : vector<12x12x10xf32> to vector<1x8x10xf32>
    %533 = vector.shape_cast %532 : vector<1x8x10xf32> to vector<8x10xf32>
    %534 = tpu.concatenate %519, %521, %523, %525, %527, %529, %531, %533 in 0 : vector<8x10xf32>, vector<8x10xf32>, vector<8x10xf32>, vector<8x10xf32>, vector<8x10xf32>, vector<8x10xf32>, vector<8x10xf32>, vector<8x10xf32> -> vector<64x10xf32>
    %c14 = arith.constant 14 : index
    %c0_162 = arith.constant 0 : index
    %c0_163 = arith.constant 0 : index
    %535 = vector.load %arg4[%c14, %c0_162, %c0_163] : memref<25x10x20xf32, #tpu.memory_space<vmem>>, vector<1x10x20xf32>
    %536 = vector.shape_cast %535 : vector<1x10x20xf32> to vector<10x20xf32>
    %cst_164 = arith.constant dense<0.000000e+00> : vector<64x20xf32>
    %537 = tpu.matmul %534, %536, %cst_164 {dimension_numbers = #tpu.dot_dimension_numbers<[1], [0], [0], [1], [0, 0, 1, 1], [], []>} : vector<64x10xf32>, vector<10x20xf32>, vector<64x20xf32> -> vector<64x20xf32>
    %538 = arith.addf %517, %537 : vector<64x20xf32>
    %539 = vector.extract_strided_slice %222 {offsets = [3, 0, 0], sizes = [1, 8, 10], strides = [1, 1, 1]} : vector<12x12x10xf32> to vector<1x8x10xf32>
    %540 = vector.shape_cast %539 : vector<1x8x10xf32> to vector<8x10xf32>
    %541 = vector.extract_strided_slice %222 {offsets = [4, 0, 0], sizes = [1, 8, 10], strides = [1, 1, 1]} : vector<12x12x10xf32> to vector<1x8x10xf32>
    %542 = vector.shape_cast %541 : vector<1x8x10xf32> to vector<8x10xf32>
    %543 = vector.extract_strided_slice %222 {offsets = [5, 0, 0], sizes = [1, 8, 10], strides = [1, 1, 1]} : vector<12x12x10xf32> to vector<1x8x10xf32>
    %544 = vector.shape_cast %543 : vector<1x8x10xf32> to vector<8x10xf32>
    %545 = vector.extract_strided_slice %222 {offsets = [6, 0, 0], sizes = [1, 8, 10], strides = [1, 1, 1]} : vector<12x12x10xf32> to vector<1x8x10xf32>
    %546 = vector.shape_cast %545 : vector<1x8x10xf32> to vector<8x10xf32>
    %547 = vector.extract_strided_slice %222 {offsets = [7, 0, 0], sizes = [1, 8, 10], strides = [1, 1, 1]} : vector<12x12x10xf32> to vector<1x8x10xf32>
    %548 = vector.shape_cast %547 : vector<1x8x10xf32> to vector<8x10xf32>
    %549 = vector.extract_strided_slice %222 {offsets = [8, 0, 0], sizes = [1, 8, 10], strides = [1, 1, 1]} : vector<12x12x10xf32> to vector<1x8x10xf32>
    %550 = vector.shape_cast %549 : vector<1x8x10xf32> to vector<8x10xf32>
    %551 = vector.extract_strided_slice %222 {offsets = [9, 0, 0], sizes = [1, 8, 10], strides = [1, 1, 1]} : vector<12x12x10xf32> to vector<1x8x10xf32>
    %552 = vector.shape_cast %551 : vector<1x8x10xf32> to vector<8x10xf32>
    %553 = vector.extract_strided_slice %222 {offsets = [10, 0, 0], sizes = [1, 8, 10], strides = [1, 1, 1]} : vector<12x12x10xf32> to vector<1x8x10xf32>
    %554 = vector.shape_cast %553 : vector<1x8x10xf32> to vector<8x10xf32>
    %555 = tpu.concatenate %540, %542, %544, %546, %548, %550, %552, %554 in 0 : vector<8x10xf32>, vector<8x10xf32>, vector<8x10xf32>, vector<8x10xf32>, vector<8x10xf32>, vector<8x10xf32>, vector<8x10xf32>, vector<8x10xf32> -> vector<64x10xf32>
    %c15 = arith.constant 15 : index
    %c0_165 = arith.constant 0 : index
    %c0_166 = arith.constant 0 : index
    %556 = vector.load %arg4[%c15, %c0_165, %c0_166] : memref<25x10x20xf32, #tpu.memory_space<vmem>>, vector<1x10x20xf32>
    %557 = vector.shape_cast %556 : vector<1x10x20xf32> to vector<10x20xf32>
    %cst_167 = arith.constant dense<0.000000e+00> : vector<64x20xf32>
    %558 = tpu.matmul %555, %557, %cst_167 {dimension_numbers = #tpu.dot_dimension_numbers<[1], [0], [0], [1], [0, 0, 1, 1], [], []>} : vector<64x10xf32>, vector<10x20xf32>, vector<64x20xf32> -> vector<64x20xf32>
    %559 = arith.addf %538, %558 : vector<64x20xf32>
    %560 = vector.extract_strided_slice %222 {offsets = [3, 1, 0], sizes = [1, 8, 10], strides = [1, 1, 1]} : vector<12x12x10xf32> to vector<1x8x10xf32>
    %561 = vector.shape_cast %560 : vector<1x8x10xf32> to vector<8x10xf32>
    %562 = vector.extract_strided_slice %222 {offsets = [4, 1, 0], sizes = [1, 8, 10], strides = [1, 1, 1]} : vector<12x12x10xf32> to vector<1x8x10xf32>
    %563 = vector.shape_cast %562 : vector<1x8x10xf32> to vector<8x10xf32>
    %564 = vector.extract_strided_slice %222 {offsets = [5, 1, 0], sizes = [1, 8, 10], strides = [1, 1, 1]} : vector<12x12x10xf32> to vector<1x8x10xf32>
    %565 = vector.shape_cast %564 : vector<1x8x10xf32> to vector<8x10xf32>
    %566 = vector.extract_strided_slice %222 {offsets = [6, 1, 0], sizes = [1, 8, 10], strides = [1, 1, 1]} : vector<12x12x10xf32> to vector<1x8x10xf32>
    %567 = vector.shape_cast %566 : vector<1x8x10xf32> to vector<8x10xf32>
    %568 = vector.extract_strided_slice %222 {offsets = [7, 1, 0], sizes = [1, 8, 10], strides = [1, 1, 1]} : vector<12x12x10xf32> to vector<1x8x10xf32>
    %569 = vector.shape_cast %568 : vector<1x8x10xf32> to vector<8x10xf32>
    %570 = vector.extract_strided_slice %222 {offsets = [8, 1, 0], sizes = [1, 8, 10], strides = [1, 1, 1]} : vector<12x12x10xf32> to vector<1x8x10xf32>
    %571 = vector.shape_cast %570 : vector<1x8x10xf32> to vector<8x10xf32>
    %572 = vector.extract_strided_slice %222 {offsets = [9, 1, 0], sizes = [1, 8, 10], strides = [1, 1, 1]} : vector<12x12x10xf32> to vector<1x8x10xf32>
    %573 = vector.shape_cast %572 : vector<1x8x10xf32> to vector<8x10xf32>
    %574 = vector.extract_strided_slice %222 {offsets = [10, 1, 0], sizes = [1, 8, 10], strides = [1, 1, 1]} : vector<12x12x10xf32> to vector<1x8x10xf32>
    %575 = vector.shape_cast %574 : vector<1x8x10xf32> to vector<8x10xf32>
    %576 = tpu.concatenate %561, %563, %565, %567, %569, %571, %573, %575 in 0 : vector<8x10xf32>, vector<8x10xf32>, vector<8x10xf32>, vector<8x10xf32>, vector<8x10xf32>, vector<8x10xf32>, vector<8x10xf32>, vector<8x10xf32> -> vector<64x10xf32>
    %c16 = arith.constant 16 : index
    %c0_168 = arith.constant 0 : index
    %c0_169 = arith.constant 0 : index
    %577 = vector.load %arg4[%c16, %c0_168, %c0_169] : memref<25x10x20xf32, #tpu.memory_space<vmem>>, vector<1x10x20xf32>
    %578 = vector.shape_cast %577 : vector<1x10x20xf32> to vector<10x20xf32>
    %cst_170 = arith.constant dense<0.000000e+00> : vector<64x20xf32>
    %579 = tpu.matmul %576, %578, %cst_170 {dimension_numbers = #tpu.dot_dimension_numbers<[1], [0], [0], [1], [0, 0, 1, 1], [], []>} : vector<64x10xf32>, vector<10x20xf32>, vector<64x20xf32> -> vector<64x20xf32>
    %580 = arith.addf %559, %579 : vector<64x20xf32>
    %581 = vector.extract_strided_slice %222 {offsets = [3, 2, 0], sizes = [1, 8, 10], strides = [1, 1, 1]} : vector<12x12x10xf32> to vector<1x8x10xf32>
    %582 = vector.shape_cast %581 : vector<1x8x10xf32> to vector<8x10xf32>
    %583 = vector.extract_strided_slice %222 {offsets = [4, 2, 0], sizes = [1, 8, 10], strides = [1, 1, 1]} : vector<12x12x10xf32> to vector<1x8x10xf32>
    %584 = vector.shape_cast %583 : vector<1x8x10xf32> to vector<8x10xf32>
    %585 = vector.extract_strided_slice %222 {offsets = [5, 2, 0], sizes = [1, 8, 10], strides = [1, 1, 1]} : vector<12x12x10xf32> to vector<1x8x10xf32>
    %586 = vector.shape_cast %585 : vector<1x8x10xf32> to vector<8x10xf32>
    %587 = vector.extract_strided_slice %222 {offsets = [6, 2, 0], sizes = [1, 8, 10], strides = [1, 1, 1]} : vector<12x12x10xf32> to vector<1x8x10xf32>
    %588 = vector.shape_cast %587 : vector<1x8x10xf32> to vector<8x10xf32>
    %589 = vector.extract_strided_slice %222 {offsets = [7, 2, 0], sizes = [1, 8, 10], strides = [1, 1, 1]} : vector<12x12x10xf32> to vector<1x8x10xf32>
    %590 = vector.shape_cast %589 : vector<1x8x10xf32> to vector<8x10xf32>
    %591 = vector.extract_strided_slice %222 {offsets = [8, 2, 0], sizes = [1, 8, 10], strides = [1, 1, 1]} : vector<12x12x10xf32> to vector<1x8x10xf32>
    %592 = vector.shape_cast %591 : vector<1x8x10xf32> to vector<8x10xf32>
    %593 = vector.extract_strided_slice %222 {offsets = [9, 2, 0], sizes = [1, 8, 10], strides = [1, 1, 1]} : vector<12x12x10xf32> to vector<1x8x10xf32>
    %594 = vector.shape_cast %593 : vector<1x8x10xf32> to vector<8x10xf32>
    %595 = vector.extract_strided_slice %222 {offsets = [10, 2, 0], sizes = [1, 8, 10], strides = [1, 1, 1]} : vector<12x12x10xf32> to vector<1x8x10xf32>
    %596 = vector.shape_cast %595 : vector<1x8x10xf32> to vector<8x10xf32>
    %597 = tpu.concatenate %582, %584, %586, %588, %590, %592, %594, %596 in 0 : vector<8x10xf32>, vector<8x10xf32>, vector<8x10xf32>, vector<8x10xf32>, vector<8x10xf32>, vector<8x10xf32>, vector<8x10xf32>, vector<8x10xf32> -> vector<64x10xf32>
    %c17 = arith.constant 17 : index
    %c0_171 = arith.constant 0 : index
    %c0_172 = arith.constant 0 : index
    %598 = vector.load %arg4[%c17, %c0_171, %c0_172] : memref<25x10x20xf32, #tpu.memory_space<vmem>>, vector<1x10x20xf32>
    %599 = vector.shape_cast %598 : vector<1x10x20xf32> to vector<10x20xf32>
    %cst_173 = arith.constant dense<0.000000e+00> : vector<64x20xf32>
    %600 = tpu.matmul %597, %599, %cst_173 {dimension_numbers = #tpu.dot_dimension_numbers<[1], [0], [0], [1], [0, 0, 1, 1], [], []>} : vector<64x10xf32>, vector<10x20xf32>, vector<64x20xf32> -> vector<64x20xf32>
    %601 = arith.addf %580, %600 : vector<64x20xf32>
    %602 = vector.extract_strided_slice %222 {offsets = [3, 3, 0], sizes = [1, 8, 10], strides = [1, 1, 1]} : vector<12x12x10xf32> to vector<1x8x10xf32>
    %603 = vector.shape_cast %602 : vector<1x8x10xf32> to vector<8x10xf32>
    %604 = vector.extract_strided_slice %222 {offsets = [4, 3, 0], sizes = [1, 8, 10], strides = [1, 1, 1]} : vector<12x12x10xf32> to vector<1x8x10xf32>
    %605 = vector.shape_cast %604 : vector<1x8x10xf32> to vector<8x10xf32>
    %606 = vector.extract_strided_slice %222 {offsets = [5, 3, 0], sizes = [1, 8, 10], strides = [1, 1, 1]} : vector<12x12x10xf32> to vector<1x8x10xf32>
    %607 = vector.shape_cast %606 : vector<1x8x10xf32> to vector<8x10xf32>
    %608 = vector.extract_strided_slice %222 {offsets = [6, 3, 0], sizes = [1, 8, 10], strides = [1, 1, 1]} : vector<12x12x10xf32> to vector<1x8x10xf32>
    %609 = vector.shape_cast %608 : vector<1x8x10xf32> to vector<8x10xf32>
    %610 = vector.extract_strided_slice %222 {offsets = [7, 3, 0], sizes = [1, 8, 10], strides = [1, 1, 1]} : vector<12x12x10xf32> to vector<1x8x10xf32>
    %611 = vector.shape_cast %610 : vector<1x8x10xf32> to vector<8x10xf32>
    %612 = vector.extract_strided_slice %222 {offsets = [8, 3, 0], sizes = [1, 8, 10], strides = [1, 1, 1]} : vector<12x12x10xf32> to vector<1x8x10xf32>
    %613 = vector.shape_cast %612 : vector<1x8x10xf32> to vector<8x10xf32>
    %614 = vector.extract_strided_slice %222 {offsets = [9, 3, 0], sizes = [1, 8, 10], strides = [1, 1, 1]} : vector<12x12x10xf32> to vector<1x8x10xf32>
    %615 = vector.shape_cast %614 : vector<1x8x10xf32> to vector<8x10xf32>
    %616 = vector.extract_strided_slice %222 {offsets = [10, 3, 0], sizes = [1, 8, 10], strides = [1, 1, 1]} : vector<12x12x10xf32> to vector<1x8x10xf32>
    %617 = vector.shape_cast %616 : vector<1x8x10xf32> to vector<8x10xf32>
    %618 = tpu.concatenate %603, %605, %607, %609, %611, %613, %615, %617 in 0 : vector<8x10xf32>, vector<8x10xf32>, vector<8x10xf32>, vector<8x10xf32>, vector<8x10xf32>, vector<8x10xf32>, vector<8x10xf32>, vector<8x10xf32> -> vector<64x10xf32>
    %c18 = arith.constant 18 : index
    %c0_174 = arith.constant 0 : index
    %c0_175 = arith.constant 0 : index
    %619 = vector.load %arg4[%c18, %c0_174, %c0_175] : memref<25x10x20xf32, #tpu.memory_space<vmem>>, vector<1x10x20xf32>
    %620 = vector.shape_cast %619 : vector<1x10x20xf32> to vector<10x20xf32>
    %cst_176 = arith.constant dense<0.000000e+00> : vector<64x20xf32>
    %621 = tpu.matmul %618, %620, %cst_176 {dimension_numbers = #tpu.dot_dimension_numbers<[1], [0], [0], [1], [0, 0, 1, 1], [], []>} : vector<64x10xf32>, vector<10x20xf32>, vector<64x20xf32> -> vector<64x20xf32>
    %622 = arith.addf %601, %621 : vector<64x20xf32>
    %623 = vector.extract_strided_slice %222 {offsets = [3, 4, 0], sizes = [1, 8, 10], strides = [1, 1, 1]} : vector<12x12x10xf32> to vector<1x8x10xf32>
    %624 = vector.shape_cast %623 : vector<1x8x10xf32> to vector<8x10xf32>
    %625 = vector.extract_strided_slice %222 {offsets = [4, 4, 0], sizes = [1, 8, 10], strides = [1, 1, 1]} : vector<12x12x10xf32> to vector<1x8x10xf32>
    %626 = vector.shape_cast %625 : vector<1x8x10xf32> to vector<8x10xf32>
    %627 = vector.extract_strided_slice %222 {offsets = [5, 4, 0], sizes = [1, 8, 10], strides = [1, 1, 1]} : vector<12x12x10xf32> to vector<1x8x10xf32>
    %628 = vector.shape_cast %627 : vector<1x8x10xf32> to vector<8x10xf32>
    %629 = vector.extract_strided_slice %222 {offsets = [6, 4, 0], sizes = [1, 8, 10], strides = [1, 1, 1]} : vector<12x12x10xf32> to vector<1x8x10xf32>
    %630 = vector.shape_cast %629 : vector<1x8x10xf32> to vector<8x10xf32>
    %631 = vector.extract_strided_slice %222 {offsets = [7, 4, 0], sizes = [1, 8, 10], strides = [1, 1, 1]} : vector<12x12x10xf32> to vector<1x8x10xf32>
    %632 = vector.shape_cast %631 : vector<1x8x10xf32> to vector<8x10xf32>
    %633 = vector.extract_strided_slice %222 {offsets = [8, 4, 0], sizes = [1, 8, 10], strides = [1, 1, 1]} : vector<12x12x10xf32> to vector<1x8x10xf32>
    %634 = vector.shape_cast %633 : vector<1x8x10xf32> to vector<8x10xf32>
    %635 = vector.extract_strided_slice %222 {offsets = [9, 4, 0], sizes = [1, 8, 10], strides = [1, 1, 1]} : vector<12x12x10xf32> to vector<1x8x10xf32>
    %636 = vector.shape_cast %635 : vector<1x8x10xf32> to vector<8x10xf32>
    %637 = vector.extract_strided_slice %222 {offsets = [10, 4, 0], sizes = [1, 8, 10], strides = [1, 1, 1]} : vector<12x12x10xf32> to vector<1x8x10xf32>
    %638 = vector.shape_cast %637 : vector<1x8x10xf32> to vector<8x10xf32>
    %639 = tpu.concatenate %624, %626, %628, %630, %632, %634, %636, %638 in 0 : vector<8x10xf32>, vector<8x10xf32>, vector<8x10xf32>, vector<8x10xf32>, vector<8x10xf32>, vector<8x10xf32>, vector<8x10xf32>, vector<8x10xf32> -> vector<64x10xf32>
    %c19 = arith.constant 19 : index
    %c0_177 = arith.constant 0 : index
    %c0_178 = arith.constant 0 : index
    %640 = vector.load %arg4[%c19, %c0_177, %c0_178] : memref<25x10x20xf32, #tpu.memory_space<vmem>>, vector<1x10x20xf32>
    %641 = vector.shape_cast %640 : vector<1x10x20xf32> to vector<10x20xf32>
    %cst_179 = arith.constant dense<0.000000e+00> : vector<64x20xf32>
    %642 = tpu.matmul %639, %641, %cst_179 {dimension_numbers = #tpu.dot_dimension_numbers<[1], [0], [0], [1], [0, 0, 1, 1], [], []>} : vector<64x10xf32>, vector<10x20xf32>, vector<64x20xf32> -> vector<64x20xf32>
    %643 = arith.addf %622, %642 : vector<64x20xf32>
    %644 = vector.extract_strided_slice %222 {offsets = [4, 0, 0], sizes = [1, 8, 10], strides = [1, 1, 1]} : vector<12x12x10xf32> to vector<1x8x10xf32>
    %645 = vector.shape_cast %644 : vector<1x8x10xf32> to vector<8x10xf32>
    %646 = vector.extract_strided_slice %222 {offsets = [5, 0, 0], sizes = [1, 8, 10], strides = [1, 1, 1]} : vector<12x12x10xf32> to vector<1x8x10xf32>
    %647 = vector.shape_cast %646 : vector<1x8x10xf32> to vector<8x10xf32>
    %648 = vector.extract_strided_slice %222 {offsets = [6, 0, 0], sizes = [1, 8, 10], strides = [1, 1, 1]} : vector<12x12x10xf32> to vector<1x8x10xf32>
    %649 = vector.shape_cast %648 : vector<1x8x10xf32> to vector<8x10xf32>
    %650 = vector.extract_strided_slice %222 {offsets = [7, 0, 0], sizes = [1, 8, 10], strides = [1, 1, 1]} : vector<12x12x10xf32> to vector<1x8x10xf32>
    %651 = vector.shape_cast %650 : vector<1x8x10xf32> to vector<8x10xf32>
    %652 = vector.extract_strided_slice %222 {offsets = [8, 0, 0], sizes = [1, 8, 10], strides = [1, 1, 1]} : vector<12x12x10xf32> to vector<1x8x10xf32>
    %653 = vector.shape_cast %652 : vector<1x8x10xf32> to vector<8x10xf32>
    %654 = vector.extract_strided_slice %222 {offsets = [9, 0, 0], sizes = [1, 8, 10], strides = [1, 1, 1]} : vector<12x12x10xf32> to vector<1x8x10xf32>
    %655 = vector.shape_cast %654 : vector<1x8x10xf32> to vector<8x10xf32>
    %656 = vector.extract_strided_slice %222 {offsets = [10, 0, 0], sizes = [1, 8, 10], strides = [1, 1, 1]} : vector<12x12x10xf32> to vector<1x8x10xf32>
    %657 = vector.shape_cast %656 : vector<1x8x10xf32> to vector<8x10xf32>
    %658 = vector.extract_strided_slice %222 {offsets = [11, 0, 0], sizes = [1, 8, 10], strides = [1, 1, 1]} : vector<12x12x10xf32> to vector<1x8x10xf32>
    %659 = vector.shape_cast %658 : vector<1x8x10xf32> to vector<8x10xf32>
    %660 = tpu.concatenate %645, %647, %649, %651, %653, %655, %657, %659 in 0 : vector<8x10xf32>, vector<8x10xf32>, vector<8x10xf32>, vector<8x10xf32>, vector<8x10xf32>, vector<8x10xf32>, vector<8x10xf32>, vector<8x10xf32> -> vector<64x10xf32>
    %c20 = arith.constant 20 : index
    %c0_180 = arith.constant 0 : index
    %c0_181 = arith.constant 0 : index
    %661 = vector.load %arg4[%c20, %c0_180, %c0_181] : memref<25x10x20xf32, #tpu.memory_space<vmem>>, vector<1x10x20xf32>
    %662 = vector.shape_cast %661 : vector<1x10x20xf32> to vector<10x20xf32>
    %cst_182 = arith.constant dense<0.000000e+00> : vector<64x20xf32>
    %663 = tpu.matmul %660, %662, %cst_182 {dimension_numbers = #tpu.dot_dimension_numbers<[1], [0], [0], [1], [0, 0, 1, 1], [], []>} : vector<64x10xf32>, vector<10x20xf32>, vector<64x20xf32> -> vector<64x20xf32>
    %664 = arith.addf %643, %663 : vector<64x20xf32>
    %665 = vector.extract_strided_slice %222 {offsets = [4, 1, 0], sizes = [1, 8, 10], strides = [1, 1, 1]} : vector<12x12x10xf32> to vector<1x8x10xf32>
    %666 = vector.shape_cast %665 : vector<1x8x10xf32> to vector<8x10xf32>
    %667 = vector.extract_strided_slice %222 {offsets = [5, 1, 0], sizes = [1, 8, 10], strides = [1, 1, 1]} : vector<12x12x10xf32> to vector<1x8x10xf32>
    %668 = vector.shape_cast %667 : vector<1x8x10xf32> to vector<8x10xf32>
    %669 = vector.extract_strided_slice %222 {offsets = [6, 1, 0], sizes = [1, 8, 10], strides = [1, 1, 1]} : vector<12x12x10xf32> to vector<1x8x10xf32>
    %670 = vector.shape_cast %669 : vector<1x8x10xf32> to vector<8x10xf32>
    %671 = vector.extract_strided_slice %222 {offsets = [7, 1, 0], sizes = [1, 8, 10], strides = [1, 1, 1]} : vector<12x12x10xf32> to vector<1x8x10xf32>
    %672 = vector.shape_cast %671 : vector<1x8x10xf32> to vector<8x10xf32>
    %673 = vector.extract_strided_slice %222 {offsets = [8, 1, 0], sizes = [1, 8, 10], strides = [1, 1, 1]} : vector<12x12x10xf32> to vector<1x8x10xf32>
    %674 = vector.shape_cast %673 : vector<1x8x10xf32> to vector<8x10xf32>
    %675 = vector.extract_strided_slice %222 {offsets = [9, 1, 0], sizes = [1, 8, 10], strides = [1, 1, 1]} : vector<12x12x10xf32> to vector<1x8x10xf32>
    %676 = vector.shape_cast %675 : vector<1x8x10xf32> to vector<8x10xf32>
    %677 = vector.extract_strided_slice %222 {offsets = [10, 1, 0], sizes = [1, 8, 10], strides = [1, 1, 1]} : vector<12x12x10xf32> to vector<1x8x10xf32>
    %678 = vector.shape_cast %677 : vector<1x8x10xf32> to vector<8x10xf32>
    %679 = vector.extract_strided_slice %222 {offsets = [11, 1, 0], sizes = [1, 8, 10], strides = [1, 1, 1]} : vector<12x12x10xf32> to vector<1x8x10xf32>
    %680 = vector.shape_cast %679 : vector<1x8x10xf32> to vector<8x10xf32>
    %681 = tpu.concatenate %666, %668, %670, %672, %674, %676, %678, %680 in 0 : vector<8x10xf32>, vector<8x10xf32>, vector<8x10xf32>, vector<8x10xf32>, vector<8x10xf32>, vector<8x10xf32>, vector<8x10xf32>, vector<8x10xf32> -> vector<64x10xf32>
    %c21 = arith.constant 21 : index
    %c0_183 = arith.constant 0 : index
    %c0_184 = arith.constant 0 : index
    %682 = vector.load %arg4[%c21, %c0_183, %c0_184] : memref<25x10x20xf32, #tpu.memory_space<vmem>>, vector<1x10x20xf32>
    %683 = vector.shape_cast %682 : vector<1x10x20xf32> to vector<10x20xf32>
    %cst_185 = arith.constant dense<0.000000e+00> : vector<64x20xf32>
    %684 = tpu.matmul %681, %683, %cst_185 {dimension_numbers = #tpu.dot_dimension_numbers<[1], [0], [0], [1], [0, 0, 1, 1], [], []>} : vector<64x10xf32>, vector<10x20xf32>, vector<64x20xf32> -> vector<64x20xf32>
    %685 = arith.addf %664, %684 : vector<64x20xf32>
    %686 = vector.extract_strided_slice %222 {offsets = [4, 2, 0], sizes = [1, 8, 10], strides = [1, 1, 1]} : vector<12x12x10xf32> to vector<1x8x10xf32>
    %687 = vector.shape_cast %686 : vector<1x8x10xf32> to vector<8x10xf32>
    %688 = vector.extract_strided_slice %222 {offsets = [5, 2, 0], sizes = [1, 8, 10], strides = [1, 1, 1]} : vector<12x12x10xf32> to vector<1x8x10xf32>
    %689 = vector.shape_cast %688 : vector<1x8x10xf32> to vector<8x10xf32>
    %690 = vector.extract_strided_slice %222 {offsets = [6, 2, 0], sizes = [1, 8, 10], strides = [1, 1, 1]} : vector<12x12x10xf32> to vector<1x8x10xf32>
    %691 = vector.shape_cast %690 : vector<1x8x10xf32> to vector<8x10xf32>
    %692 = vector.extract_strided_slice %222 {offsets = [7, 2, 0], sizes = [1, 8, 10], strides = [1, 1, 1]} : vector<12x12x10xf32> to vector<1x8x10xf32>
    %693 = vector.shape_cast %692 : vector<1x8x10xf32> to vector<8x10xf32>
    %694 = vector.extract_strided_slice %222 {offsets = [8, 2, 0], sizes = [1, 8, 10], strides = [1, 1, 1]} : vector<12x12x10xf32> to vector<1x8x10xf32>
    %695 = vector.shape_cast %694 : vector<1x8x10xf32> to vector<8x10xf32>
    %696 = vector.extract_strided_slice %222 {offsets = [9, 2, 0], sizes = [1, 8, 10], strides = [1, 1, 1]} : vector<12x12x10xf32> to vector<1x8x10xf32>
    %697 = vector.shape_cast %696 : vector<1x8x10xf32> to vector<8x10xf32>
    %698 = vector.extract_strided_slice %222 {offsets = [10, 2, 0], sizes = [1, 8, 10], strides = [1, 1, 1]} : vector<12x12x10xf32> to vector<1x8x10xf32>
    %699 = vector.shape_cast %698 : vector<1x8x10xf32> to vector<8x10xf32>
    %700 = vector.extract_strided_slice %222 {offsets = [11, 2, 0], sizes = [1, 8, 10], strides = [1, 1, 1]} : vector<12x12x10xf32> to vector<1x8x10xf32>
    %701 = vector.shape_cast %700 : vector<1x8x10xf32> to vector<8x10xf32>
    %702 = tpu.concatenate %687, %689, %691, %693, %695, %697, %699, %701 in 0 : vector<8x10xf32>, vector<8x10xf32>, vector<8x10xf32>, vector<8x10xf32>, vector<8x10xf32>, vector<8x10xf32>, vector<8x10xf32>, vector<8x10xf32> -> vector<64x10xf32>
    %c22 = arith.constant 22 : index
    %c0_186 = arith.constant 0 : index
    %c0_187 = arith.constant 0 : index
    %703 = vector.load %arg4[%c22, %c0_186, %c0_187] : memref<25x10x20xf32, #tpu.memory_space<vmem>>, vector<1x10x20xf32>
    %704 = vector.shape_cast %703 : vector<1x10x20xf32> to vector<10x20xf32>
    %cst_188 = arith.constant dense<0.000000e+00> : vector<64x20xf32>
    %705 = tpu.matmul %702, %704, %cst_188 {dimension_numbers = #tpu.dot_dimension_numbers<[1], [0], [0], [1], [0, 0, 1, 1], [], []>} : vector<64x10xf32>, vector<10x20xf32>, vector<64x20xf32> -> vector<64x20xf32>
    %706 = arith.addf %685, %705 : vector<64x20xf32>
    %707 = vector.extract_strided_slice %222 {offsets = [4, 3, 0], sizes = [1, 8, 10], strides = [1, 1, 1]} : vector<12x12x10xf32> to vector<1x8x10xf32>
    %708 = vector.shape_cast %707 : vector<1x8x10xf32> to vector<8x10xf32>
    %709 = vector.extract_strided_slice %222 {offsets = [5, 3, 0], sizes = [1, 8, 10], strides = [1, 1, 1]} : vector<12x12x10xf32> to vector<1x8x10xf32>
    %710 = vector.shape_cast %709 : vector<1x8x10xf32> to vector<8x10xf32>
    %711 = vector.extract_strided_slice %222 {offsets = [6, 3, 0], sizes = [1, 8, 10], strides = [1, 1, 1]} : vector<12x12x10xf32> to vector<1x8x10xf32>
    %712 = vector.shape_cast %711 : vector<1x8x10xf32> to vector<8x10xf32>
    %713 = vector.extract_strided_slice %222 {offsets = [7, 3, 0], sizes = [1, 8, 10], strides = [1, 1, 1]} : vector<12x12x10xf32> to vector<1x8x10xf32>
    %714 = vector.shape_cast %713 : vector<1x8x10xf32> to vector<8x10xf32>
    %715 = vector.extract_strided_slice %222 {offsets = [8, 3, 0], sizes = [1, 8, 10], strides = [1, 1, 1]} : vector<12x12x10xf32> to vector<1x8x10xf32>
    %716 = vector.shape_cast %715 : vector<1x8x10xf32> to vector<8x10xf32>
    %717 = vector.extract_strided_slice %222 {offsets = [9, 3, 0], sizes = [1, 8, 10], strides = [1, 1, 1]} : vector<12x12x10xf32> to vector<1x8x10xf32>
    %718 = vector.shape_cast %717 : vector<1x8x10xf32> to vector<8x10xf32>
    %719 = vector.extract_strided_slice %222 {offsets = [10, 3, 0], sizes = [1, 8, 10], strides = [1, 1, 1]} : vector<12x12x10xf32> to vector<1x8x10xf32>
    %720 = vector.shape_cast %719 : vector<1x8x10xf32> to vector<8x10xf32>
    %721 = vector.extract_strided_slice %222 {offsets = [11, 3, 0], sizes = [1, 8, 10], strides = [1, 1, 1]} : vector<12x12x10xf32> to vector<1x8x10xf32>
    %722 = vector.shape_cast %721 : vector<1x8x10xf32> to vector<8x10xf32>
    %723 = tpu.concatenate %708, %710, %712, %714, %716, %718, %720, %722 in 0 : vector<8x10xf32>, vector<8x10xf32>, vector<8x10xf32>, vector<8x10xf32>, vector<8x10xf32>, vector<8x10xf32>, vector<8x10xf32>, vector<8x10xf32> -> vector<64x10xf32>
    %c23 = arith.constant 23 : index
    %c0_189 = arith.constant 0 : index
    %c0_190 = arith.constant 0 : index
    %724 = vector.load %arg4[%c23, %c0_189, %c0_190] : memref<25x10x20xf32, #tpu.memory_space<vmem>>, vector<1x10x20xf32>
    %725 = vector.shape_cast %724 : vector<1x10x20xf32> to vector<10x20xf32>
    %cst_191 = arith.constant dense<0.000000e+00> : vector<64x20xf32>
    %726 = tpu.matmul %723, %725, %cst_191 {dimension_numbers = #tpu.dot_dimension_numbers<[1], [0], [0], [1], [0, 0, 1, 1], [], []>} : vector<64x10xf32>, vector<10x20xf32>, vector<64x20xf32> -> vector<64x20xf32>
    %727 = arith.addf %706, %726 : vector<64x20xf32>
    %728 = vector.extract_strided_slice %222 {offsets = [4, 4, 0], sizes = [1, 8, 10], strides = [1, 1, 1]} : vector<12x12x10xf32> to vector<1x8x10xf32>
    %729 = vector.shape_cast %728 : vector<1x8x10xf32> to vector<8x10xf32>
    %730 = vector.extract_strided_slice %222 {offsets = [5, 4, 0], sizes = [1, 8, 10], strides = [1, 1, 1]} : vector<12x12x10xf32> to vector<1x8x10xf32>
    %731 = vector.shape_cast %730 : vector<1x8x10xf32> to vector<8x10xf32>
    %732 = vector.extract_strided_slice %222 {offsets = [6, 4, 0], sizes = [1, 8, 10], strides = [1, 1, 1]} : vector<12x12x10xf32> to vector<1x8x10xf32>
    %733 = vector.shape_cast %732 : vector<1x8x10xf32> to vector<8x10xf32>
    %734 = vector.extract_strided_slice %222 {offsets = [7, 4, 0], sizes = [1, 8, 10], strides = [1, 1, 1]} : vector<12x12x10xf32> to vector<1x8x10xf32>
    %735 = vector.shape_cast %734 : vector<1x8x10xf32> to vector<8x10xf32>
    %736 = vector.extract_strided_slice %222 {offsets = [8, 4, 0], sizes = [1, 8, 10], strides = [1, 1, 1]} : vector<12x12x10xf32> to vector<1x8x10xf32>
    %737 = vector.shape_cast %736 : vector<1x8x10xf32> to vector<8x10xf32>
    %738 = vector.extract_strided_slice %222 {offsets = [9, 4, 0], sizes = [1, 8, 10], strides = [1, 1, 1]} : vector<12x12x10xf32> to vector<1x8x10xf32>
    %739 = vector.shape_cast %738 : vector<1x8x10xf32> to vector<8x10xf32>
    %740 = vector.extract_strided_slice %222 {offsets = [10, 4, 0], sizes = [1, 8, 10], strides = [1, 1, 1]} : vector<12x12x10xf32> to vector<1x8x10xf32>
    %741 = vector.shape_cast %740 : vector<1x8x10xf32> to vector<8x10xf32>
    %742 = vector.extract_strided_slice %222 {offsets = [11, 4, 0], sizes = [1, 8, 10], strides = [1, 1, 1]} : vector<12x12x10xf32> to vector<1x8x10xf32>
    %743 = vector.shape_cast %742 : vector<1x8x10xf32> to vector<8x10xf32>
    %744 = tpu.concatenate %729, %731, %733, %735, %737, %739, %741, %743 in 0 : vector<8x10xf32>, vector<8x10xf32>, vector<8x10xf32>, vector<8x10xf32>, vector<8x10xf32>, vector<8x10xf32>, vector<8x10xf32>, vector<8x10xf32> -> vector<64x10xf32>
    %c24 = arith.constant 24 : index
    %c0_192 = arith.constant 0 : index
    %c0_193 = arith.constant 0 : index
    %745 = vector.load %arg4[%c24, %c0_192, %c0_193] : memref<25x10x20xf32, #tpu.memory_space<vmem>>, vector<1x10x20xf32>
    %746 = vector.shape_cast %745 : vector<1x10x20xf32> to vector<10x20xf32>
    %cst_194 = arith.constant dense<0.000000e+00> : vector<64x20xf32>
    %747 = tpu.matmul %744, %746, %cst_194 {dimension_numbers = #tpu.dot_dimension_numbers<[1], [0], [0], [1], [0, 0, 1, 1], [], []>} : vector<64x10xf32>, vector<10x20xf32>, vector<64x20xf32> -> vector<64x20xf32>
    %748 = arith.addf %727, %747 : vector<64x20xf32>
    %c0_195 = arith.constant 0 : index
    %c0_196 = arith.constant 0 : index
    %749 = vector.load %arg5[%c0_195, %c0_196] : memref<1x20xf32, #tpu.memory_space<vmem>>, vector<1x20xf32>
    %750 = vector.broadcast %749 : vector<1x20xf32> to vector<64x20xf32>
    %751 = arith.addf %748, %750 : vector<64x20xf32>
    %cst_197 = arith.constant 0.000000e+00 : f32
    %752 = vector.broadcast %cst_197 : f32 to vector<64x20xf32>
    %753 = arith.maximumf %751, %752 : vector<64x20xf32>
    %c0_198 = arith.constant 0 : index
    %c0_199 = arith.constant 0 : index
    %754 = vector.load %arg7[%c0_198, %c0_199] : memref<1x50xf32, #tpu.memory_space<vmem>>, vector<1x50xf32>
    %755 = vector.extract_strided_slice %753 {offsets = [0, 0], sizes = [8, 20], strides = [1, 1]} : vector<64x20xf32> to vector<8x20xf32>
    %756 = vector.extract_strided_slice %753 {offsets = [8, 0], sizes = [8, 20], strides = [1, 1]} : vector<64x20xf32> to vector<8x20xf32>
    %757 = arith.maximumf %755, %756 : vector<8x20xf32>
    %cst_200 = arith.constant dense<0.000000e+00> : vector<4x20xf32>
    %758 = tpu.matmul %20, %757, %cst_200 {dimension_numbers = #tpu.dot_dimension_numbers<[1], [0], [0], [1], [0, 0, 1, 1], [], []>} : vector<4x8xf32>, vector<8x20xf32>, vector<4x20xf32> -> vector<4x20xf32>
    %cst_201 = arith.constant dense<0.000000e+00> : vector<4x20xf32>
    %759 = tpu.matmul %27, %757, %cst_201 {dimension_numbers = #tpu.dot_dimension_numbers<[1], [0], [0], [1], [0, 0, 1, 1], [], []>} : vector<4x8xf32>, vector<8x20xf32>, vector<4x20xf32> -> vector<4x20xf32>
    %760 = arith.maximumf %758, %759 : vector<4x20xf32>
    %761 = vector.extract_strided_slice %760 {offsets = [0, 0], sizes = [1, 20], strides = [1, 1]} : vector<4x20xf32> to vector<1x20xf32>
    %c0_202 = arith.constant 0 : index
    %c0_203 = arith.constant 0 : index
    %c0_204 = arith.constant 0 : index
    %762 = vector.load %arg6[%c0_202, %c0_203, %c0_204] : memref<16x20x50xf32, #tpu.memory_space<vmem>>, vector<1x20x50xf32>
    %763 = vector.shape_cast %762 : vector<1x20x50xf32> to vector<20x50xf32>
    %cst_205 = arith.constant dense<0.000000e+00> : vector<1x50xf32>
    %764 = tpu.matmul %761, %763, %cst_205 {dimension_numbers = #tpu.dot_dimension_numbers<[1], [0], [0], [1], [0, 0, 1, 1], [], []>} : vector<1x20xf32>, vector<20x50xf32>, vector<1x50xf32> -> vector<1x50xf32>
    %765 = arith.addf %754, %764 : vector<1x50xf32>
    %766 = vector.extract_strided_slice %760 {offsets = [1, 0], sizes = [1, 20], strides = [1, 1]} : vector<4x20xf32> to vector<1x20xf32>
    %c1_206 = arith.constant 1 : index
    %c0_207 = arith.constant 0 : index
    %c0_208 = arith.constant 0 : index
    %767 = vector.load %arg6[%c1_206, %c0_207, %c0_208] : memref<16x20x50xf32, #tpu.memory_space<vmem>>, vector<1x20x50xf32>
    %768 = vector.shape_cast %767 : vector<1x20x50xf32> to vector<20x50xf32>
    %cst_209 = arith.constant dense<0.000000e+00> : vector<1x50xf32>
    %769 = tpu.matmul %766, %768, %cst_209 {dimension_numbers = #tpu.dot_dimension_numbers<[1], [0], [0], [1], [0, 0, 1, 1], [], []>} : vector<1x20xf32>, vector<20x50xf32>, vector<1x50xf32> -> vector<1x50xf32>
    %770 = arith.addf %765, %769 : vector<1x50xf32>
    %771 = vector.extract_strided_slice %760 {offsets = [2, 0], sizes = [1, 20], strides = [1, 1]} : vector<4x20xf32> to vector<1x20xf32>
    %c2_210 = arith.constant 2 : index
    %c0_211 = arith.constant 0 : index
    %c0_212 = arith.constant 0 : index
    %772 = vector.load %arg6[%c2_210, %c0_211, %c0_212] : memref<16x20x50xf32, #tpu.memory_space<vmem>>, vector<1x20x50xf32>
    %773 = vector.shape_cast %772 : vector<1x20x50xf32> to vector<20x50xf32>
    %cst_213 = arith.constant dense<0.000000e+00> : vector<1x50xf32>
    %774 = tpu.matmul %771, %773, %cst_213 {dimension_numbers = #tpu.dot_dimension_numbers<[1], [0], [0], [1], [0, 0, 1, 1], [], []>} : vector<1x20xf32>, vector<20x50xf32>, vector<1x50xf32> -> vector<1x50xf32>
    %775 = arith.addf %770, %774 : vector<1x50xf32>
    %776 = vector.extract_strided_slice %760 {offsets = [3, 0], sizes = [1, 20], strides = [1, 1]} : vector<4x20xf32> to vector<1x20xf32>
    %c3_214 = arith.constant 3 : index
    %c0_215 = arith.constant 0 : index
    %c0_216 = arith.constant 0 : index
    %777 = vector.load %arg6[%c3_214, %c0_215, %c0_216] : memref<16x20x50xf32, #tpu.memory_space<vmem>>, vector<1x20x50xf32>
    %778 = vector.shape_cast %777 : vector<1x20x50xf32> to vector<20x50xf32>
    %cst_217 = arith.constant dense<0.000000e+00> : vector<1x50xf32>
    %779 = tpu.matmul %776, %778, %cst_217 {dimension_numbers = #tpu.dot_dimension_numbers<[1], [0], [0], [1], [0, 0, 1, 1], [], []>} : vector<1x20xf32>, vector<20x50xf32>, vector<1x50xf32> -> vector<1x50xf32>
    %780 = arith.addf %775, %779 : vector<1x50xf32>
    %781 = vector.extract_strided_slice %753 {offsets = [16, 0], sizes = [8, 20], strides = [1, 1]} : vector<64x20xf32> to vector<8x20xf32>
    %782 = vector.extract_strided_slice %753 {offsets = [24, 0], sizes = [8, 20], strides = [1, 1]} : vector<64x20xf32> to vector<8x20xf32>
    %783 = arith.maximumf %781, %782 : vector<8x20xf32>
    %cst_218 = arith.constant dense<0.000000e+00> : vector<4x20xf32>
    %784 = tpu.matmul %20, %783, %cst_218 {dimension_numbers = #tpu.dot_dimension_numbers<[1], [0], [0], [1], [0, 0, 1, 1], [], []>} : vector<4x8xf32>, vector<8x20xf32>, vector<4x20xf32> -> vector<4x20xf32>
    %cst_219 = arith.constant dense<0.000000e+00> : vector<4x20xf32>
    %785 = tpu.matmul %27, %783, %cst_219 {dimension_numbers = #tpu.dot_dimension_numbers<[1], [0], [0], [1], [0, 0, 1, 1], [], []>} : vector<4x8xf32>, vector<8x20xf32>, vector<4x20xf32> -> vector<4x20xf32>
    %786 = arith.maximumf %784, %785 : vector<4x20xf32>
    %787 = vector.extract_strided_slice %786 {offsets = [0, 0], sizes = [1, 20], strides = [1, 1]} : vector<4x20xf32> to vector<1x20xf32>
    %c4_220 = arith.constant 4 : index
    %c0_221 = arith.constant 0 : index
    %c0_222 = arith.constant 0 : index
    %788 = vector.load %arg6[%c4_220, %c0_221, %c0_222] : memref<16x20x50xf32, #tpu.memory_space<vmem>>, vector<1x20x50xf32>
    %789 = vector.shape_cast %788 : vector<1x20x50xf32> to vector<20x50xf32>
    %cst_223 = arith.constant dense<0.000000e+00> : vector<1x50xf32>
    %790 = tpu.matmul %787, %789, %cst_223 {dimension_numbers = #tpu.dot_dimension_numbers<[1], [0], [0], [1], [0, 0, 1, 1], [], []>} : vector<1x20xf32>, vector<20x50xf32>, vector<1x50xf32> -> vector<1x50xf32>
    %791 = arith.addf %780, %790 : vector<1x50xf32>
    %792 = vector.extract_strided_slice %786 {offsets = [1, 0], sizes = [1, 20], strides = [1, 1]} : vector<4x20xf32> to vector<1x20xf32>
    %c5_224 = arith.constant 5 : index
    %c0_225 = arith.constant 0 : index
    %c0_226 = arith.constant 0 : index
    %793 = vector.load %arg6[%c5_224, %c0_225, %c0_226] : memref<16x20x50xf32, #tpu.memory_space<vmem>>, vector<1x20x50xf32>
    %794 = vector.shape_cast %793 : vector<1x20x50xf32> to vector<20x50xf32>
    %cst_227 = arith.constant dense<0.000000e+00> : vector<1x50xf32>
    %795 = tpu.matmul %792, %794, %cst_227 {dimension_numbers = #tpu.dot_dimension_numbers<[1], [0], [0], [1], [0, 0, 1, 1], [], []>} : vector<1x20xf32>, vector<20x50xf32>, vector<1x50xf32> -> vector<1x50xf32>
    %796 = arith.addf %791, %795 : vector<1x50xf32>
    %797 = vector.extract_strided_slice %786 {offsets = [2, 0], sizes = [1, 20], strides = [1, 1]} : vector<4x20xf32> to vector<1x20xf32>
    %c6_228 = arith.constant 6 : index
    %c0_229 = arith.constant 0 : index
    %c0_230 = arith.constant 0 : index
    %798 = vector.load %arg6[%c6_228, %c0_229, %c0_230] : memref<16x20x50xf32, #tpu.memory_space<vmem>>, vector<1x20x50xf32>
    %799 = vector.shape_cast %798 : vector<1x20x50xf32> to vector<20x50xf32>
    %cst_231 = arith.constant dense<0.000000e+00> : vector<1x50xf32>
    %800 = tpu.matmul %797, %799, %cst_231 {dimension_numbers = #tpu.dot_dimension_numbers<[1], [0], [0], [1], [0, 0, 1, 1], [], []>} : vector<1x20xf32>, vector<20x50xf32>, vector<1x50xf32> -> vector<1x50xf32>
    %801 = arith.addf %796, %800 : vector<1x50xf32>
    %802 = vector.extract_strided_slice %786 {offsets = [3, 0], sizes = [1, 20], strides = [1, 1]} : vector<4x20xf32> to vector<1x20xf32>
    %c7_232 = arith.constant 7 : index
    %c0_233 = arith.constant 0 : index
    %c0_234 = arith.constant 0 : index
    %803 = vector.load %arg6[%c7_232, %c0_233, %c0_234] : memref<16x20x50xf32, #tpu.memory_space<vmem>>, vector<1x20x50xf32>
    %804 = vector.shape_cast %803 : vector<1x20x50xf32> to vector<20x50xf32>
    %cst_235 = arith.constant dense<0.000000e+00> : vector<1x50xf32>
    %805 = tpu.matmul %802, %804, %cst_235 {dimension_numbers = #tpu.dot_dimension_numbers<[1], [0], [0], [1], [0, 0, 1, 1], [], []>} : vector<1x20xf32>, vector<20x50xf32>, vector<1x50xf32> -> vector<1x50xf32>
    %806 = arith.addf %801, %805 : vector<1x50xf32>
    %807 = vector.extract_strided_slice %753 {offsets = [32, 0], sizes = [8, 20], strides = [1, 1]} : vector<64x20xf32> to vector<8x20xf32>
    %808 = vector.extract_strided_slice %753 {offsets = [40, 0], sizes = [8, 20], strides = [1, 1]} : vector<64x20xf32> to vector<8x20xf32>
    %809 = arith.maximumf %807, %808 : vector<8x20xf32>
    %cst_236 = arith.constant dense<0.000000e+00> : vector<4x20xf32>
    %810 = tpu.matmul %20, %809, %cst_236 {dimension_numbers = #tpu.dot_dimension_numbers<[1], [0], [0], [1], [0, 0, 1, 1], [], []>} : vector<4x8xf32>, vector<8x20xf32>, vector<4x20xf32> -> vector<4x20xf32>
    %cst_237 = arith.constant dense<0.000000e+00> : vector<4x20xf32>
    %811 = tpu.matmul %27, %809, %cst_237 {dimension_numbers = #tpu.dot_dimension_numbers<[1], [0], [0], [1], [0, 0, 1, 1], [], []>} : vector<4x8xf32>, vector<8x20xf32>, vector<4x20xf32> -> vector<4x20xf32>
    %812 = arith.maximumf %810, %811 : vector<4x20xf32>
    %813 = vector.extract_strided_slice %812 {offsets = [0, 0], sizes = [1, 20], strides = [1, 1]} : vector<4x20xf32> to vector<1x20xf32>
    %c8_238 = arith.constant 8 : index
    %c0_239 = arith.constant 0 : index
    %c0_240 = arith.constant 0 : index
    %814 = vector.load %arg6[%c8_238, %c0_239, %c0_240] : memref<16x20x50xf32, #tpu.memory_space<vmem>>, vector<1x20x50xf32>
    %815 = vector.shape_cast %814 : vector<1x20x50xf32> to vector<20x50xf32>
    %cst_241 = arith.constant dense<0.000000e+00> : vector<1x50xf32>
    %816 = tpu.matmul %813, %815, %cst_241 {dimension_numbers = #tpu.dot_dimension_numbers<[1], [0], [0], [1], [0, 0, 1, 1], [], []>} : vector<1x20xf32>, vector<20x50xf32>, vector<1x50xf32> -> vector<1x50xf32>
    %817 = arith.addf %806, %816 : vector<1x50xf32>
    %818 = vector.extract_strided_slice %812 {offsets = [1, 0], sizes = [1, 20], strides = [1, 1]} : vector<4x20xf32> to vector<1x20xf32>
    %c9_242 = arith.constant 9 : index
    %c0_243 = arith.constant 0 : index
    %c0_244 = arith.constant 0 : index
    %819 = vector.load %arg6[%c9_242, %c0_243, %c0_244] : memref<16x20x50xf32, #tpu.memory_space<vmem>>, vector<1x20x50xf32>
    %820 = vector.shape_cast %819 : vector<1x20x50xf32> to vector<20x50xf32>
    %cst_245 = arith.constant dense<0.000000e+00> : vector<1x50xf32>
    %821 = tpu.matmul %818, %820, %cst_245 {dimension_numbers = #tpu.dot_dimension_numbers<[1], [0], [0], [1], [0, 0, 1, 1], [], []>} : vector<1x20xf32>, vector<20x50xf32>, vector<1x50xf32> -> vector<1x50xf32>
    %822 = arith.addf %817, %821 : vector<1x50xf32>
    %823 = vector.extract_strided_slice %812 {offsets = [2, 0], sizes = [1, 20], strides = [1, 1]} : vector<4x20xf32> to vector<1x20xf32>
    %c10_246 = arith.constant 10 : index
    %c0_247 = arith.constant 0 : index
    %c0_248 = arith.constant 0 : index
    %824 = vector.load %arg6[%c10_246, %c0_247, %c0_248] : memref<16x20x50xf32, #tpu.memory_space<vmem>>, vector<1x20x50xf32>
    %825 = vector.shape_cast %824 : vector<1x20x50xf32> to vector<20x50xf32>
    %cst_249 = arith.constant dense<0.000000e+00> : vector<1x50xf32>
    %826 = tpu.matmul %823, %825, %cst_249 {dimension_numbers = #tpu.dot_dimension_numbers<[1], [0], [0], [1], [0, 0, 1, 1], [], []>} : vector<1x20xf32>, vector<20x50xf32>, vector<1x50xf32> -> vector<1x50xf32>
    %827 = arith.addf %822, %826 : vector<1x50xf32>
    %828 = vector.extract_strided_slice %812 {offsets = [3, 0], sizes = [1, 20], strides = [1, 1]} : vector<4x20xf32> to vector<1x20xf32>
    %c11_250 = arith.constant 11 : index
    %c0_251 = arith.constant 0 : index
    %c0_252 = arith.constant 0 : index
    %829 = vector.load %arg6[%c11_250, %c0_251, %c0_252] : memref<16x20x50xf32, #tpu.memory_space<vmem>>, vector<1x20x50xf32>
    %830 = vector.shape_cast %829 : vector<1x20x50xf32> to vector<20x50xf32>
    %cst_253 = arith.constant dense<0.000000e+00> : vector<1x50xf32>
    %831 = tpu.matmul %828, %830, %cst_253 {dimension_numbers = #tpu.dot_dimension_numbers<[1], [0], [0], [1], [0, 0, 1, 1], [], []>} : vector<1x20xf32>, vector<20x50xf32>, vector<1x50xf32> -> vector<1x50xf32>
    %832 = arith.addf %827, %831 : vector<1x50xf32>
    %833 = vector.extract_strided_slice %753 {offsets = [48, 0], sizes = [8, 20], strides = [1, 1]} : vector<64x20xf32> to vector<8x20xf32>
    %834 = vector.extract_strided_slice %753 {offsets = [56, 0], sizes = [8, 20], strides = [1, 1]} : vector<64x20xf32> to vector<8x20xf32>
    %835 = arith.maximumf %833, %834 : vector<8x20xf32>
    %cst_254 = arith.constant dense<0.000000e+00> : vector<4x20xf32>
    %836 = tpu.matmul %20, %835, %cst_254 {dimension_numbers = #tpu.dot_dimension_numbers<[1], [0], [0], [1], [0, 0, 1, 1], [], []>} : vector<4x8xf32>, vector<8x20xf32>, vector<4x20xf32> -> vector<4x20xf32>
    %cst_255 = arith.constant dense<0.000000e+00> : vector<4x20xf32>
    %837 = tpu.matmul %27, %835, %cst_255 {dimension_numbers = #tpu.dot_dimension_numbers<[1], [0], [0], [1], [0, 0, 1, 1], [], []>} : vector<4x8xf32>, vector<8x20xf32>, vector<4x20xf32> -> vector<4x20xf32>
    %838 = arith.maximumf %836, %837 : vector<4x20xf32>
    %839 = vector.extract_strided_slice %838 {offsets = [0, 0], sizes = [1, 20], strides = [1, 1]} : vector<4x20xf32> to vector<1x20xf32>
    %c12_256 = arith.constant 12 : index
    %c0_257 = arith.constant 0 : index
    %c0_258 = arith.constant 0 : index
    %840 = vector.load %arg6[%c12_256, %c0_257, %c0_258] : memref<16x20x50xf32, #tpu.memory_space<vmem>>, vector<1x20x50xf32>
    %841 = vector.shape_cast %840 : vector<1x20x50xf32> to vector<20x50xf32>
    %cst_259 = arith.constant dense<0.000000e+00> : vector<1x50xf32>
    %842 = tpu.matmul %839, %841, %cst_259 {dimension_numbers = #tpu.dot_dimension_numbers<[1], [0], [0], [1], [0, 0, 1, 1], [], []>} : vector<1x20xf32>, vector<20x50xf32>, vector<1x50xf32> -> vector<1x50xf32>
    %843 = arith.addf %832, %842 : vector<1x50xf32>
    %844 = vector.extract_strided_slice %838 {offsets = [1, 0], sizes = [1, 20], strides = [1, 1]} : vector<4x20xf32> to vector<1x20xf32>
    %c13_260 = arith.constant 13 : index
    %c0_261 = arith.constant 0 : index
    %c0_262 = arith.constant 0 : index
    %845 = vector.load %arg6[%c13_260, %c0_261, %c0_262] : memref<16x20x50xf32, #tpu.memory_space<vmem>>, vector<1x20x50xf32>
    %846 = vector.shape_cast %845 : vector<1x20x50xf32> to vector<20x50xf32>
    %cst_263 = arith.constant dense<0.000000e+00> : vector<1x50xf32>
    %847 = tpu.matmul %844, %846, %cst_263 {dimension_numbers = #tpu.dot_dimension_numbers<[1], [0], [0], [1], [0, 0, 1, 1], [], []>} : vector<1x20xf32>, vector<20x50xf32>, vector<1x50xf32> -> vector<1x50xf32>
    %848 = arith.addf %843, %847 : vector<1x50xf32>
    %849 = vector.extract_strided_slice %838 {offsets = [2, 0], sizes = [1, 20], strides = [1, 1]} : vector<4x20xf32> to vector<1x20xf32>
    %c14_264 = arith.constant 14 : index
    %c0_265 = arith.constant 0 : index
    %c0_266 = arith.constant 0 : index
    %850 = vector.load %arg6[%c14_264, %c0_265, %c0_266] : memref<16x20x50xf32, #tpu.memory_space<vmem>>, vector<1x20x50xf32>
    %851 = vector.shape_cast %850 : vector<1x20x50xf32> to vector<20x50xf32>
    %cst_267 = arith.constant dense<0.000000e+00> : vector<1x50xf32>
    %852 = tpu.matmul %849, %851, %cst_267 {dimension_numbers = #tpu.dot_dimension_numbers<[1], [0], [0], [1], [0, 0, 1, 1], [], []>} : vector<1x20xf32>, vector<20x50xf32>, vector<1x50xf32> -> vector<1x50xf32>
    %853 = arith.addf %848, %852 : vector<1x50xf32>
    %854 = vector.extract_strided_slice %838 {offsets = [3, 0], sizes = [1, 20], strides = [1, 1]} : vector<4x20xf32> to vector<1x20xf32>
    %c15_268 = arith.constant 15 : index
    %c0_269 = arith.constant 0 : index
    %c0_270 = arith.constant 0 : index
    %855 = vector.load %arg6[%c15_268, %c0_269, %c0_270] : memref<16x20x50xf32, #tpu.memory_space<vmem>>, vector<1x20x50xf32>
    %856 = vector.shape_cast %855 : vector<1x20x50xf32> to vector<20x50xf32>
    %cst_271 = arith.constant dense<0.000000e+00> : vector<1x50xf32>
    %857 = tpu.matmul %854, %856, %cst_271 {dimension_numbers = #tpu.dot_dimension_numbers<[1], [0], [0], [1], [0, 0, 1, 1], [], []>} : vector<1x20xf32>, vector<20x50xf32>, vector<1x50xf32> -> vector<1x50xf32>
    %858 = arith.addf %853, %857 : vector<1x50xf32>
    %cst_272 = arith.constant 0.000000e+00 : f32
    %859 = vector.broadcast %cst_272 : f32 to vector<1x50xf32>
    %860 = arith.maximumf %858, %859 : vector<1x50xf32>
    %c0_273 = arith.constant 0 : index
    %c0_274 = arith.constant 0 : index
    %861 = vector.load %arg8[%c0_273, %c0_274] : memref<50x10xf32, #tpu.memory_space<vmem>>, vector<50x10xf32>
    %cst_275 = arith.constant dense<0.000000e+00> : vector<1x10xf32>
    %862 = tpu.matmul %860, %861, %cst_275 {dimension_numbers = #tpu.dot_dimension_numbers<[1], [0], [0], [1], [0, 0, 1, 1], [], []>} : vector<1x50xf32>, vector<50x10xf32>, vector<1x10xf32> -> vector<1x10xf32>
    %c0_276 = arith.constant 0 : index
    %c0_277 = arith.constant 0 : index
    %863 = vector.load %arg9[%c0_276, %c0_277] : memref<1x10xf32, #tpu.memory_space<vmem>>, vector<1x10xf32>
    %864 = arith.addf %862, %863 : vector<1x10xf32>
    %cst_278 = arith.constant dense<0xFF800000> : vector<1xf32>
    %865 = vector.multi_reduction <maximumf>, %864, %cst_278 [1] : vector<1x10xf32> to vector<1xf32>
    %866 = vector.shape_cast %865 : vector<1xf32> to vector<1x1xf32>
    %867 = vector.broadcast %866 : vector<1x1xf32> to vector<1x10xf32>
    %868 = arith.subf %864, %867 : vector<1x10xf32>
    %869 = math.exp %868 : vector<1x10xf32>
    %cst_279 = arith.constant dense<0.000000e+00> : vector<1xf32>
    %870 = vector.multi_reduction <add>, %869, %cst_279 [1] : vector<1x10xf32> to vector<1xf32>
    %871 = vector.shape_cast %870 : vector<1xf32> to vector<1x1xf32>
    %872 = tpu.reciprocal %871 {approx = true} : vector<1x1xf32> -> vector<1x1xf32>
    %873 = vector.broadcast %872 : vector<1x1xf32> to vector<1x10xf32>
    %874 = arith.mulf %869, %873 : vector<1x10xf32>
    %c0_280 = arith.constant 0 : index
    %c0_281 = arith.constant 0 : index
    %c0_282 = arith.constant 0 : index
    %875 = vector.load %arg10[%c0_280, %c0_281, %c0_282] : memref<1x1x10xf32, #tpu.memory_space<vmem>>, vector<1x1x10xf32>
    %876 = vector.shape_cast %875 : vector<1x1x10xf32> to vector<1x10xf32>
    %877 = vector.shape_cast %874 : vector<1x10xf32> to vector<1x1x10xf32>
    tpu.vector_store %arg10[%c0_280, %c0_281, %c0_282], %877 {strides = array<i32>} : memref<1x1x10xf32, #tpu.memory_space<vmem>>, vector<1x1x10xf32>,
    return
  }
  func.func @transform_0(%arg0: i32) -> (i32, i32, i32) {
    %c0_i32 = arith.constant 0 : i32
    %c0_i32_0 = arith.constant 0 : i32
    %c0_i32_1 = arith.constant 0 : i32
    return %arg0, %c0_i32, %c0_i32_0 : i32, i32, i32
  }
  func.func @transform_1(%arg0: i32) -> (i32, i32) {
    %c0_i32 = arith.constant 0 : i32
    %c0_i32_0 = arith.constant 0 : i32
    %c0_i32_1 = arith.constant 0 : i32
    return %c0_i32, %c0_i32_0 : i32, i32
  }
  func.func @transform_2(%arg0: i32) -> (i32, i32) {
    %c0_i32 = arith.constant 0 : i32
    %c0_i32_0 = arith.constant 0 : i32
    %c0_i32_1 = arith.constant 0 : i32
    return %c0_i32, %c0_i32_0 : i32, i32
  }
  func.func @transform_3(%arg0: i32) -> (i32, i32, i32) {
    %c0_i32 = arith.constant 0 : i32
    %c0_i32_0 = arith.constant 0 : i32
    %c0_i32_1 = arith.constant 0 : i32
    %c0_i32_2 = arith.constant 0 : i32
    return %c0_i32, %c0_i32_0, %c0_i32_1 : i32, i32, i32
  }
  func.func @transform_4(%arg0: i32) -> (i32, i32) {
    %c0_i32 = arith.constant 0 : i32
    %c0_i32_0 = arith.constant 0 : i32
    %c0_i32_1 = arith.constant 0 : i32
    return %c0_i32, %c0_i32_0 : i32, i32
  }
  func.func @transform_5(%arg0: i32) -> (i32, i32, i32) {
    %c0_i32 = arith.constant 0 : i32
    %c0_i32_0 = arith.constant 0 : i32
    %c0_i32_1 = arith.constant 0 : i32
    %c0_i32_2 = arith.constant 0 : i32
    return %c0_i32, %c0_i32_0, %c0_i32_1 : i32, i32, i32
  }
  func.func @transform_6(%arg0: i32) -> (i32, i32) {
    %c0_i32 = arith.constant 0 : i32
    %c0_i32_0 = arith.constant 0 : i32
    %c0_i32_1 = arith.constant 0 : i32
    return %c0_i32, %c0_i32_0 : i32, i32
  }
  func.func @transform_7(%arg0: i32) -> (i32, i32) {
    %c0_i32 = arith.constant 0 : i32
    %c0_i32_0 = arith.constant 0 : i32
    %c0_i32_1 = arith.constant 0 : i32
    return %c0_i32, %c0_i32_0 : i32, i32
  }
  func.func @transform_8(%arg0: i32) -> (i32, i32) {
    %c0_i32 = arith.constant 0 : i32
    %c0_i32_0 = arith.constant 0 : i32
    %c0_i32_1 = arith.constant 0 : i32
    return %c0_i32, %c0_i32_0 : i32, i32
  }
  func.func @transform_9(%arg0: i32) -> (i32, i32, i32) {
    %c0_i32 = arith.constant 0 : i32
    %c0_i32_0 = arith.constant 0 : i32
    %c0_i32_1 = arith.constant 0 : i32
    return %arg0, %c0_i32, %c0_i32_0 : i32, i32, i32
  }
}

</mosaic_0001>

<llo_original>
// kernel: cnn_forward.1
$region0: #{cnn_forward.1}
  #allocation0 [shape = 'u32[]', space=smem, size = 0x4, offset = 0x4, fixed_abs, tag = 'smem constant byte address 0x4 - core index']
  #allocation1 [shape = 'u32[72,128]{1,0:T(1,128)}', space=vmem, size = 0x9000, scoped, tag = 'internal scratch']
  #allocation2 [shape = 'f32[12,12,10]{2,1,0:T(8,128)}', space=vmem, size = 0x18000, scoped, tag = 'scratch operand']
  %s0 = inlined_call_operand.vmem [shape: f32[2,576,25], index: 0, kind: input, shape index: {}]
  %s1 = inlined_call_operand.vmem [shape: f32[25,10], index: 1, kind: input, shape index: {}]
  %s2 = inlined_call_operand.vmem [shape: f32[1,10], index: 2, kind: input, shape index: {}]
  %s3 = inlined_call_operand.vmem [shape: f32[25,10,20], index: 3, kind: input, shape index: {}]
  %s4 = inlined_call_operand.vmem [shape: f32[1,20], index: 4, kind: input, shape index: {}]
  %s5 = inlined_call_operand.vmem [shape: f32[16,20,50], index: 5, kind: input, shape index: {}]
  %s6 = inlined_call_operand.vmem [shape: f32[1,50], index: 6, kind: input, shape index: {}]
  %s7 = inlined_call_operand.vmem [shape: f32[50,10], index: 7, kind: input, shape index: {}]
  %s8 = inlined_call_operand.vmem [shape: f32[1,10], index: 8, kind: input, shape index: {}]
  %s9 = inlined_call_operand.hbm [shape: f32[2,1,10], index: 9, kind: output, shape index: {}]
  %s10 = sld [smem:[#allocation0]]
  $region69: #{cnn_forward.1} parent=0
    _
  %s12 = ssub.s32 1, %s10
  %s13 = scalar_select 0, %s12, %s10
  $region1: #{cnn_forward.1} parent=0
    #allocation3 [shape = 'u8[1024]{0}', space=vmem, size = 0x400, scoped, tag = 'output window, operand 0']
    #allocation4 [shape = 's32[2]{0}', space=sflag, size = 0x8, scoped, tag = 'scoped memory for cnn_forward.1']
    %14 = vsyncpa [#allocation4], 0
    %s15 = scalar_lea.sflag [#allocation4], 1
    %16 = vsyncpa %s15, 0
    loop: start=0, step=1, limit=4
    $region2: #{cnn_forward.1} parent=1 // loop_pre_header
      _
    $region3: #{cnn_forward.1} parent=1 // loop_header
      %s18 = sphi 0, %s22
      %p19 = scmp.ge.s32.totalorder %s18, 4
      %s28 = sphi 0, %s30
      %s31 = sphi 0, %s28
      %s32 = sphi 0, %s31
      %s48 = sphi 0, %s32
      %s52 = sphi 0, %s52
      %s54 = sphi 0, %s52
      %s55 = sphi 0, %s54
      %s69 = sphi 0, %s55
      %s73 = sphi 0, %s73
      %s75 = sphi 0, %s73
      %s76 = sphi 0, %s75
      %s90 = sphi 0, %s76
      %s94 = sphi 0, %s94
      %s96 = sphi 0, %s94
      %s97 = sphi 0, %s96
      %s111 = sphi 0, %s97
      %s115 = sphi 0, %s115
      %s117 = sphi 0, %s115
      %s118 = sphi 0, %s117
      %s132 = sphi 0, %s118
      %s136 = sphi 0, %s136
      %s138 = sphi 0, %s136
      %s139 = sphi 0, %s138
      %s153 = sphi 0, %s139
      %s157 = sphi 0, %s157
      %s159 = sphi 0, %s157
      %s160 = sphi 0, %s159
      %s174 = sphi 0, %s160
      %s178 = sphi 0, %s178
      %s180 = sphi 0, %s178
      %s181 = sphi 0, %s180
      %s195 = sphi 0, %s181
      %s199 = sphi 0, %s199
      %s201 = sphi 0, %s199
      %s202 = sphi 0, %s201
      %s216 = sphi 0, %s202
      %s222 = sphi 0, %s224
      %s225 = sphi 0, %s222
      %s226 = sphi 0, %s225
      %s242 = sphi 0, %s226
    $region4: #{cnn_forward.1} parent=1 // loop_header_branch
      %21 = sbr.rel (%p19) target = $region8
    $region5: #{cnn_forward.1} parent=1 // loop_body
      %s23 = ssub.s32 %s18, 1
      %s24 = ssub.s32 %s18, 2
      %s25 = sadd.s32 %s18, 1
      %s26 = ssub.s32 %s18, %s25
      %p27 = scmp.eq.s32.totalorder %s26, 0
      %s29 = sadd.s32 %s28, 1
      %s30 = scalar_select %p27, %s28, %s29
      %p33 = pneg %p27
      %p34 = scmp.eq.s32.totalorder %s18, 1
      %p35 = por %p33, %p34
      %p36 = scmp.ne.s32.totalorder %s28, %s31
      %p37 = scmp.eq.s32.totalorder %s18, 0
      %p38 = por %p36, %p37
      %p39 = scmp.ne.s32.totalorder %s28, %s31
      %p40 = scmp.eq.s32.totalorder %s23, 1
      %p41 = por %p39, %p40
      %p42 = scmp.ne.s32.totalorder %s31, %s32
      %p43 = scmp.eq.s32.totalorder %s23, 0
      %p44 = por %p42, %p43
      %p45 = scmp.ne.s32.totalorder %s31, %s32
      %p46 = scmp.eq.s32.totalorder %s24, 1
      %p47 = por %p45, %p46
      %p49 = scmp.ne.s32.totalorder %s32, %s48
      %p50 = scmp.eq.s32.totalorder %s24, 0
      %p51 = por %p49, %p50
      %s53 = sadd.s32 %s52, 1
      %p56 = scmp.eq.s32.totalorder %s18, 1
      %p57 = scmp.ne.s32.totalorder %s52, %s54
      %p58 = scmp.eq.s32.totalorder %s18, 0
      %p59 = por %p57, %p58
      %p60 = scmp.ne.s32.totalorder %s52, %s54
      %p61 = scmp.eq.s32.totalorder %s23, 1
      %p62 = por %p60, %p61
      %p63 = scmp.ne.s32.totalorder %s54, %s55
      %p64 = scmp.eq.s32.totalorder %s23, 0
      %p65 = por %p63, %p64
      %p66 = scmp.ne.s32.totalorder %s54, %s55
      %p67 = scmp.eq.s32.totalorder %s24, 1
      %p68 = por %p66, %p67
      %p70 = scmp.ne.s32.totalorder %s55, %s69
      %p71 = scmp.eq.s32.totalorder %s24, 0
      %p72 = por %p70, %p71
      %s74 = sadd.s32 %s73, 1
      %p77 = scmp.eq.s32.totalorder %s18, 1
      %p78 = scmp.ne.s32.totalorder %s73, %s75
      %p79 = scmp.eq.s32.totalorder %s18, 0
      %p80 = por %p78, %p79
      %p81 = scmp.ne.s32.totalorder %s73, %s75
      %p82 = scmp.eq.s32.totalorder %s23, 1
      %p83 = por %p81, %p82
      %p84 = scmp.ne.s32.totalorder %s75, %s76
      %p85 = scmp.eq.s32.totalorder %s23, 0
      %p86 = por %p84, %p85
      %p87 = scmp.ne.s32.totalorder %s75, %s76
      %p88 = scmp.eq.s32.totalorder %s24, 1
      %p89 = por %p87, %p88
      %p91 = scmp.ne.s32.totalorder %s76, %s90
      %p92 = scmp.eq.s32.totalorder %s24, 0
      %p93 = por %p91, %p92
      %s95 = sadd.s32 %s94, 1
      %p98 = scmp.eq.s32.totalorder %s18, 1
      %p99 = scmp.ne.s32.totalorder %s94, %s96
      %p100 = scmp.eq.s32.totalorder %s18, 0
      %p101 = por %p99, %p100
      %p102 = scmp.ne.s32.totalorder %s94, %s96
      %p103 = scmp.eq.s32.totalorder %s23, 1
      %p104 = por %p102, %p103
      %p105 = scmp.ne.s32.totalorder %s96, %s97
      %p106 = scmp.eq.s32.totalorder %s23, 0
      %p107 = por %p105, %p106
      %p108 = scmp.ne.s32.totalorder %s96, %s97
      %p109 = scmp.eq.s32.totalorder %s24, 1
      %p110 = por %p108, %p109
      %p112 = scmp.ne.s32.totalorder %s97, %s111
      %p113 = scmp.eq.s32.totalorder %s24, 0
      %p114 = por %p112, %p113
      %s116 = sadd.s32 %s115, 1
      %p119 = scmp.eq.s32.totalorder %s18, 1
      %p120 = scmp.ne.s32.totalorder %s115, %s117
      %p121 = scmp.eq.s32.totalorder %s18, 0
      %p122 = por %p120, %p121
      %p123 = scmp.ne.s32.totalorder %s115, %s117
      %p124 = scmp.eq.s32.totalorder %s23, 1
      %p125 = por %p123, %p124
      %p126 = scmp.ne.s32.totalorder %s117, %s118
      %p127 = scmp.eq.s32.totalorder %s23, 0
      %p128 = por %p126, %p127
      %p129 = scmp.ne.s32.totalorder %s117, %s118
      %p130 = scmp.eq.s32.totalorder %s24, 1
      %p131 = por %p129, %p130
      %p133 = scmp.ne.s32.totalorder %s118, %s132
      %p134 = scmp.eq.s32.totalorder %s24, 0
      %p135 = por %p133, %p134
      %s137 = sadd.s32 %s136, 1
      %p140 = scmp.eq.s32.totalorder %s18, 1
      %p141 = scmp.ne.s32.totalorder %s136, %s138
      %p142 = scmp.eq.s32.totalorder %s18, 0
      %p143 = por %p141, %p142
      %p144 = scmp.ne.s32.totalorder %s136, %s138
      %p145 = scmp.eq.s32.totalorder %s23, 1
      %p146 = por %p144, %p145
      %p147 = scmp.ne.s32.totalorder %s138, %s139
      %p148 = scmp.eq.s32.totalorder %s23, 0
      %p149 = por %p147, %p148
      %p150 = scmp.ne.s32.totalorder %s138, %s139
      %p151 = scmp.eq.s32.totalorder %s24, 1
      %p152 = por %p150, %p151
      %p154 = scmp.ne.s32.totalorder %s139, %s153
      %p155 = scmp.eq.s32.totalorder %s24, 0
      %p156 = por %p154, %p155
      %s158 = sadd.s32 %s157, 1
      %p161 = scmp.eq.s32.totalorder %s18, 1
      %p162 = scmp.ne.s32.totalorder %s157, %s159
      %p163 = scmp.eq.s32.totalorder %s18, 0
      %p164 = por %p162, %p163
      %p165 = scmp.ne.s32.totalorder %s157, %s159
      %p166 = scmp.eq.s32.totalorder %s23, 1
      %p167 = por %p165, %p166
      %p168 = scmp.ne.s32.totalorder %s159, %s160
      %p169 = scmp.eq.s32.totalorder %s23, 0
      %p170 = por %p168, %p169
      %p171 = scmp.ne.s32.totalorder %s159, %s160
      %p172 = scmp.eq.s32.totalorder %s24, 1
      %p173 = por %p171, %p172
      %p175 = scmp.ne.s32.totalorder %s160, %s174
      %p176 = scmp.eq.s32.totalorder %s24, 0
      %p177 = por %p175, %p176
      %s179 = sadd.s32 %s178, 1
      %p182 = scmp.eq.s32.totalorder %s18, 1
      %p183 = scmp.ne.s32.totalorder %s178, %s180
      %p184 = scmp.eq.s32.totalorder %s18, 0
      %p185 = por %p183, %p184
      %p186 = scmp.ne.s32.totalorder %s178, %s180
      %p187 = scmp.eq.s32.totalorder %s23, 1
      %p188 = por %p186, %p187
      %p189 = scmp.ne.s32.totalorder %s180, %s181
      %p190 = scmp.eq.s32.totalorder %s23, 0
      %p191 = por %p189, %p190
      %p192 = scmp.ne.s32.totalorder %s180, %s181
      %p193 = scmp.eq.s32.totalorder %s24, 1
      %p194 = por %p192, %p193
      %p196 = scmp.ne.s32.totalorder %s181, %s195
      %p197 = scmp.eq.s32.totalorder %s24, 0
      %p198 = por %p196, %p197
      %s200 = sadd.s32 %s199, 1
      %p203 = scmp.eq.s32.totalorder %s18, 1
      %p204 = scmp.ne.s32.totalorder %s199, %s201
      %p205 = scmp.eq.s32.totalorder %s18, 0
      %p206 = por %p204, %p205
      %p207 = scmp.ne.s32.totalorder %s199, %s201
      %p208 = scmp.eq.s32.totalorder %s23, 1
      %p209 = por %p207, %p208
      %p210 = scmp.ne.s32.totalorder %s201, %s202
      %p211 = scmp.eq.s32.totalorder %s23, 0
      %p212 = por %p210, %p211
      %p213 = scmp.ne.s32.totalorder %s201, %s202
      %p214 = scmp.eq.s32.totalorder %s24, 1
      %p215 = por %p213, %p214
      %p217 = scmp.ne.s32.totalorder %s202, %s216
      %p218 = scmp.eq.s32.totalorder %s24, 0
      %p219 = por %p217, %p218
      %s220 = ssub.s32 %s18, %s25
      %p221 = scmp.eq.s32.totalorder %s220, 0
      %s223 = sadd.s32 %s222, 1
      %s224 = scalar_select %p221, %s222, %s223
      %p227 = pneg %p221
      %p228 = scmp.eq.s32.totalorder %s18, 1
      %p229 = por %p227, %p228
      %p230 = scmp.ne.s32.totalorder %s222, %s225
      %p231 = scmp.eq.s32.totalorder %s18, 0
      %p232 = por %p230, %p231
      %p233 = scmp.ne.s32.totalorder %s222, %s225
      %p234 = scmp.eq.s32.totalorder %s23, 1
      %p235 = por %p233, %p234
      %p236 = scmp.ne.s32.totalorder %s225, %s226
      %p237 = scmp.eq.s32.totalorder %s23, 0
      %p238 = por %p236, %p237
      %p239 = scmp.ne.s32.totalorder %s225, %s226
      %p240 = scmp.eq.s32.totalorder %s24, 1
      %p241 = por %p239, %p240
      %p243 = scmp.ne.s32.totalorder %s226, %s242
      %p244 = scmp.eq.s32.totalorder %s24, 0
      %p245 = por %p243, %p244
      %p246 = scmp.le.s32.totalorder 1, %s18
      %p247 = scmp.lt.s32.totalorder %s18, 3
      %p248 = pnand %p246, %p247
      %p249 = pneg %p248
      // Predicated region
      $region9: #{cnn_forward.1} parent=5 // pred_check
        _
      $region10: #{cnn_forward.1} parent=5 // pred_check_branch
        %251 = sbr.rel (%p248) target = $region12
      $region11: #{cnn_forward.1} parent=5 // pred_region
        %s252 = ssub.s32 %s18, 1
        // Predicated region
        $region13: #{cnn_forward.1} parent=11 // pred_check
          %p253 = pneg %p65
        $region14: #{cnn_forward.1} parent=11 // pred_check_branch
          %255 = sbr.rel (%p253) target = $region16
        $region15: #{cnn_forward.1} parent=11 // pred_region
          _
        $region16: #{cnn_forward.1} parent=11 // pred_fallthru
          _
        // Predicated region
        $region17: #{cnn_forward.1} parent=11 // pred_check
          %p256 = pneg %p86
        $region18: #{cnn_forward.1} parent=11 // pred_check_branch
          %258 = sbr.rel (%p256) target = $region20
        $region19: #{cnn_forward.1} parent=11 // pred_region
          _
        $region20: #{cnn_forward.1} parent=11 // pred_fallthru
          _
        // Predicated region
        $region21: #{cnn_forward.1} parent=11 // pred_check
          %p259 = pneg %p107
        $region22: #{cnn_forward.1} parent=11 // pred_check_branch
          %261 = sbr.rel (%p259) target = $region24
        $region23: #{cnn_forward.1} parent=11 // pred_region
          _
        $region24: #{cnn_forward.1} parent=11 // pred_fallthru
          _
        // Predicated region
        $region25: #{cnn_forward.1} parent=11 // pred_check
          %p262 = pneg %p128
        $region26: #{cnn_forward.1} parent=11 // pred_check_branch
          %264 = sbr.rel (%p262) target = $region28
        $region27: #{cnn_forward.1} parent=11 // pred_region
          _
        $region28: #{cnn_forward.1} parent=11 // pred_fallthru
          _
        // Predicated region
        $region29: #{cnn_forward.1} parent=11 // pred_check
          %p265 = pneg %p149
        $region30: #{cnn_forward.1} parent=11 // pred_check_branch
          %267 = sbr.rel (%p265) target = $region32
        $region31: #{cnn_forward.1} parent=11 // pred_region
          _
        $region32: #{cnn_forward.1} parent=11 // pred_fallthru
          _
        // Predicated region
        $region33: #{cnn_forward.1} parent=11 // pred_check
          %p268 = pneg %p170
        $region34: #{cnn_forward.1} parent=11 // pred_check_branch
          %270 = sbr.rel (%p268) target = $region36
        $region35: #{cnn_forward.1} parent=11 // pred_region
          _
        $region36: #{cnn_forward.1} parent=11 // pred_fallthru
          _
        // Predicated region
        $region37: #{cnn_forward.1} parent=11 // pred_check
          %p271 = pneg %p191
        $region38: #{cnn_forward.1} parent=11 // pred_check_branch
          %273 = sbr.rel (%p271) target = $region40
        $region39: #{cnn_forward.1} parent=11 // pred_region
          _
        $region40: #{cnn_forward.1} parent=11 // pred_fallthru
          _
        // Predicated region
        $region41: #{cnn_forward.1} parent=11 // pred_check
          %p274 = pneg %p212
        $region42: #{cnn_forward.1} parent=11 // pred_check_branch
          %276 = sbr.rel (%p274) target = $region44
        $region43: #{cnn_forward.1} parent=11 // pred_region
          _
        $region44: #{cnn_forward.1} parent=11 // pred_fallthru
          _
      $region12: #{cnn_forward.1} parent=5 // pred_fallthru
        _
      %p277 = scmp.lt.s32.totalorder %s18, 2
      // Predicated region
      $region45: #{cnn_forward.1} parent=5 // pred_check
        %p278 = pneg %p277
      $region46: #{cnn_forward.1} parent=5 // pred_check_branch
        %280 = sbr.rel (%p278) target = $region48
      $region47: #{cnn_forward.1} parent=5 // pred_region
        // Predicated region
        $region49: #{cnn_forward.1} parent=47 // pred_check
          %p281 = pneg %p38
        $region50: #{cnn_forward.1} parent=47 // pred_check_branch
          %283 = sbr.rel (%p281) target = $region52
        $region51: #{cnn_forward.1} parent=47 // pred_region
          %p284 = scmp.lt.s32.totalorder %s18, 1
          %s285 = scalar_select %p284, %s18, 1
          %s286 = smul.addr %s285, 72
          %s287 = smul.addr %s286, 8
          %s288 = scalar_lea.vmem %s0, %s287
        $region52: #{cnn_forward.1} parent=47 // pred_fallthru
          _
      $region48: #{cnn_forward.1} parent=5 // pred_fallthru
        _
      %p289 = scmp.le.s32.totalorder 1, %s18
      %p290 = scmp.lt.s32.totalorder %s18, 3
      %p291 = pnand %p289, %p290
      %p292 = pneg %p291
      // Predicated region
      $region53: #{cnn_forward.1} parent=5 // pred_check
        _
      $region54: #{cnn_forward.1} parent=5 // pred_check_branch
        %294 = sbr.rel (%p291) target = $region56
      $region55: #{cnn_forward.1} parent=5 // pred_region
        %s295 = ssub.s32 %s18, 1
        %p296 = scmp.lt.s32.totalorder %s23, 1
        %s297 = scalar_select %p296, %s23, 1
        %s298 = smul.addr %s297, 72
        %s299 = smul.addr %s298, 8
        %s300 = scalar_lea.vmem %s0, %s299
        %p301 = pneg %p44
        %p302 = pneg %p41
        %p303 = pneg %p65
        %p304 = pneg %p62
        %p305 = pneg %p86
        %p306 = pneg %p83
        %p307 = pneg %p107
        %p308 = pneg %p104
        %p309 = pneg %p128
        %p310 = pneg %p125
        %p311 = pneg %p149
        %p312 = pneg %p146
        %p313 = pneg %p170
        %p314 = pneg %p167
        %p315 = pneg %p191
        %p316 = pneg %p188
        %p317 = pneg %p212
        %p318 = pneg %p209
        %p319 = pneg %p238
        %p320 = pneg %p235
        %s321 = sand.u32 %s225, 1
        %s322 = scalar_lea.sflag [#allocation4], %s321
        %s323 = sand.u32 %s225, 1
        %s324 = scalar_lea.vmem [#allocation3], %s323
        %p325 = scmp.lt.s32.totalorder %s23, 1
        %s326 = scalar_select %p325, %s23, 1
        %s327 = smul.addr %s326, 72
        %s328 = smul.addr %s327, 8
        %s329 = scalar_lea.vmem %s0, %s328
        %v330 = vlaneseq
        %v331 = vshrl.u32 %v330, 7
        %v332 = vadd.s32 %v331, 8
        %v333 = vlaneseq
        %v334 = vand.u32 %v333, 127
        %v335 = vmul.u32 %v331, 2
        %v336 = vmul.u32 %v332, 2
        %vm337 = vcmp.eq.s32.totalorder %v334, %v335
        %vm338 = vcmp.eq.s32.totalorder %v334, %v336
        %v339 = vsel %vm337, 1, 0
        %v340 = vsel %vm338, 1, 0
        %v341 = vcvt.s32.f32 %v339
        %v342 = vcvt.s32.f32 %v340
        %v343 = vadd.s32 %v335, 1
        %v344 = vadd.s32 %v336, 1
        %vm345 = vcmp.eq.s32.totalorder %v334, %v343
        %vm346 = vcmp.eq.s32.totalorder %v334, %v344
        %v347 = vsel %vm345, 1, 0
        %v348 = vsel %vm346, 1, 0
        %v349 = vcvt.s32.f32 %v347
        %v350 = vcvt.s32.f32 %v348
        %v351 = vld [vmem:[%s1] sm:$0xff]
        %v352 = vld [vmem:[%s1 + $0x8] sm:$0xff]
        %v353 = vld [vmem:[%s1 + $0x10] sm:$0xff]
        %v354 = vld [vmem:[%s1 + $0x18] sm:$0x1]
        %v355 = vld [vmem:[%s2] sm:$0x1]
        %v356 = vld [vmem:[%s329] sm:$0xff]
        %v357 = vld [vmem:[%s329 + $0x8] sm:$0xff]
        %v358 = vld [vmem:[%s329 + $0x10] sm:$0xff]
        %v359 = vld [vmem:[%s329 + $0x18] sm:$0xff]
        %v360 = vld [vmem:[%s329 + $0x20] sm:$0xff]
        %v361 = vld [vmem:[%s329 + $0x28] sm:$0xff]
        %v363 = vperm.slane %v355, 0
        %vm365 = vcmask 203776
        %v367 = vsel %vm365, %v356, 0
        %v370 = vsel %vm365, %v357, 0
        %v373 = vsel %vm365, %v358, 0
        %v376 = vsel %vm365, %v359, 0
        %v379 = vsel %vm365, %v360, 0
        %v382 = vsel %vm365, %v361, 0
        %vm384 = vcmask 1040384
        %v386 = vsel %vm384, %v354, 0
        %388 = vmatpush.msra.mxu0 0.0
        %389 = vmatpush.msra.mxu0 0.0
        %390 = vmatpush.msra.mxu0 0.0
        %391 = vmatpush.msra.mxu0 0.0
        %392 = vmatpush.msra.mxu0 0.0
        %393 = vmatpush.msra.mxu0 0.0
        %394 = vmatpush.msra.mxu0 0.0
        %395 = vmatpush.msra.mxu0 0.0
        %396 = vmatpush.msra.mxu0 0.0
        %397 = vmatpush.msra.mxu0 0.0
        %398 = vmatpush.msra.mxu0 0.0
        %399 = vmatpush.msra.mxu0 0.0
        %400 = vmatpush.msra.mxu0 %v386
        %401 = vmatpush.msra.mxu0 %v353
        %402 = vmatpush.msra.mxu0 %v352
        %403 = vmatpush.msra.mxu0 %v351
        %404 = vmatmul.f32.gmra.mxu0 %v367
        %v405 = vpop.f32.mrf.mxu0
        %v406 = vadd.f32 %v363, %v405
        %407 = vmatmul.f32.gmra.mxu0 %v370
        %v408 = vpop.f32.mrf.mxu0
        %v409 = vadd.f32 %v363, %v408
        %410 = vmatmul.f32.gmra.mxu0 %v373
        %v411 = vpop.f32.mrf.mxu0
        %v412 = vadd.f32 %v363, %v411
        %413 = vmatmul.f32.gmra.mxu0 %v376
        %v414 = vpop.f32.mrf.mxu0
        %v415 = vadd.f32 %v363, %v414
        %416 = vmatmul.f32.gmra.mxu0 %v379
        %v417 = vpop.f32.mrf.mxu0
        %v418 = vadd.f32 %v363, %v417
        %419 = vmatmul.f32.gmra.mxu0 %v382
        %v420 = vpop.f32.mrf.mxu0
        %v421 = vadd.f32 %v363, %v420
        %422 = vdwg.mxu0
        %v423 = vmax.f32 %v406, 0.0
        %v424 = vmax.f32 %v409, 0.0
        %v425 = vmax.f32 %v412, 0.0
        %v426 = vmax.f32 %v415, 0.0
        %v427 = vmax.f32 %v418, 0.0
        %v428 = vmax.f32 %v421, 0.0
        %v429 = vmax.f32 %v423, %v426
        %v430 = vmax.f32 %v424, %v427
        %v431 = vmax.f32 %v425, %v428
        %vm432 = vcmask 195584
        %v434 = vsel %vm432, %v341, 0
        %v437 = vsel %vm432, %v342, 0
        %439 = vmatpush.msra.mxu0 0.0
        %440 = vmatpush.msra.mxu0 0.0
        %441 = vmatpush.msra.mxu0 0.0
        %442 = vmatpush.msra.mxu0 0.0
        %443 = vmatpush.msra.mxu0 0.0
        %444 = vmatpush.msra.mxu0 0.0
        %445 = vmatpush.msra.mxu0 0.0
        %446 = vmatpush.msra.mxu0 0.0
        %447 = vmatpush.msra.mxu0 0.0
        %448 = vmatpush.msra.mxu0 0.0
        %449 = vmatpush.msra.mxu0 0.0
        %450 = vmatpush.msra.mxu0 0.0
        %451 = vmatpush.msra.mxu0 0.0
        %452 = vmatpush.msra.mxu0 %v431
        %453 = vmatpush.msra.mxu0 %v430
        %454 = vmatpush.msra.mxu0 %v429
        %455 = vmatmul.f32.gmra.mxu0 %v434
        %v456 = vpop.f32.mrf.mxu0
        %v457 = vadd.f32 0.0, %v456
        %458 = vmatmul.f32.gmra.mxu0 %v437
        %v459 = vpop.f32.mrf.mxu0
        %v460 = vadd.f32 0.0, %v459
        %461 = vdwg.mxu0
        %v463 = vsel %vm432, %v349, 0
        %v466 = vsel %vm432, %v350, 0
        %468 = vmatpush.msra.mxu0 0.0
        %469 = vmatpush.msra.mxu0 0.0
        %470 = vmatpush.msra.mxu0 0.0
        %471 = vmatpush.msra.mxu0 0.0
        %472 = vmatpush.msra.mxu0 0.0
        %473 = vmatpush.msra.mxu0 0.0
        %474 = vmatpush.msra.mxu0 0.0
        %475 = vmatpush.msra.mxu0 0.0
        %476 = vmatpush.msra.mxu0 0.0
        %477 = vmatpush.msra.mxu0 0.0
        %478 = vmatpush.msra.mxu0 0.0
        %479 = vmatpush.msra.mxu0 0.0
        %480 = vmatpush.msra.mxu0 0.0
        %481 = vmatpush.msra.mxu0 %v431
        %482 = vmatpush.msra.mxu0 %v430
        %483 = vmatpush.msra.mxu0 %v429
        %484 = vmatmul.f32.gmra.mxu0 %v463
        %v485 = vpop.f32.mrf.mxu0
        %v486 = vadd.f32 0.0, %v485
        %487 = vmatmul.f32.gmra.mxu0 %v466
        %v488 = vpop.f32.mrf.mxu0
        %v489 = vadd.f32 0.0, %v488
        %490 = vdwg.mxu0
        %v491 = vmax.f32 %v457, %v486
        %v492 = vmax.f32 %v460, %v489
        %vm493 = vcmask 80896
        %494 = vst.msk [vmem:[#allocation2] sm:$0xff] %vm493, %v491
        %vm495 = vcmask 76800
        %496 = vst.msk [vmem:[#allocation2 + $0x8] sm:$0xf] %vm495, %v492
        %v497 = vld [vmem:[%s329 + $0x30] sm:$0xff]
        %v498 = vld [vmem:[%s329 + $0x38] sm:$0xff]
        %v499 = vld [vmem:[%s329 + $0x40] sm:$0xff]
        %v500 = vld [vmem:[%s329 + $0x48] sm:$0xff]
        %v501 = vld [vmem:[%s329 + $0x50] sm:$0xff]
        %v502 = vld [vmem:[%s329 + $0x58] sm:$0xff]
        %v504 = vsel %vm365, %v497, 0
        %v507 = vsel %vm365, %v498, 0
        %v510 = vsel %vm365, %v499, 0
        %v513 = vsel %vm365, %v500, 0
        %v516 = vsel %vm365, %v501, 0
        %v519 = vsel %vm365, %v502, 0
        %521 = vmatpush.msra.mxu0 0.0
        %522 = vmatpush.msra.mxu0 0.0
        %523 = vmatpush.msra.mxu0 0.0
        %524 = vmatpush.msra.mxu0 0.0
        %525 = vmatpush.msra.mxu0 0.0
        %526 = vmatpush.msra.mxu0 0.0
        %527 = vmatpush.msra.mxu0 0.0
        %528 = vmatpush.msra.mxu0 0.0
        %529 = vmatpush.msra.mxu0 0.0
        %530 = vmatpush.msra.mxu0 0.0
        %531 = vmatpush.msra.mxu0 0.0
        %532 = vmatpush.msra.mxu0 0.0
        %533 = vmatpush.msra.mxu0 %v386
        %534 = vmatpush.msra.mxu0 %v353
        %535 = vmatpush.msra.mxu0 %v352
        %536 = vmatpush.msra.mxu0 %v351
        %537 = vmatmul.f32.gmra.mxu0 %v504
        %v538 = vpop.f32.mrf.mxu0
        %v539 = vadd.f32 %v363, %v538
        %540 = vmatmul.f32.gmra.mxu0 %v507
        %v541 = vpop.f32.mrf.mxu0
        %v542 = vadd.f32 %v363, %v541
        %543 = vmatmul.f32.gmra.mxu0 %v510
        %v544 = vpop.f32.mrf.mxu0
        %v545 = vadd.f32 %v363, %v544
        %546 = vmatmul.f32.gmra.mxu0 %v513
        %v547 = vpop.f32.mrf.mxu0
        %v548 = vadd.f32 %v363, %v547
        %549 = vmatmul.f32.gmra.mxu0 %v516
        %v550 = vpop.f32.mrf.mxu0
        %v551 = vadd.f32 %v363, %v550
        %552 = vmatmul.f32.gmra.mxu0 %v519
        %v553 = vpop.f32.mrf.mxu0
        %v554 = vadd.f32 %v363, %v553
        %555 = vdwg.mxu0
        %v556 = vmax.f32 %v539, 0.0
        %v557 = vmax.f32 %v542, 0.0
        %v558 = vmax.f32 %v545, 0.0
        %v559 = vmax.f32 %v548, 0.0
        %v560 = vmax.f32 %v551, 0.0
        %v561 = vmax.f32 %v554, 0.0
        %v562 = vmax.f32 %v556, %v559
        %v563 = vmax.f32 %v557, %v560
        %v564 = vmax.f32 %v558, %v561
        %565 = vmatpush.msra.mxu0 0.0
        %566 = vmatpush.msra.mxu0 0.0
        %567 = vmatpush.msra.mxu0 0.0
        %568 = vmatpush.msra.mxu0 0.0
        %569 = vmatpush.msra.mxu0 0.0
        %570 = vmatpush.msra.mxu0 0.0
        %571 = vmatpush.msra.mxu0 0.0
        %572 = vmatpush.msra.mxu0 0.0
        %573 = vmatpush.msra.mxu0 0.0
        %574 = vmatpush.msra.mxu0 0.0
        %575 = vmatpush.msra.mxu0 0.0
        %576 = vmatpush.msra.mxu0 0.0
        %577 = vmatpush.msra.mxu0 0.0
        %578 = vmatpush.msra.mxu0 %v564
        %579 = vmatpush.msra.mxu0 %v563
        %580 = vmatpush.msra.mxu0 %v562
        %581 = vmatmul.f32.gmra.mxu0 %v434
        %v582 = vpop.f32.mrf.mxu0
        %v583 = vadd.f32 0.0, %v582
        %584 = vmatmul.f32.gmra.mxu0 %v437
        %v585 = vpop.f32.mrf.mxu0
        %v586 = vadd.f32 0.0, %v585
        %587 = vdwg.mxu0
        %588 = vmatpush.msra.mxu0 0.0
        %589 = vmatpush.msra.mxu0 0.0
        %590 = vmatpush.msra.mxu0 0.0
        %591 = vmatpush.msra.mxu0 0.0
        %592 = vmatpush.msra.mxu0 0.0
        %593 = vmatpush.msra.mxu0 0.0
        %594 = vmatpush.msra.mxu0 0.0
        %595 = vmatpush.msra.mxu0 0.0
        %596 = vmatpush.msra.mxu0 0.0
        %597 = vmatpush.msra.mxu0 0.0
        %598 = vmatpush.msra.mxu0 0.0
        %599 = vmatpush.msra.mxu0 0.0
        %600 = vmatpush.msra.mxu0 0.0
        %601 = vmatpush.msra.mxu0 %v564
        %602 = vmatpush.msra.mxu0 %v563
        %603 = vmatpush.msra.mxu0 %v562
        %604 = vmatmul.f32.gmra.mxu0 %v463
        %v605 = vpop.f32.mrf.mxu0
        %v606 = vadd.f32 0.0, %v605
        %607 = vmatmul.f32.gmra.mxu0 %v466
        %v608 = vpop.f32.mrf.mxu0
        %v609 = vadd.f32 0.0, %v608
        %610 = vdwg.mxu0
        %v611 = vmax.f32 %v583, %v606
        %v612 = vmax.f32 %v586, %v609
        %s613 = scalar_lea.vmem [#allocation2], 16
        %614 = vst.msk [vmem:[%s613] sm:$0xff] %vm493, %v611
        %615 = vst.msk [vmem:[%s613 + $0x8] sm:$0xf] %vm495, %v612
        %v616 = vld [vmem:[%s329 + $0x60] sm:$0xff]
        %v617 = vld [vmem:[%s329 + $0x68] sm:$0xff]
        %v618 = vld [vmem:[%s329 + $0x70] sm:$0xff]
        %v619 = vld [vmem:[%s329 + $0x78] sm:$0xff]
        %v620 = vld [vmem:[%s329 + $0x80] sm:$0xff]
        %v621 = vld [vmem:[%s329 + $0x88] sm:$0xff]
        %v623 = vsel %vm365, %v616, 0
        %v626 = vsel %vm365, %v617, 0
        %v629 = vsel %vm365, %v618, 0
        %v632 = vsel %vm365, %v619, 0
        %v635 = vsel %vm365, %v620, 0
        %v638 = vsel %vm365, %v621, 0
        %640 = vmatpush.msra.mxu0 0.0
        %641 = vmatpush.msra.mxu0 0.0
        %642 = vmatpush.msra.mxu0 0.0
        %643 = vmatpush.msra.mxu0 0.0
        %644 = vmatpush.msra.mxu0 0.0
        %645 = vmatpush.msra.mxu0 0.0
        %646 = vmatpush.msra.mxu0 0.0
        %647 = vmatpush.msra.mxu0 0.0
        %648 = vmatpush.msra.mxu0 0.0
        %649 = vmatpush.msra.mxu0 0.0
        %650 = vmatpush.msra.mxu0 0.0
        %651 = vmatpush.msra.mxu0 0.0
        %652 = vmatpush.msra.mxu0 %v386
        %653 = vmatpush.msra.mxu0 %v353
        %654 = vmatpush.msra.mxu0 %v352
        %655 = vmatpush.msra.mxu0 %v351
        %656 = vmatmul.f32.gmra.mxu0 %v623
        %v657 = vpop.f32.mrf.mxu0
        %v658 = vadd.f32 %v363, %v657
        %659 = vmatmul.f32.gmra.mxu0 %v626
        %v660 = vpop.f32.mrf.mxu0
        %v661 = vadd.f32 %v363, %v660
        %662 = vmatmul.f32.gmra.mxu0 %v629
        %v663 = vpop.f32.mrf.mxu0
        %v664 = vadd.f32 %v363, %v663
        %665 = vmatmul.f32.gmra.mxu0 %v632
        %v666 = vpop.f32.mrf.mxu0
        %v667 = vadd.f32 %v363, %v666
        %668 = vmatmul.f32.gmra.mxu0 %v635
        %v669 = vpop.f32.mrf.mxu0
        %v670 = vadd.f32 %v363, %v669
        %671 = vmatmul.f32.gmra.mxu0 %v638
        %v672 = vpop.f32.mrf.mxu0
        %v673 = vadd.f32 %v363, %v672
        %674 = vdwg.mxu0
        %v675 = vmax.f32 %v658, 0.0
        %v676 = vmax.f32 %v661, 0.0
        %v677 = vmax.f32 %v664, 0.0
        %v678 = vmax.f32 %v667, 0.0
        %v679 = vmax.f32 %v670, 0.0
        %v680 = vmax.f32 %v673, 0.0
        %v681 = vmax.f32 %v675, %v678
        %v682 = vmax.f32 %v676, %v679
        %v683 = vmax.f32 %v677, %v680
        %684 = vmatpush.msra.mxu0 0.0
        %685 = vmatpush.msra.mxu0 0.0
        %686 = vmatpush.msra.mxu0 0.0
        %687 = vmatpush.msra.mxu0 0.0
        %688 = vmatpush.msra.mxu0 0.0
        %689 = vmatpush.msra.mxu0 0.0
        %690 = vmatpush.msra.mxu0 0.0
        %691 = vmatpush.msra.mxu0 0.0
        %692 = vmatpush.msra.mxu0 0.0
        %693 = vmatpush.msra.mxu0 0.0
        %694 = vmatpush.msra.mxu0 0.0
        %695 = vmatpush.msra.mxu0 0.0
        %696 = vmatpush.msra.mxu0 0.0
        %697 = vmatpush.msra.mxu0 %v683
        %698 = vmatpush.msra.mxu0 %v682
        %699 = vmatpush.msra.mxu0 %v681
        %700 = vmatmul.f32.gmra.mxu0 %v434
        %v701 = vpop.f32.mrf.mxu0
        %v702 = vadd.f32 0.0, %v701
        %703 = vmatmul.f32.gmra.mxu0 %v437
        %v704 = vpop.f32.mrf.mxu0
        %v705 = vadd.f32 0.0, %v704
        %706 = vdwg.mxu0
        %707 = vmatpush.msra.mxu0 0.0
        %708 = vmatpush.msra.mxu0 0.0
        %709 = vmatpush.msra.mxu0 0.0
        %710 = vmatpush.msra.mxu0 0.0
        %711 = vmatpush.msra.mxu0 0.0
        %712 = vmatpush.msra.mxu0 0.0
        %713 = vmatpush.msra.mxu0 0.0
        %714 = vmatpush.msra.mxu0 0.0
        %715 = vmatpush.msra.mxu0 0.0
        %716 = vmatpush.msra.mxu0 0.0
        %717 = vmatpush.msra.mxu0 0.0
        %718 = vmatpush.msra.mxu0 0.0
        %719 = vmatpush.msra.mxu0 0.0
        %720 = vmatpush.msra.mxu0 %v683
        %721 = vmatpush.msra.mxu0 %v682
        %722 = vmatpush.msra.mxu0 %v681
        %723 = vmatmul.f32.gmra.mxu0 %v463
        %v724 = vpop.f32.mrf.mxu0
        %v725 = vadd.f32 0.0, %v724
        %726 = vmatmul.f32.gmra.mxu0 %v466
        %v727 = vpop.f32.mrf.mxu0
        %v728 = vadd.f32 0.0, %v727
        %729 = vdwg.mxu0
        %v730 = vmax.f32 %v702, %v725
        %v731 = vmax.f32 %v705, %v728
        %s732 = scalar_lea.vmem [#allocation2], 32
        %733 = vst.msk [vmem:[%s732] sm:$0xff] %vm493, %v730
        %734 = vst.msk [vmem:[%s732 + $0x8] sm:$0xf] %vm495, %v731
        %v735 = vld [vmem:[%s329 + $0x90] sm:$0xff]
        %v736 = vld [vmem:[%s329 + $0x98] sm:$0xff]
        %v737 = vld [vmem:[%s329 + $0xa0] sm:$0xff]
        %v738 = vld [vmem:[%s329 + $0xa8] sm:$0xff]
        %v739 = vld [vmem:[%s329 + $0xb0] sm:$0xff]
        %v740 = vld [vmem:[%s329 + $0xb8] sm:$0xff]
        %v742 = vsel %vm365, %v735, 0
        %v745 = vsel %vm365, %v736, 0
        %v748 = vsel %vm365, %v737, 0
        %v751 = vsel %vm365, %v738, 0
        %v754 = vsel %vm365, %v739, 0
        %v757 = vsel %vm365, %v740, 0
        %759 = vmatpush.msra.mxu0 0.0
        %760 = vmatpush.msra.mxu0 0.0
        %761 = vmatpush.msra.mxu0 0.0
        %762 = vmatpush.msra.mxu0 0.0
        %763 = vmatpush.msra.mxu0 0.0
        %764 = vmatpush.msra.mxu0 0.0
        %765 = vmatpush.msra.mxu0 0.0
        %766 = vmatpush.msra.mxu0 0.0
        %767 = vmatpush.msra.mxu0 0.0
        %768 = vmatpush.msra.mxu0 0.0
        %769 = vmatpush.msra.mxu0 0.0
        %770 = vmatpush.msra.mxu0 0.0
        %771 = vmatpush.msra.mxu0 %v386
        %772 = vmatpush.msra.mxu0 %v353
        %773 = vmatpush.msra.mxu0 %v352
        %774 = vmatpush.msra.mxu0 %v351
        %775 = vmatmul.f32.gmra.mxu0 %v742
        %v776 = vpop.f32.mrf.mxu0
        %v777 = vadd.f32 %v363, %v776
        %778 = vmatmul.f32.gmra.mxu0 %v745
        %v779 = vpop.f32.mrf.mxu0
        %v780 = vadd.f32 %v363, %v779
        %781 = vmatmul.f32.gmra.mxu0 %v748
        %v782 = vpop.f32.mrf.mxu0
        %v783 = vadd.f32 %v363, %v782
        %784 = vmatmul.f32.gmra.mxu0 %v751
        %v785 = vpop.f32.mrf.mxu0
        %v786 = vadd.f32 %v363, %v785
        %787 = vmatmul.f32.gmra.mxu0 %v754
        %v788 = vpop.f32.mrf.mxu0
        %v789 = vadd.f32 %v363, %v788
        %790 = vmatmul.f32.gmra.mxu0 %v757
        %v791 = vpop.f32.mrf.mxu0
        %v792 = vadd.f32 %v363, %v791
        %793 = vdwg.mxu0
        %v794 = vmax.f32 %v777, 0.0
        %v795 = vmax.f32 %v780, 0.0
        %v796 = vmax.f32 %v783, 0.0
        %v797 = vmax.f32 %v786, 0.0
        %v798 = vmax.f32 %v789, 0.0
        %v799 = vmax.f32 %v792, 0.0
        %v800 = vmax.f32 %v794, %v797
        %v801 = vmax.f32 %v795, %v798
        %v802 = vmax.f32 %v796, %v799
        %803 = vmatpush.msra.mxu0 0.0
        %804 = vmatpush.msra.mxu0 0.0
        %805 = vmatpush.msra.mxu0 0.0
        %806 = vmatpush.msra.mxu0 0.0
        %807 = vmatpush.msra.mxu0 0.0
        %808 = vmatpush.msra.mxu0 0.0
        %809 = vmatpush.msra.mxu0 0.0
        %810 = vmatpush.msra.mxu0 0.0
        %811 = vmatpush.msra.mxu0 0.0
        %812 = vmatpush.msra.mxu0 0.0
        %813 = vmatpush.msra.mxu0 0.0
        %814 = vmatpush.msra.mxu0 0.0
        %815 = vmatpush.msra.mxu0 0.0
        %816 = vmatpush.msra.mxu0 %v802
        %817 = vmatpush.msra.mxu0 %v801
        %818 = vmatpush.msra.mxu0 %v800
        %819 = vmatmul.f32.gmra.mxu0 %v434
        %v820 = vpop.f32.mrf.mxu0
        %v821 = vadd.f32 0.0, %v820
        %822 = vmatmul.f32.gmra.mxu0 %v437
        %v823 = vpop.f32.mrf.mxu0
        %v824 = vadd.f32 0.0, %v823
        %825 = vdwg.mxu0
        %826 = vmatpush.msra.mxu0 0.0
        %827 = vmatpush.msra.mxu0 0.0
        %828 = vmatpush.msra.mxu0 0.0
        %829 = vmatpush.msra.mxu0 0.0
        %830 = vmatpush.msra.mxu0 0.0
        %831 = vmatpush.msra.mxu0 0.0
        %832 = vmatpush.msra.mxu0 0.0
        %833 = vmatpush.msra.mxu0 0.0
        %834 = vmatpush.msra.mxu0 0.0
        %835 = vmatpush.msra.mxu0 0.0
        %836 = vmatpush.msra.mxu0 0.0
        %837 = vmatpush.msra.mxu0 0.0
        %838 = vmatpush.msra.mxu0 0.0
        %839 = vmatpush.msra.mxu0 %v802
        %840 = vmatpush.msra.mxu0 %v801
        %841 = vmatpush.msra.mxu0 %v800
        %842 = vmatmul.f32.gmra.mxu0 %v463
        %v843 = vpop.f32.mrf.mxu0
        %v844 = vadd.f32 0.0, %v843
        %845 = vmatmul.f32.gmra.mxu0 %v466
        %v846 = vpop.f32.mrf.mxu0
        %v847 = vadd.f32 0.0, %v846
        %848 = vdwg.mxu0
        %v849 = vmax.f32 %v821, %v844
        %v850 = vmax.f32 %v824, %v847
        %s851 = scalar_lea.vmem [#allocation2], 48
        %852 = vst.msk [vmem:[%s851] sm:$0xff] %vm493, %v849
        %853 = vst.msk [vmem:[%s851 + $0x8] sm:$0xf] %vm495, %v850
        %v854 = vld [vmem:[%s329 + $0xc0] sm:$0xff]
        %v855 = vld [vmem:[%s329 + $0xc8] sm:$0xff]
        %v856 = vld [vmem:[%s329 + $0xd0] sm:$0xff]
        %v857 = vld [vmem:[%s329 + $0xd8] sm:$0xff]
        %v858 = vld [vmem:[%s329 + $0xe0] sm:$0xff]
        %v859 = vld [vmem:[%s329 + $0xe8] sm:$0xff]
        %v861 = vsel %vm365, %v854, 0
        %v864 = vsel %vm365, %v855, 0
        %v867 = vsel %vm365, %v856, 0
        %v870 = vsel %vm365, %v857, 0
        %v873 = vsel %vm365, %v858, 0
        %v876 = vsel %vm365, %v859, 0
        %878 = vmatpush.msra.mxu0 0.0
        %879 = vmatpush.msra.mxu0 0.0
        %880 = vmatpush.msra.mxu0 0.0
        %881 = vmatpush.msra.mxu0 0.0
        %882 = vmatpush.msra.mxu0 0.0
        %883 = vmatpush.msra.mxu0 0.0
        %884 = vmatpush.msra.mxu0 0.0
        %885 = vmatpush.msra.mxu0 0.0
        %886 = vmatpush.msra.mxu0 0.0
        %887 = vmatpush.msra.mxu0 0.0
        %888 = vmatpush.msra.mxu0 0.0
        %889 = vmatpush.msra.mxu0 0.0
        %890 = vmatpush.msra.mxu0 %v386
        %891 = vmatpush.msra.mxu0 %v353
        %892 = vmatpush.msra.mxu0 %v352
        %893 = vmatpush.msra.mxu0 %v351
        %894 = vmatmul.f32.gmra.mxu0 %v861
        %v895 = vpop.f32.mrf.mxu0
        %v896 = vadd.f32 %v363, %v895
        %897 = vmatmul.f32.gmra.mxu0 %v864
        %v898 = vpop.f32.mrf.mxu0
        %v899 = vadd.f32 %v363, %v898
        %900 = vmatmul.f32.gmra.mxu0 %v867
        %v901 = vpop.f32.mrf.mxu0
        %v902 = vadd.f32 %v363, %v901
        %903 = vmatmul.f32.gmra.mxu0 %v870
        %v904 = vpop.f32.mrf.mxu0
        %v905 = vadd.f32 %v363, %v904
        %906 = vmatmul.f32.gmra.mxu0 %v873
        %v907 = vpop.f32.mrf.mxu0
        %v908 = vadd.f32 %v363, %v907
        %909 = vmatmul.f32.gmra.mxu0 %v876
        %v910 = vpop.f32.mrf.mxu0
        %v911 = vadd.f32 %v363, %v910
        %912 = vdwg.mxu0
        %v913 = vmax.f32 %v896, 0.0
        %v914 = vmax.f32 %v899, 0.0
        %v915 = vmax.f32 %v902, 0.0
        %v916 = vmax.f32 %v905, 0.0
        %v917 = vmax.f32 %v908, 0.0
        %v918 = vmax.f32 %v911, 0.0
        %v919 = vmax.f32 %v913, %v916
        %v920 = vmax.f32 %v914, %v917
        %v921 = vmax.f32 %v915, %v918
        %922 = vmatpush.msra.mxu0 0.0
        %923 = vmatpush.msra.mxu0 0.0
        %924 = vmatpush.msra.mxu0 0.0
        %925 = vmatpush.msra.mxu0 0.0
        %926 = vmatpush.msra.mxu0 0.0
        %927 = vmatpush.msra.mxu0 0.0
        %928 = vmatpush.msra.mxu0 0.0
        %929 = vmatpush.msra.mxu0 0.0
        %930 = vmatpush.msra.mxu0 0.0
        %931 = vmatpush.msra.mxu0 0.0
        %932 = vmatpush.msra.mxu0 0.0
        %933 = vmatpush.msra.mxu0 0.0
        %934 = vmatpush.msra.mxu0 0.0
        %935 = vmatpush.msra.mxu0 %v921
        %936 = vmatpush.msra.mxu0 %v920
        %937 = vmatpush.msra.mxu0 %v919
        %938 = vmatmul.f32.gmra.mxu0 %v434
        %v939 = vpop.f32.mrf.mxu0
        %v940 = vadd.f32 0.0, %v939
        %941 = vmatmul.f32.gmra.mxu0 %v437
        %v942 = vpop.f32.mrf.mxu0
        %v943 = vadd.f32 0.0, %v942
        %944 = vdwg.mxu0
        %945 = vmatpush.msra.mxu0 0.0
        %946 = vmatpush.msra.mxu0 0.0
        %947 = vmatpush.msra.mxu0 0.0
        %948 = vmatpush.msra.mxu0 0.0
        %949 = vmatpush.msra.mxu0 0.0
        %950 = vmatpush.msra.mxu0 0.0
        %951 = vmatpush.msra.mxu0 0.0
        %952 = vmatpush.msra.mxu0 0.0
        %953 = vmatpush.msra.mxu0 0.0
        %954 = vmatpush.msra.mxu0 0.0
        %955 = vmatpush.msra.mxu0 0.0
        %956 = vmatpush.msra.mxu0 0.0
        %957 = vmatpush.msra.mxu0 0.0
        %958 = vmatpush.msra.mxu0 %v921
        %959 = vmatpush.msra.mxu0 %v920
        %960 = vmatpush.msra.mxu0 %v919
        %961 = vmatmul.f32.gmra.mxu0 %v463
        %v962 = vpop.f32.mrf.mxu0
        %v963 = vadd.f32 0.0, %v962
        %964 = vmatmul.f32.gmra.mxu0 %v466
        %v965 = vpop.f32.mrf.mxu0
        %v966 = vadd.f32 0.0, %v965
        %967 = vdwg.mxu0
        %v968 = vmax.f32 %v940, %v963
        %v969 = vmax.f32 %v943, %v966
        %s970 = scalar_lea.vmem [#allocation2], 64
        %971 = vst.msk [vmem:[%s970] sm:$0xff] %vm493, %v968
        %972 = vst.msk [vmem:[%s970 + $0x8] sm:$0xf] %vm495, %v969
        %v973 = vld [vmem:[%s329 + $0xf0] sm:$0xff]
        %v974 = vld [vmem:[%s329 + $0xf8] sm:$0xff]
        %v975 = vld [vmem:[%s329 + $0x100] sm:$0xff]
        %v976 = vld [vmem:[%s329 + $0x108] sm:$0xff]
        %v977 = vld [vmem:[%s329 + $0x110] sm:$0xff]
        %v978 = vld [vmem:[%s329 + $0x118] sm:$0xff]
        %v980 = vsel %vm365, %v973, 0
        %v983 = vsel %vm365, %v974, 0
        %v986 = vsel %vm365, %v975, 0
        %v989 = vsel %vm365, %v976, 0
        %v992 = vsel %vm365, %v977, 0
        %v995 = vsel %vm365, %v978, 0
        %997 = vmatpush.msra.mxu0 0.0
        %998 = vmatpush.msra.mxu0 0.0
        %999 = vmatpush.msra.mxu0 0.0
        %1000 = vmatpush.msra.mxu0 0.0
        %1001 = vmatpush.msra.mxu0 0.0
        %1002 = vmatpush.msra.mxu0 0.0
        %1003 = vmatpush.msra.mxu0 0.0
        %1004 = vmatpush.msra.mxu0 0.0
        %1005 = vmatpush.msra.mxu0 0.0
        %1006 = vmatpush.msra.mxu0 0.0
        %1007 = vmatpush.msra.mxu0 0.0
        %1008 = vmatpush.msra.mxu0 0.0
        %1009 = vmatpush.msra.mxu0 %v386
        %1010 = vmatpush.msra.mxu0 %v353
        %1011 = vmatpush.msra.mxu0 %v352
        %1012 = vmatpush.msra.mxu0 %v351
        %1013 = vmatmul.f32.gmra.mxu0 %v980
        %v1014 = vpop.f32.mrf.mxu0
        %v1015 = vadd.f32 %v363, %v1014
        %1016 = vmatmul.f32.gmra.mxu0 %v983
        %v1017 = vpop.f32.mrf.mxu0
        %v1018 = vadd.f32 %v363, %v1017
        %1019 = vmatmul.f32.gmra.mxu0 %v986
        %v1020 = vpop.f32.mrf.mxu0
        %v1021 = vadd.f32 %v363, %v1020
        %1022 = vmatmul.f32.gmra.mxu0 %v989
        %v1023 = vpop.f32.mrf.mxu0
        %v1024 = vadd.f32 %v363, %v1023
        %1025 = vmatmul.f32.gmra.mxu0 %v992
        %v1026 = vpop.f32.mrf.mxu0
        %v1027 = vadd.f32 %v363, %v1026
        %1028 = vmatmul.f32.gmra.mxu0 %v995
        %v1029 = vpop.f32.mrf.mxu0
        %v1030 = vadd.f32 %v363, %v1029
        %1031 = vdwg.mxu0
        %v1032 = vmax.f32 %v1015, 0.0
        %v1033 = vmax.f32 %v1018, 0.0
        %v1034 = vmax.f32 %v1021, 0.0
        %v1035 = vmax.f32 %v1024, 0.0
        %v1036 = vmax.f32 %v1027, 0.0
        %v1037 = vmax.f32 %v1030, 0.0
        %v1038 = vmax.f32 %v1032, %v1035
        %v1039 = vmax.f32 %v1033, %v1036
        %v1040 = vmax.f32 %v1034, %v1037
        %1041 = vmatpush.msra.mxu0 0.0
        %1042 = vmatpush.msra.mxu0 0.0
        %1043 = vmatpush.msra.mxu0 0.0
        %1044 = vmatpush.msra.mxu0 0.0
        %1045 = vmatpush.msra.mxu0 0.0
        %1046 = vmatpush.msra.mxu0 0.0
        %1047 = vmatpush.msra.mxu0 0.0
        %1048 = vmatpush.msra.mxu0 0.0
        %1049 = vmatpush.msra.mxu0 0.0
        %1050 = vmatpush.msra.mxu0 0.0
        %1051 = vmatpush.msra.mxu0 0.0
        %1052 = vmatpush.msra.mxu0 0.0
        %1053 = vmatpush.msra.mxu0 0.0
        %1054 = vmatpush.msra.mxu0 %v1040
        %1055 = vmatpush.msra.mxu0 %v1039
        %1056 = vmatpush.msra.mxu0 %v1038
        %1057 = vmatmul.f32.gmra.mxu0 %v434
        %v1058 = vpop.f32.mrf.mxu0
        %v1059 = vadd.f32 0.0, %v1058
        %1060 = vmatmul.f32.gmra.mxu0 %v437
        %v1061 = vpop.f32.mrf.mxu0
        %v1062 = vadd.f32 0.0, %v1061
        %1063 = vdwg.mxu0
        %1064 = vmatpush.msra.mxu0 0.0
        %1065 = vmatpush.msra.mxu0 0.0
        %1066 = vmatpush.msra.mxu0 0.0
        %1067 = vmatpush.msra.mxu0 0.0
        %1068 = vmatpush.msra.mxu0 0.0
        %1069 = vmatpush.msra.mxu0 0.0
        %1070 = vmatpush.msra.mxu0 0.0
        %1071 = vmatpush.msra.mxu0 0.0
        %1072 = vmatpush.msra.mxu0 0.0
        %1073 = vmatpush.msra.mxu0 0.0
        %1074 = vmatpush.msra.mxu0 0.0
        %1075 = vmatpush.msra.mxu0 0.0
        %1076 = vmatpush.msra.mxu0 0.0
        %1077 = vmatpush.msra.mxu0 %v1040
        %1078 = vmatpush.msra.mxu0 %v1039
        %1079 = vmatpush.msra.mxu0 %v1038
        %1080 = vmatmul.f32.gmra.mxu0 %v463
        %v1081 = vpop.f32.mrf.mxu0
        %v1082 = vadd.f32 0.0, %v1081
        %1083 = vmatmul.f32.gmra.mxu0 %v466
        %v1084 = vpop.f32.mrf.mxu0
        %v1085 = vadd.f32 0.0, %v1084
        %1086 = vdwg.mxu0
        %v1087 = vmax.f32 %v1059, %v1082
        %v1088 = vmax.f32 %v1062, %v1085
        %s1089 = scalar_lea.vmem [#allocation2], 80
        %1090 = vst.msk [vmem:[%s1089] sm:$0xff] %vm493, %v1087
        %1091 = vst.msk [vmem:[%s1089 + $0x8] sm:$0xf] %vm495, %v1088
        %v1092 = vld [vmem:[%s329 + $0x120] sm:$0xff]
        %v1093 = vld [vmem:[%s329 + $0x128] sm:$0xff]
        %v1094 = vld [vmem:[%s329 + $0x130] sm:$0xff]
        %v1095 = vld [vmem:[%s329 + $0x138] sm:$0xff]
        %v1096 = vld [vmem:[%s329 + $0x140] sm:$0xff]
        %v1097 = vld [vmem:[%s329 + $0x148] sm:$0xff]
        %v1099 = vsel %vm365, %v1092, 0
        %v1102 = vsel %vm365, %v1093, 0
        %v1105 = vsel %vm365, %v1094, 0
        %v1108 = vsel %vm365, %v1095, 0
        %v1111 = vsel %vm365, %v1096, 0
        %v1114 = vsel %vm365, %v1097, 0
        %1116 = vmatpush.msra.mxu0 0.0
        %1117 = vmatpush.msra.mxu0 0.0
        %1118 = vmatpush.msra.mxu0 0.0
        %1119 = vmatpush.msra.mxu0 0.0
        %1120 = vmatpush.msra.mxu0 0.0
        %1121 = vmatpush.msra.mxu0 0.0
        %1122 = vmatpush.msra.mxu0 0.0
        %1123 = vmatpush.msra.mxu0 0.0
        %1124 = vmatpush.msra.mxu0 0.0
        %1125 = vmatpush.msra.mxu0 0.0
        %1126 = vmatpush.msra.mxu0 0.0
        %1127 = vmatpush.msra.mxu0 0.0
        %1128 = vmatpush.msra.mxu0 %v386
        %1129 = vmatpush.msra.mxu0 %v353
        %1130 = vmatpush.msra.mxu0 %v352
        %1131 = vmatpush.msra.mxu0 %v351
        %1132 = vmatmul.f32.gmra.mxu0 %v1099
        %v1133 = vpop.f32.mrf.mxu0
        %v1134 = vadd.f32 %v363, %v1133
        %1135 = vmatmul.f32.gmra.mxu0 %v1102
        %v1136 = vpop.f32.mrf.mxu0
        %v1137 = vadd.f32 %v363, %v1136
        %1138 = vmatmul.f32.gmra.mxu0 %v1105
        %v1139 = vpop.f32.mrf.mxu0
        %v1140 = vadd.f32 %v363, %v1139
        %1141 = vmatmul.f32.gmra.mxu0 %v1108
        %v1142 = vpop.f32.mrf.mxu0
        %v1143 = vadd.f32 %v363, %v1142
        %1144 = vmatmul.f32.gmra.mxu0 %v1111
        %v1145 = vpop.f32.mrf.mxu0
        %v1146 = vadd.f32 %v363, %v1145
        %1147 = vmatmul.f32.gmra.mxu0 %v1114
        %v1148 = vpop.f32.mrf.mxu0
        %v1149 = vadd.f32 %v363, %v1148
        %1150 = vdwg.mxu0
        %v1151 = vmax.f32 %v1134, 0.0
        %v1152 = vmax.f32 %v1137, 0.0
        %v1153 = vmax.f32 %v1140, 0.0
        %v1154 = vmax.f32 %v1143, 0.0
        %v1155 = vmax.f32 %v1146, 0.0
        %v1156 = vmax.f32 %v1149, 0.0
        %v1157 = vmax.f32 %v1151, %v1154
        %v1158 = vmax.f32 %v1152, %v1155
        %v1159 = vmax.f32 %v1153, %v1156
        %1160 = vmatpush.msra.mxu0 0.0
        %1161 = vmatpush.msra.mxu0 0.0
        %1162 = vmatpush.msra.mxu0 0.0
        %1163 = vmatpush.msra.mxu0 0.0
        %1164 = vmatpush.msra.mxu0 0.0
        %1165 = vmatpush.msra.mxu0 0.0
        %1166 = vmatpush.msra.mxu0 0.0
        %1167 = vmatpush.msra.mxu0 0.0
        %1168 = vmatpush.msra.mxu0 0.0
        %1169 = vmatpush.msra.mxu0 0.0
        %1170 = vmatpush.msra.mxu0 0.0
        %1171 = vmatpush.msra.mxu0 0.0
        %1172 = vmatpush.msra.mxu0 0.0
        %1173 = vmatpush.msra.mxu0 %v1159
        %1174 = vmatpush.msra.mxu0 %v1158
        %1175 = vmatpush.msra.mxu0 %v1157
        %1176 = vmatmul.f32.gmra.mxu0 %v434
        %v1177 = vpop.f32.mrf.mxu0
        %v1178 = vadd.f32 0.0, %v1177
        %1179 = vmatmul.f32.gmra.mxu0 %v437
        %v1180 = vpop.f32.mrf.mxu0
        %v1181 = vadd.f32 0.0, %v1180
        %1182 = vdwg.mxu0
        %1183 = vmatpush.msra.mxu0 0.0
        %1184 = vmatpush.msra.mxu0 0.0
        %1185 = vmatpush.msra.mxu0 0.0
        %1186 = vmatpush.msra.mxu0 0.0
        %1187 = vmatpush.msra.mxu0 0.0
        %1188 = vmatpush.msra.mxu0 0.0
        %1189 = vmatpush.msra.mxu0 0.0
        %1190 = vmatpush.msra.mxu0 0.0
        %1191 = vmatpush.msra.mxu0 0.0
        %1192 = vmatpush.msra.mxu0 0.0
        %1193 = vmatpush.msra.mxu0 0.0
        %1194 = vmatpush.msra.mxu0 0.0
        %1195 = vmatpush.msra.mxu0 0.0
        %1196 = vmatpush.msra.mxu0 %v1159
        %1197 = vmatpush.msra.mxu0 %v1158
        %1198 = vmatpush.msra.mxu0 %v1157
        %1199 = vmatmul.f32.gmra.mxu0 %v463
        %v1200 = vpop.f32.mrf.mxu0
        %v1201 = vadd.f32 0.0, %v1200
        %1202 = vmatmul.f32.gmra.mxu0 %v466
        %v1203 = vpop.f32.mrf.mxu0
        %v1204 = vadd.f32 0.0, %v1203
        %1205 = vdwg.mxu0
        %v1206 = vmax.f32 %v1178, %v1201
        %v1207 = vmax.f32 %v1181, %v1204
        %s1208 = scalar_lea.vmem [#allocation2], 96
        %1209 = vst.msk [vmem:[%s1208] sm:$0xff] %vm493, %v1206
        %1210 = vst.msk [vmem:[%s1208 + $0x8] sm:$0xf] %vm495, %v1207
        %v1211 = vld [vmem:[%s329 + $0x150] sm:$0xff]
        %v1212 = vld [vmem:[%s329 + $0x158] sm:$0xff]
        %v1213 = vld [vmem:[%s329 + $0x160] sm:$0xff]
        %v1214 = vld [vmem:[%s329 + $0x168] sm:$0xff]
        %v1215 = vld [vmem:[%s329 + $0x170] sm:$0xff]
        %v1216 = vld [vmem:[%s329 + $0x178] sm:$0xff]
        %v1218 = vsel %vm365, %v1211, 0
        %v1221 = vsel %vm365, %v1212, 0
        %v1224 = vsel %vm365, %v1213, 0
        %v1227 = vsel %vm365, %v1214, 0
        %v1230 = vsel %vm365, %v1215, 0
        %v1233 = vsel %vm365, %v1216, 0
        %1235 = vmatpush.msra.mxu0 0.0
        %1236 = vmatpush.msra.mxu0 0.0
        %1237 = vmatpush.msra.mxu0 0.0
        %1238 = vmatpush.msra.mxu0 0.0
        %1239 = vmatpush.msra.mxu0 0.0
        %1240 = vmatpush.msra.mxu0 0.0
        %1241 = vmatpush.msra.mxu0 0.0
        %1242 = vmatpush.msra.mxu0 0.0
        %1243 = vmatpush.msra.mxu0 0.0
        %1244 = vmatpush.msra.mxu0 0.0
        %1245 = vmatpush.msra.mxu0 0.0
        %1246 = vmatpush.msra.mxu0 0.0
        %1247 = vmatpush.msra.mxu0 %v386
        %1248 = vmatpush.msra.mxu0 %v353
        %1249 = vmatpush.msra.mxu0 %v352
        %1250 = vmatpush.msra.mxu0 %v351
        %1251 = vmatmul.f32.gmra.mxu0 %v1218
        %v1252 = vpop.f32.mrf.mxu0
        %v1253 = vadd.f32 %v363, %v1252
        %1254 = vmatmul.f32.gmra.mxu0 %v1221
        %v1255 = vpop.f32.mrf.mxu0
        %v1256 = vadd.f32 %v363, %v1255
        %1257 = vmatmul.f32.gmra.mxu0 %v1224
        %v1258 = vpop.f32.mrf.mxu0
        %v1259 = vadd.f32 %v363, %v1258
        %1260 = vmatmul.f32.gmra.mxu0 %v1227
        %v1261 = vpop.f32.mrf.mxu0
        %v1262 = vadd.f32 %v363, %v1261
        %1263 = vmatmul.f32.gmra.mxu0 %v1230
        %v1264 = vpop.f32.mrf.mxu0
        %v1265 = vadd.f32 %v363, %v1264
        %1266 = vmatmul.f32.gmra.mxu0 %v1233
        %v1267 = vpop.f32.mrf.mxu0
        %v1268 = vadd.f32 %v363, %v1267
        %1269 = vdwg.mxu0
        %v1270 = vmax.f32 %v1253, 0.0
        %v1271 = vmax.f32 %v1256, 0.0
        %v1272 = vmax.f32 %v1259, 0.0
        %v1273 = vmax.f32 %v1262, 0.0
        %v1274 = vmax.f32 %v1265, 0.0
        %v1275 = vmax.f32 %v1268, 0.0
        %v1276 = vmax.f32 %v1270, %v1273
        %v1277 = vmax.f32 %v1271, %v1274
        %v1278 = vmax.f32 %v1272, %v1275
        %1279 = vmatpush.msra.mxu0 0.0
        %1280 = vmatpush.msra.mxu0 0.0
        %1281 = vmatpush.msra.mxu0 0.0
        %1282 = vmatpush.msra.mxu0 0.0
        %1283 = vmatpush.msra.mxu0 0.0
        %1284 = vmatpush.msra.mxu0 0.0
        %1285 = vmatpush.msra.mxu0 0.0
        %1286 = vmatpush.msra.mxu0 0.0
        %1287 = vmatpush.msra.mxu0 0.0
        %1288 = vmatpush.msra.mxu0 0.0
        %1289 = vmatpush.msra.mxu0 0.0
        %1290 = vmatpush.msra.mxu0 0.0
        %1291 = vmatpush.msra.mxu0 0.0
        %1292 = vmatpush.msra.mxu0 %v1278
        %1293 = vmatpush.msra.mxu0 %v1277
        %1294 = vmatpush.msra.mxu0 %v1276
        %1295 = vmatmul.f32.gmra.mxu0 %v434
        %v1296 = vpop.f32.mrf.mxu0
        %v1297 = vadd.f32 0.0, %v1296
        %1298 = vmatmul.f32.gmra.mxu0 %v437
        %v1299 = vpop.f32.mrf.mxu0
        %v1300 = vadd.f32 0.0, %v1299
        %1301 = vdwg.mxu0
        %1302 = vmatpush.msra.mxu0 0.0
        %1303 = vmatpush.msra.mxu0 0.0
        %1304 = vmatpush.msra.mxu0 0.0
        %1305 = vmatpush.msra.mxu0 0.0
        %1306 = vmatpush.msra.mxu0 0.0
        %1307 = vmatpush.msra.mxu0 0.0
        %1308 = vmatpush.msra.mxu0 0.0
        %1309 = vmatpush.msra.mxu0 0.0
        %1310 = vmatpush.msra.mxu0 0.0
        %1311 = vmatpush.msra.mxu0 0.0
        %1312 = vmatpush.msra.mxu0 0.0
        %1313 = vmatpush.msra.mxu0 0.0
        %1314 = vmatpush.msra.mxu0 0.0
        %1315 = vmatpush.msra.mxu0 %v1278
        %1316 = vmatpush.msra.mxu0 %v1277
        %1317 = vmatpush.msra.mxu0 %v1276
        %1318 = vmatmul.f32.gmra.mxu0 %v463
        %v1319 = vpop.f32.mrf.mxu0
        %v1320 = vadd.f32 0.0, %v1319
        %1321 = vmatmul.f32.gmra.mxu0 %v466
        %v1322 = vpop.f32.mrf.mxu0
        %v1323 = vadd.f32 0.0, %v1322
        %1324 = vdwg.mxu0
        %v1325 = vmax.f32 %v1297, %v1320
        %v1326 = vmax.f32 %v1300, %v1323
        %s1327 = scalar_lea.vmem [#allocation2], 112
        %1328 = vst.msk [vmem:[%s1327] sm:$0xff] %vm493, %v1325
        %1329 = vst.msk [vmem:[%s1327 + $0x8] sm:$0xf] %vm495, %v1326
        %v1330 = vld [vmem:[%s329 + $0x180] sm:$0xff]
        %v1331 = vld [vmem:[%s329 + $0x188] sm:$0xff]
        %v1332 = vld [vmem:[%s329 + $0x190] sm:$0xff]
        %v1333 = vld [vmem:[%s329 + $0x198] sm:$0xff]
        %v1334 = vld [vmem:[%s329 + $0x1a0] sm:$0xff]
        %v1335 = vld [vmem:[%s329 + $0x1a8] sm:$0xff]
        %v1337 = vsel %vm365, %v1330, 0
        %v1340 = vsel %vm365, %v1331, 0
        %v1343 = vsel %vm365, %v1332, 0
        %v1346 = vsel %vm365, %v1333, 0
        %v1349 = vsel %vm365, %v1334, 0
        %v1352 = vsel %vm365, %v1335, 0
        %1354 = vmatpush.msra.mxu0 0.0
        %1355 = vmatpush.msra.mxu0 0.0
        %1356 = vmatpush.msra.mxu0 0.0
        %1357 = vmatpush.msra.mxu0 0.0
        %1358 = vmatpush.msra.mxu0 0.0
        %1359 = vmatpush.msra.mxu0 0.0
        %1360 = vmatpush.msra.mxu0 0.0
        %1361 = vmatpush.msra.mxu0 0.0
        %1362 = vmatpush.msra.mxu0 0.0
        %1363 = vmatpush.msra.mxu0 0.0
        %1364 = vmatpush.msra.mxu0 0.0
        %1365 = vmatpush.msra.mxu0 0.0
        %1366 = vmatpush.msra.mxu0 %v386
        %1367 = vmatpush.msra.mxu0 %v353
        %1368 = vmatpush.msra.mxu0 %v352
        %1369 = vmatpush.msra.mxu0 %v351
        %1370 = vmatmul.f32.gmra.mxu0 %v1337
        %v1371 = vpop.f32.mrf.mxu0
        %v1372 = vadd.f32 %v363, %v1371
        %1373 = vmatmul.f32.gmra.mxu0 %v1340
        %v1374 = vpop.f32.mrf.mxu0
        %v1375 = vadd.f32 %v363, %v1374
        %1376 = vmatmul.f32.gmra.mxu0 %v1343
        %v1377 = vpop.f32.mrf.mxu0
        %v1378 = vadd.f32 %v363, %v1377
        %1379 = vmatmul.f32.gmra.mxu0 %v1346
        %v1380 = vpop.f32.mrf.mxu0
        %v1381 = vadd.f32 %v363, %v1380
        %1382 = vmatmul.f32.gmra.mxu0 %v1349
        %v1383 = vpop.f32.mrf.mxu0
        %v1384 = vadd.f32 %v363, %v1383
        %1385 = vmatmul.f32.gmra.mxu0 %v1352
        %v1386 = vpop.f32.mrf.mxu0
        %v1387 = vadd.f32 %v363, %v1386
        %1388 = vdwg.mxu0
        %v1389 = vmax.f32 %v1372, 0.0
        %v1390 = vmax.f32 %v1375, 0.0
        %v1391 = vmax.f32 %v1378, 0.0
        %v1392 = vmax.f32 %v1381, 0.0
        %v1393 = vmax.f32 %v1384, 0.0
        %v1394 = vmax.f32 %v1387, 0.0
        %v1395 = vmax.f32 %v1389, %v1392
        %v1396 = vmax.f32 %v1390, %v1393
        %v1397 = vmax.f32 %v1391, %v1394
        %1398 = vmatpush.msra.mxu0 0.0
        %1399 = vmatpush.msra.mxu0 0.0
        %1400 = vmatpush.msra.mxu0 0.0
        %1401 = vmatpush.msra.mxu0 0.0
        %1402 = vmatpush.msra.mxu0 0.0
        %1403 = vmatpush.msra.mxu0 0.0
        %1404 = vmatpush.msra.mxu0 0.0
        %1405 = vmatpush.msra.mxu0 0.0
        %1406 = vmatpush.msra.mxu0 0.0
        %1407 = vmatpush.msra.mxu0 0.0
        %1408 = vmatpush.msra.mxu0 0.0
        %1409 = vmatpush.msra.mxu0 0.0
        %1410 = vmatpush.msra.mxu0 0.0
        %1411 = vmatpush.msra.mxu0 %v1397
        %1412 = vmatpush.msra.mxu0 %v1396
        %1413 = vmatpush.msra.mxu0 %v1395
        %1414 = vmatmul.f32.gmra.mxu0 %v434
        %v1415 = vpop.f32.mrf.mxu0
        %v1416 = vadd.f32 0.0, %v1415
        %1417 = vmatmul.f32.gmra.mxu0 %v437
        %v1418 = vpop.f32.mrf.mxu0
        %v1419 = vadd.f32 0.0, %v1418
        %1420 = vdwg.mxu0
        %1421 = vmatpush.msra.mxu0 0.0
        %1422 = vmatpush.msra.mxu0 0.0
        %1423 = vmatpush.msra.mxu0 0.0
        %1424 = vmatpush.msra.mxu0 0.0
        %1425 = vmatpush.msra.mxu0 0.0
        %1426 = vmatpush.msra.mxu0 0.0
        %1427 = vmatpush.msra.mxu0 0.0
        %1428 = vmatpush.msra.mxu0 0.0
        %1429 = vmatpush.msra.mxu0 0.0
        %1430 = vmatpush.msra.mxu0 0.0
        %1431 = vmatpush.msra.mxu0 0.0
        %1432 = vmatpush.msra.mxu0 0.0
        %1433 = vmatpush.msra.mxu0 0.0
        %1434 = vmatpush.msra.mxu0 %v1397
        %1435 = vmatpush.msra.mxu0 %v1396
        %1436 = vmatpush.msra.mxu0 %v1395
        %1437 = vmatmul.f32.gmra.mxu0 %v463
        %v1438 = vpop.f32.mrf.mxu0
        %v1439 = vadd.f32 0.0, %v1438
        %1440 = vmatmul.f32.gmra.mxu0 %v466
        %v1441 = vpop.f32.mrf.mxu0
        %v1442 = vadd.f32 0.0, %v1441
        %1443 = vdwg.mxu0
        %v1444 = vmax.f32 %v1416, %v1439
        %v1445 = vmax.f32 %v1419, %v1442
        %s1446 = scalar_lea.vmem [#allocation2], 128
        %1447 = vst.msk [vmem:[%s1446] sm:$0xff] %vm493, %v1444
        %1448 = vst.msk [vmem:[%s1446 + $0x8] sm:$0xf] %vm495, %v1445
        %v1449 = vld [vmem:[%s329 + $0x1b0] sm:$0xff]
        %v1450 = vld [vmem:[%s329 + $0x1b8] sm:$0xff]
        %v1451 = vld [vmem:[%s329 + $0x1c0] sm:$0xff]
        %v1452 = vld [vmem:[%s329 + $0x1c8] sm:$0xff]
        %v1453 = vld [vmem:[%s329 + $0x1d0] sm:$0xff]
        %v1454 = vld [vmem:[%s329 + $0x1d8] sm:$0xff]
        %v1456 = vsel %vm365, %v1449, 0
        %v1459 = vsel %vm365, %v1450, 0
        %v1462 = vsel %vm365, %v1451, 0
        %v1465 = vsel %vm365, %v1452, 0
        %v1468 = vsel %vm365, %v1453, 0
        %v1471 = vsel %vm365, %v1454, 0
        %1473 = vmatpush.msra.mxu0 0.0
        %1474 = vmatpush.msra.mxu0 0.0
        %1475 = vmatpush.msra.mxu0 0.0
        %1476 = vmatpush.msra.mxu0 0.0
        %1477 = vmatpush.msra.mxu0 0.0
        %1478 = vmatpush.msra.mxu0 0.0
        %1479 = vmatpush.msra.mxu0 0.0
        %1480 = vmatpush.msra.mxu0 0.0
        %1481 = vmatpush.msra.mxu0 0.0
        %1482 = vmatpush.msra.mxu0 0.0
        %1483 = vmatpush.msra.mxu0 0.0
        %1484 = vmatpush.msra.mxu0 0.0
        %1485 = vmatpush.msra.mxu0 %v386
        %1486 = vmatpush.msra.mxu0 %v353
        %1487 = vmatpush.msra.mxu0 %v352
        %1488 = vmatpush.msra.mxu0 %v351
        %1489 = vmatmul.f32.gmra.mxu0 %v1456
        %v1490 = vpop.f32.mrf.mxu0
        %v1491 = vadd.f32 %v363, %v1490
        %1492 = vmatmul.f32.gmra.mxu0 %v1459
        %v1493 = vpop.f32.mrf.mxu0
        %v1494 = vadd.f32 %v363, %v1493
        %1495 = vmatmul.f32.gmra.mxu0 %v1462
        %v1496 = vpop.f32.mrf.mxu0
        %v1497 = vadd.f32 %v363, %v1496
        %1498 = vmatmul.f32.gmra.mxu0 %v1465
        %v1499 = vpop.f32.mrf.mxu0
        %v1500 = vadd.f32 %v363, %v1499
        %1501 = vmatmul.f32.gmra.mxu0 %v1468
        %v1502 = vpop.f32.mrf.mxu0
        %v1503 = vadd.f32 %v363, %v1502
        %1504 = vmatmul.f32.gmra.mxu0 %v1471
        %v1505 = vpop.f32.mrf.mxu0
        %v1506 = vadd.f32 %v363, %v1505
        %1507 = vdwg.mxu0
        %v1508 = vmax.f32 %v1491, 0.0
        %v1509 = vmax.f32 %v1494, 0.0
        %v1510 = vmax.f32 %v1497, 0.0
        %v1511 = vmax.f32 %v1500, 0.0
        %v1512 = vmax.f32 %v1503, 0.0
        %v1513 = vmax.f32 %v1506, 0.0
        %v1514 = vmax.f32 %v1508, %v1511
        %v1515 = vmax.f32 %v1509, %v1512
        %v1516 = vmax.f32 %v1510, %v1513
        %1517 = vmatpush.msra.mxu0 0.0
        %1518 = vmatpush.msra.mxu0 0.0
        %1519 = vmatpush.msra.mxu0 0.0
        %1520 = vmatpush.msra.mxu0 0.0
        %1521 = vmatpush.msra.mxu0 0.0
        %1522 = vmatpush.msra.mxu0 0.0
        %1523 = vmatpush.msra.mxu0 0.0
        %1524 = vmatpush.msra.mxu0 0.0
        %1525 = vmatpush.msra.mxu0 0.0
        %1526 = vmatpush.msra.mxu0 0.0
        %1527 = vmatpush.msra.mxu0 0.0
        %1528 = vmatpush.msra.mxu0 0.0
        %1529 = vmatpush.msra.mxu0 0.0
        %1530 = vmatpush.msra.mxu0 %v1516
        %1531 = vmatpush.msra.mxu0 %v1515
        %1532 = vmatpush.msra.mxu0 %v1514
        %1533 = vmatmul.f32.gmra.mxu0 %v434
        %v1534 = vpop.f32.mrf.mxu0
        %v1535 = vadd.f32 0.0, %v1534
        %1536 = vmatmul.f32.gmra.mxu0 %v437
        %v1537 = vpop.f32.mrf.mxu0
        %v1538 = vadd.f32 0.0, %v1537
        %1539 = vdwg.mxu0
        %1540 = vmatpush.msra.mxu0 0.0
        %1541 = vmatpush.msra.mxu0 0.0
        %1542 = vmatpush.msra.mxu0 0.0
        %1543 = vmatpush.msra.mxu0 0.0
        %1544 = vmatpush.msra.mxu0 0.0
        %1545 = vmatpush.msra.mxu0 0.0
        %1546 = vmatpush.msra.mxu0 0.0
        %1547 = vmatpush.msra.mxu0 0.0
        %1548 = vmatpush.msra.mxu0 0.0
        %1549 = vmatpush.msra.mxu0 0.0
        %1550 = vmatpush.msra.mxu0 0.0
        %1551 = vmatpush.msra.mxu0 0.0
        %1552 = vmatpush.msra.mxu0 0.0
        %1553 = vmatpush.msra.mxu0 %v1516
        %1554 = vmatpush.msra.mxu0 %v1515
        %1555 = vmatpush.msra.mxu0 %v1514
        %1556 = vmatmul.f32.gmra.mxu0 %v463
        %v1557 = vpop.f32.mrf.mxu0
        %v1558 = vadd.f32 0.0, %v1557
        %1559 = vmatmul.f32.gmra.mxu0 %v466
        %v1560 = vpop.f32.mrf.mxu0
        %v1561 = vadd.f32 0.0, %v1560
        %1562 = vdwg.mxu0
        %v1563 = vmax.f32 %v1535, %v1558
        %v1564 = vmax.f32 %v1538, %v1561
        %s1565 = scalar_lea.vmem [#allocation2], 144
        %1566 = vst.msk [vmem:[%s1565] sm:$0xff] %vm493, %v1563
        %1567 = vst.msk [vmem:[%s1565 + $0x8] sm:$0xf] %vm495, %v1564
        %v1568 = vld [vmem:[%s329 + $0x1e0] sm:$0xff]
        %v1569 = vld [vmem:[%s329 + $0x1e8] sm:$0xff]
        %v1570 = vld [vmem:[%s329 + $0x1f0] sm:$0xff]
        %v1571 = vld [vmem:[%s329 + $0x1f8] sm:$0xff]
        %v1572 = vld [vmem:[%s329 + $0x200] sm:$0xff]
        %v1573 = vld [vmem:[%s329 + $0x208] sm:$0xff]
        %v1575 = vsel %vm365, %v1568, 0
        %v1578 = vsel %vm365, %v1569, 0
        %v1581 = vsel %vm365, %v1570, 0
        %v1584 = vsel %vm365, %v1571, 0
        %v1587 = vsel %vm365, %v1572, 0
        %v1590 = vsel %vm365, %v1573, 0
        %1592 = vmatpush.msra.mxu0 0.0
        %1593 = vmatpush.msra.mxu0 0.0
        %1594 = vmatpush.msra.mxu0 0.0
        %1595 = vmatpush.msra.mxu0 0.0
        %1596 = vmatpush.msra.mxu0 0.0
        %1597 = vmatpush.msra.mxu0 0.0
        %1598 = vmatpush.msra.mxu0 0.0
        %1599 = vmatpush.msra.mxu0 0.0
        %1600 = vmatpush.msra.mxu0 0.0
        %1601 = vmatpush.msra.mxu0 0.0
        %1602 = vmatpush.msra.mxu0 0.0
        %1603 = vmatpush.msra.mxu0 0.0
        %1604 = vmatpush.msra.mxu0 %v386
        %1605 = vmatpush.msra.mxu0 %v353
        %1606 = vmatpush.msra.mxu0 %v352
        %1607 = vmatpush.msra.mxu0 %v351
        %1608 = vmatmul.f32.gmra.mxu0 %v1575
        %v1609 = vpop.f32.mrf.mxu0
        %v1610 = vadd.f32 %v363, %v1609
        %1611 = vmatmul.f32.gmra.mxu0 %v1578
        %v1612 = vpop.f32.mrf.mxu0
        %v1613 = vadd.f32 %v363, %v1612
        %1614 = vmatmul.f32.gmra.mxu0 %v1581
        %v1615 = vpop.f32.mrf.mxu0
        %v1616 = vadd.f32 %v363, %v1615
        %1617 = vmatmul.f32.gmra.mxu0 %v1584
        %v1618 = vpop.f32.mrf.mxu0
        %v1619 = vadd.f32 %v363, %v1618
        %1620 = vmatmul.f32.gmra.mxu0 %v1587
        %v1621 = vpop.f32.mrf.mxu0
        %v1622 = vadd.f32 %v363, %v1621
        %1623 = vmatmul.f32.gmra.mxu0 %v1590
        %v1624 = vpop.f32.mrf.mxu0
        %v1625 = vadd.f32 %v363, %v1624
        %1626 = vdwg.mxu0
        %v1627 = vmax.f32 %v1610, 0.0
        %v1628 = vmax.f32 %v1613, 0.0
        %v1629 = vmax.f32 %v1616, 0.0
        %v1630 = vmax.f32 %v1619, 0.0
        %v1631 = vmax.f32 %v1622, 0.0
        %v1632 = vmax.f32 %v1625, 0.0
        %v1633 = vmax.f32 %v1627, %v1630
        %v1634 = vmax.f32 %v1628, %v1631
        %v1635 = vmax.f32 %v1629, %v1632
        %1636 = vmatpush.msra.mxu0 0.0
        %1637 = vmatpush.msra.mxu0 0.0
        %1638 = vmatpush.msra.mxu0 0.0
        %1639 = vmatpush.msra.mxu0 0.0
        %1640 = vmatpush.msra.mxu0 0.0
        %1641 = vmatpush.msra.mxu0 0.0
        %1642 = vmatpush.msra.mxu0 0.0
        %1643 = vmatpush.msra.mxu0 0.0
        %1644 = vmatpush.msra.mxu0 0.0
        %1645 = vmatpush.msra.mxu0 0.0
        %1646 = vmatpush.msra.mxu0 0.0
        %1647 = vmatpush.msra.mxu0 0.0
        %1648 = vmatpush.msra.mxu0 0.0
        %1649 = vmatpush.msra.mxu0 %v1635
        %1650 = vmatpush.msra.mxu0 %v1634
        %1651 = vmatpush.msra.mxu0 %v1633
        %1652 = vmatmul.f32.gmra.mxu0 %v434
        %v1653 = vpop.f32.mrf.mxu0
        %v1654 = vadd.f32 0.0, %v1653
        %1655 = vmatmul.f32.gmra.mxu0 %v437
        %v1656 = vpop.f32.mrf.mxu0
        %v1657 = vadd.f32 0.0, %v1656
        %1658 = vdwg.mxu0
        %1659 = vmatpush.msra.mxu0 0.0
        %1660 = vmatpush.msra.mxu0 0.0
        %1661 = vmatpush.msra.mxu0 0.0
        %1662 = vmatpush.msra.mxu0 0.0
        %1663 = vmatpush.msra.mxu0 0.0
        %1664 = vmatpush.msra.mxu0 0.0
        %1665 = vmatpush.msra.mxu0 0.0
        %1666 = vmatpush.msra.mxu0 0.0
        %1667 = vmatpush.msra.mxu0 0.0
        %1668 = vmatpush.msra.mxu0 0.0
        %1669 = vmatpush.msra.mxu0 0.0
        %1670 = vmatpush.msra.mxu0 0.0
        %1671 = vmatpush.msra.mxu0 0.0
        %1672 = vmatpush.msra.mxu0 %v1635
        %1673 = vmatpush.msra.mxu0 %v1634
        %1674 = vmatpush.msra.mxu0 %v1633
        %1675 = vmatmul.f32.gmra.mxu0 %v463
        %v1676 = vpop.f32.mrf.mxu0
        %v1677 = vadd.f32 0.0, %v1676
        %1678 = vmatmul.f32.gmra.mxu0 %v466
        %v1679 = vpop.f32.mrf.mxu0
        %v1680 = vadd.f32 0.0, %v1679
        %1681 = vdwg.mxu0
        %v1682 = vmax.f32 %v1654, %v1677
        %v1683 = vmax.f32 %v1657, %v1680
        %s1684 = scalar_lea.vmem [#allocation2], 160
        %1685 = vst.msk [vmem:[%s1684] sm:$0xff] %vm493, %v1682
        %1686 = vst.msk [vmem:[%s1684 + $0x8] sm:$0xf] %vm495, %v1683
        %v1687 = vld [vmem:[%s329 + $0x210] sm:$0xff]
        %v1688 = vld [vmem:[%s329 + $0x218] sm:$0xff]
        %v1689 = vld [vmem:[%s329 + $0x220] sm:$0xff]
        %v1690 = vld [vmem:[%s329 + $0x228] sm:$0xff]
        %v1691 = vld [vmem:[%s329 + $0x230] sm:$0xff]
        %v1692 = vld [vmem:[%s329 + $0x238] sm:$0xff]
        %v1694 = vsel %vm365, %v1687, 0
        %v1697 = vsel %vm365, %v1688, 0
        %v1700 = vsel %vm365, %v1689, 0
        %v1703 = vsel %vm365, %v1690, 0
        %v1706 = vsel %vm365, %v1691, 0
        %v1709 = vsel %vm365, %v1692, 0
        %1711 = vmatpush.msra.mxu0 0.0
        %1712 = vmatpush.msra.mxu0 0.0
        %1713 = vmatpush.msra.mxu0 0.0
        %1714 = vmatpush.msra.mxu0 0.0
        %1715 = vmatpush.msra.mxu0 0.0
        %1716 = vmatpush.msra.mxu0 0.0
        %1717 = vmatpush.msra.mxu0 0.0
        %1718 = vmatpush.msra.mxu0 0.0
        %1719 = vmatpush.msra.mxu0 0.0
        %1720 = vmatpush.msra.mxu0 0.0
        %1721 = vmatpush.msra.mxu0 0.0
        %1722 = vmatpush.msra.mxu0 0.0
        %1723 = vmatpush.msra.mxu0 %v386
        %1724 = vmatpush.msra.mxu0 %v353
        %1725 = vmatpush.msra.mxu0 %v352
        %1726 = vmatpush.msra.mxu0 %v351
        %1727 = vmatmul.f32.gmra.mxu0 %v1694
        %v1728 = vpop.f32.mrf.mxu0
        %v1729 = vadd.f32 %v363, %v1728
        %1730 = vmatmul.f32.gmra.mxu0 %v1697
        %v1731 = vpop.f32.mrf.mxu0
        %v1732 = vadd.f32 %v363, %v1731
        %1733 = vmatmul.f32.gmra.mxu0 %v1700
        %v1734 = vpop.f32.mrf.mxu0
        %v1735 = vadd.f32 %v363, %v1734
        %1736 = vmatmul.f32.gmra.mxu0 %v1703
        %v1737 = vpop.f32.mrf.mxu0
        %v1738 = vadd.f32 %v363, %v1737
        %1739 = vmatmul.f32.gmra.mxu0 %v1706
        %v1740 = vpop.f32.mrf.mxu0
        %v1741 = vadd.f32 %v363, %v1740
        %1742 = vmatmul.f32.gmra.mxu0 %v1709
        %v1743 = vpop.f32.mrf.mxu0
        %v1744 = vadd.f32 %v363, %v1743
        %1745 = vdwg.mxu0
        %v1746 = vmax.f32 %v1729, 0.0
        %v1747 = vmax.f32 %v1732, 0.0
        %v1748 = vmax.f32 %v1735, 0.0
        %v1749 = vmax.f32 %v1738, 0.0
        %v1750 = vmax.f32 %v1741, 0.0
        %v1751 = vmax.f32 %v1744, 0.0
        %v1752 = vmax.f32 %v1746, %v1749
        %v1753 = vmax.f32 %v1747, %v1750
        %v1754 = vmax.f32 %v1748, %v1751
        %1755 = vmatpush.msra.mxu0 0.0
        %1756 = vmatpush.msra.mxu0 0.0
        %1757 = vmatpush.msra.mxu0 0.0
        %1758 = vmatpush.msra.mxu0 0.0
        %1759 = vmatpush.msra.mxu0 0.0
        %1760 = vmatpush.msra.mxu0 0.0
        %1761 = vmatpush.msra.mxu0 0.0
        %1762 = vmatpush.msra.mxu0 0.0
        %1763 = vmatpush.msra.mxu0 0.0
        %1764 = vmatpush.msra.mxu0 0.0
        %1765 = vmatpush.msra.mxu0 0.0
        %1766 = vmatpush.msra.mxu0 0.0
        %1767 = vmatpush.msra.mxu0 0.0
        %1768 = vmatpush.msra.mxu0 %v1754
        %1769 = vmatpush.msra.mxu0 %v1753
        %1770 = vmatpush.msra.mxu0 %v1752
        %1771 = vmatmul.f32.gmra.mxu0 %v434
        %v1772 = vpop.f32.mrf.mxu0
        %v1773 = vadd.f32 0.0, %v1772
        %1774 = vmatmul.f32.gmra.mxu0 %v437
        %v1775 = vpop.f32.mrf.mxu0
        %v1776 = vadd.f32 0.0, %v1775
        %1777 = vdwg.mxu0
        %1778 = vmatpush.msra.mxu0 0.0
        %1779 = vmatpush.msra.mxu0 0.0
        %1780 = vmatpush.msra.mxu0 0.0
        %1781 = vmatpush.msra.mxu0 0.0
        %1782 = vmatpush.msra.mxu0 0.0
        %1783 = vmatpush.msra.mxu0 0.0
        %1784 = vmatpush.msra.mxu0 0.0
        %1785 = vmatpush.msra.mxu0 0.0
        %1786 = vmatpush.msra.mxu0 0.0
        %1787 = vmatpush.msra.mxu0 0.0
        %1788 = vmatpush.msra.mxu0 0.0
        %1789 = vmatpush.msra.mxu0 0.0
        %1790 = vmatpush.msra.mxu0 0.0
        %1791 = vmatpush.msra.mxu0 %v1754
        %1792 = vmatpush.msra.mxu0 %v1753
        %1793 = vmatpush.msra.mxu0 %v1752
        %1794 = vmatmul.f32.gmra.mxu0 %v463
        %v1795 = vpop.f32.mrf.mxu0
        %v1796 = vadd.f32 0.0, %v1795
        %1797 = vmatmul.f32.gmra.mxu0 %v466
        %v1798 = vpop.f32.mrf.mxu0
        %v1799 = vadd.f32 0.0, %v1798
        %1800 = vdwg.mxu0
        %v1801 = vmax.f32 %v1773, %v1796
        %v1802 = vmax.f32 %v1776, %v1799
        %s1803 = scalar_lea.vmem [#allocation2], 176
        %1804 = vst.msk [vmem:[%s1803] sm:$0xff] %vm493, %v1801
        %1805 = vst.msk [vmem:[%s1803 + $0x8] sm:$0xf] %vm495, %v1802
        %v1806 = vld [vmem:[#allocation2] sm:$0xff]
        %v1807 = vld [vmem:[#allocation2 + $0x8] sm:$0xf]
        %v1808 = vld [vmem:[#allocation2 + $0x10] sm:$0xff]
        %v1809 = vld [vmem:[#allocation2 + $0x18] sm:$0xf]
        %v1810 = vld [vmem:[#allocation2 + $0x20] sm:$0xff]
        %v1811 = vld [vmem:[#allocation2 + $0x28] sm:$0xf]
        %v1812 = vld [vmem:[#allocation2 + $0x30] sm:$0xff]
        %v1813 = vld [vmem:[#allocation2 + $0x38] sm:$0xf]
        %v1814 = vld [vmem:[#allocation2 + $0x40] sm:$0xff]
        %v1815 = vld [vmem:[#allocation2 + $0x48] sm:$0xf]
        %v1816 = vld [vmem:[#allocation2 + $0x50] sm:$0xff]
        %v1817 = vld [vmem:[#allocation2 + $0x58] sm:$0xf]
        %v1818 = vld [vmem:[#allocation2 + $0x60] sm:$0xff]
        %v1819 = vld [vmem:[#allocation2 + $0x68] sm:$0xf]
        %v1820 = vld [vmem:[#allocation2 + $0x70] sm:$0xff]
        %v1821 = vld [vmem:[#allocation2 + $0x78] sm:$0xf]
        %v1822 = vld [vmem:[#allocation2 + $0x80] sm:$0xff]
        %v1823 = vld [vmem:[#allocation2 + $0x88] sm:$0xf]
        %v1824 = vld [vmem:[#allocation2 + $0x90] sm:$0xff]
        %v1825 = vld [vmem:[#allocation2 + $0x98] sm:$0xf]
        %v1826 = vld [vmem:[#allocation2 + $0xa0] sm:$0xff]
        %v1827 = vld [vmem:[#allocation2 + $0xa8] sm:$0xf]
        %v1828 = vld [vmem:[#allocation2 + $0xb0] sm:$0xff]
        %v1829 = vld [vmem:[#allocation2 + $0xb8] sm:$0xf]
        %v1830 = vld [vmem:[%s3] sm:$0xff]
        %v1831 = vld [vmem:[%s3 + $0x8] sm:$0x3]
        %vm1834 = vcmask 1046528
        %v1835 = vrot.slane %v1806, 1
        %v1836 = vrot.slane %v1807, 1
        %v1837 = vsel %vm1834, %v1835, %v1836
        %v1840 = vrot.slane %v1808, 1
        %v1841 = vrot.slane %v1809, 1
        %v1842 = vsel %vm1834, %v1840, %v1841
        %v1845 = vrot.slane %v1810, 1
        %v1846 = vrot.slane %v1811, 1
        %v1847 = vsel %vm1834, %v1845, %v1846
        %v1850 = vrot.slane %v1812, 1
        %v1851 = vrot.slane %v1813, 1
        %v1852 = vsel %vm1834, %v1850, %v1851
        %v1855 = vrot.slane %v1814, 1
        %v1856 = vrot.slane %v1815, 1
        %v1857 = vsel %vm1834, %v1855, %v1856
        %v1860 = vrot.slane %v1816, 1
        %v1861 = vrot.slane %v1817, 1
        %v1862 = vsel %vm1834, %v1860, %v1861
        %v1865 = vrot.slane %v1818, 1
        %v1866 = vrot.slane %v1819, 1
        %v1867 = vsel %vm1834, %v1865, %v1866
        %v1870 = vrot.slane %v1820, 1
        %v1871 = vrot.slane %v1821, 1
        %v1872 = vsel %vm1834, %v1870, %v1871
        %s1873 = scalar_lea.vmem %s3, 16
        %v1874 = vld [vmem:[%s1873] sm:$0xff]
        %v1875 = vld [vmem:[%s1873 + $0x8] sm:$0x3]
        %v1876 = vsel %vm493, %v1837, 0
        %v1878 = vsel %vm493, %v1842, 0
        %v1880 = vsel %vm493, %v1847, 0
        %v1882 = vsel %vm493, %v1852, 0
        %v1884 = vsel %vm493, %v1857, 0
        %v1886 = vsel %vm493, %v1862, 0
        %v1888 = vsel %vm493, %v1867, 0
        %v1890 = vsel %vm493, %v1872, 0
        %vm1892 = vcmask 1041408
        %v1894 = vsel %vm1892, %v1875, 0
        %1896 = vmatpush.msra.mxu0 0.0
        %1897 = vmatpush.msra.mxu0 0.0
        %1898 = vmatpush.msra.mxu0 0.0
        %1899 = vmatpush.msra.mxu0 0.0
        %1900 = vmatpush.msra.mxu0 0.0
        %1901 = vmatpush.msra.mxu0 0.0
        %1902 = vmatpush.msra.mxu0 0.0
        %1903 = vmatpush.msra.mxu0 0.0
        %1904 = vmatpush.msra.mxu0 0.0
        %1905 = vmatpush.msra.mxu0 0.0
        %1906 = vmatpush.msra.mxu0 0.0
        %1907 = vmatpush.msra.mxu0 0.0
        %1908 = vmatpush.msra.mxu0 0.0
        %1909 = vmatpush.msra.mxu0 0.0
        %1910 = vmatpush.msra.mxu0 %v1894
        %1911 = vmatpush.msra.mxu0 %v1874
        %1912 = vmatmul.f32.gmra.mxu0 %v1876
        %v1913 = vpop.f32.mrf.mxu0
        %v1914 = vadd.f32 0.0, %v1913
        %1915 = vmatmul.f32.gmra.mxu0 %v1878
        %v1916 = vpop.f32.mrf.mxu0
        %v1917 = vadd.f32 0.0, %v1916
        %1918 = vmatmul.f32.gmra.mxu0 %v1880
        %v1919 = vpop.f32.mrf.mxu0
        %v1920 = vadd.f32 0.0, %v1919
        %1921 = vmatmul.f32.gmra.mxu0 %v1882
        %v1922 = vpop.f32.mrf.mxu0
        %v1923 = vadd.f32 0.0, %v1922
        %1924 = vmatmul.f32.gmra.mxu0 %v1884
        %v1925 = vpop.f32.mrf.mxu0
        %v1926 = vadd.f32 0.0, %v1925
        %1927 = vmatmul.f32.gmra.mxu0 %v1886
        %v1928 = vpop.f32.mrf.mxu0
        %v1929 = vadd.f32 0.0, %v1928
        %1930 = vmatmul.f32.gmra.mxu0 %v1888
        %v1931 = vpop.f32.mrf.mxu0
        %v1932 = vadd.f32 0.0, %v1931
        %1933 = vmatmul.f32.gmra.mxu0 %v1890
        %v1934 = vpop.f32.mrf.mxu0
        %v1935 = vadd.f32 0.0, %v1934
        %1936 = vdwg.mxu0
        %v1937 = vsel %vm493, %v1806, 0
        %v1939 = vsel %vm493, %v1808, 0
        %v1941 = vsel %vm493, %v1810, 0
        %v1943 = vsel %vm493, %v1812, 0
        %v1945 = vsel %vm493, %v1814, 0
        %v1947 = vsel %vm493, %v1816, 0
        %v1949 = vsel %vm493, %v1818, 0
        %v1951 = vsel %vm493, %v1820, 0
        %v1954 = vsel %vm1892, %v1831, 0
        %1956 = vmatpush.msra.mxu0 0.0
        %1957 = vmatpush.msra.mxu0 0.0
        %1958 = vmatpush.msra.mxu0 0.0
        %1959 = vmatpush.msra.mxu0 0.0
        %1960 = vmatpush.msra.mxu0 0.0
        %1961 = vmatpush.msra.mxu0 0.0
        %1962 = vmatpush.msra.mxu0 0.0
        %1963 = vmatpush.msra.mxu0 0.0
        %1964 = vmatpush.msra.mxu0 0.0
        %1965 = vmatpush.msra.mxu0 0.0
        %1966 = vmatpush.msra.mxu0 0.0
        %1967 = vmatpush.msra.mxu0 0.0
        %1968 = vmatpush.msra.mxu0 0.0
        %1969 = vmatpush.msra.mxu0 0.0
        %1970 = vmatpush.msra.mxu0 %v1954
        %1971 = vmatpush.msra.mxu0 %v1830
        %1972 = vmatmul.f32.gmra.mxu0 %v1937
        %v1973 = vpop.f32.mrf.mxu0
        %v1974 = vadd.f32 %v1914, %v1973
        %1975 = vmatmul.f32.gmra.mxu0 %v1939
        %v1976 = vpop.f32.mrf.mxu0
        %v1977 = vadd.f32 %v1917, %v1976
        %1978 = vmatmul.f32.gmra.mxu0 %v1941
        %v1979 = vpop.f32.mrf.mxu0
        %v1980 = vadd.f32 %v1920, %v1979
        %1981 = vmatmul.f32.gmra.mxu0 %v1943
        %v1982 = vpop.f32.mrf.mxu0
        %v1983 = vadd.f32 %v1923, %v1982
        %1984 = vmatmul.f32.gmra.mxu0 %v1945
        %v1985 = vpop.f32.mrf.mxu0
        %v1986 = vadd.f32 %v1926, %v1985
        %1987 = vmatmul.f32.gmra.mxu0 %v1947
        %v1988 = vpop.f32.mrf.mxu0
        %v1989 = vadd.f32 %v1929, %v1988
        %1990 = vmatmul.f32.gmra.mxu0 %v1949
        %v1991 = vpop.f32.mrf.mxu0
        %v1992 = vadd.f32 %v1932, %v1991
        %1993 = vmatmul.f32.gmra.mxu0 %v1951
        %v1994 = vpop.f32.mrf.mxu0
        %v1995 = vadd.f32 %v1935, %v1994
        %1996 = vdwg.mxu0
        %vm1997 = vcmask 1045504
        %v1998 = vrot.slane %v1806, 2
        %v1999 = vrot.slane %v1807, 2
        %v2000 = vsel %vm1997, %v1998, %v1999
        %v2001 = vrot.slane %v1808, 2
        %v2002 = vrot.slane %v1809, 2
        %v2003 = vsel %vm1997, %v2001, %v2002
        %v2004 = vrot.slane %v1810, 2
        %v2005 = vrot.slane %v1811, 2
        %v2006 = vsel %vm1997, %v2004, %v2005
        %v2007 = vrot.slane %v1812, 2
        %v2008 = vrot.slane %v1813, 2
        %v2009 = vsel %vm1997, %v2007, %v2008
        %v2010 = vrot.slane %v1814, 2
        %v2011 = vrot.slane %v1815, 2
        %v2012 = vsel %vm1997, %v2010, %v2011
        %v2013 = vrot.slane %v1816, 2
        %v2014 = vrot.slane %v1817, 2
        %v2015 = vsel %vm1997, %v2013, %v2014
        %v2016 = vrot.slane %v1818, 2
        %v2017 = vrot.slane %v1819, 2
        %v2018 = vsel %vm1997, %v2016, %v2017
        %v2019 = vrot.slane %v1820, 2
        %v2020 = vrot.slane %v1821, 2
        %v2021 = vsel %vm1997, %v2019, %v2020
        %s2022 = scalar_lea.vmem %s3, 32
        %v2023 = vld [vmem:[%s2022] sm:$0xff]
        %v2024 = vld [vmem:[%s2022 + $0x8] sm:$0x3]
        %v2025 = vsel %vm493, %v2000, 0
        %v2027 = vsel %vm493, %v2003, 0
        %v2029 = vsel %vm493, %v2006, 0
        %v2031 = vsel %vm493, %v2009, 0
        %v2033 = vsel %vm493, %v2012, 0
        %v2035 = vsel %vm493, %v2015, 0
        %v2037 = vsel %vm493, %v2018, 0
        %v2039 = vsel %vm493, %v2021, 0
        %v2042 = vsel %vm1892, %v2024, 0
        %2044 = vmatpush.msra.mxu0 0.0
        %2045 = vmatpush.msra.mxu0 0.0
        %2046 = vmatpush.msra.mxu0 0.0
        %2047 = vmatpush.msra.mxu0 0.0
        %2048 = vmatpush.msra.mxu0 0.0
        %2049 = vmatpush.msra.mxu0 0.0
        %2050 = vmatpush.msra.mxu0 0.0
        %2051 = vmatpush.msra.mxu0 0.0
        %2052 = vmatpush.msra.mxu0 0.0
        %2053 = vmatpush.msra.mxu0 0.0
        %2054 = vmatpush.msra.mxu0 0.0
        %2055 = vmatpush.msra.mxu0 0.0
        %2056 = vmatpush.msra.mxu0 0.0
        %2057 = vmatpush.msra.mxu0 0.0
        %2058 = vmatpush.msra.mxu0 %v2042
        %2059 = vmatpush.msra.mxu0 %v2023
        %2060 = vmatmul.f32.gmra.mxu0 %v2025
        %v2061 = vpop.f32.mrf.mxu0
        %v2062 = vadd.f32 0.0, %v2061
        %2063 = vmatmul.f32.gmra.mxu0 %v2027
        %v2064 = vpop.f32.mrf.mxu0
        %v2065 = vadd.f32 0.0, %v2064
        %2066 = vmatmul.f32.gmra.mxu0 %v2029
        %v2067 = vpop.f32.mrf.mxu0
        %v2068 = vadd.f32 0.0, %v2067
        %2069 = vmatmul.f32.gmra.mxu0 %v2031
        %v2070 = vpop.f32.mrf.mxu0
        %v2071 = vadd.f32 0.0, %v2070
        %2072 = vmatmul.f32.gmra.mxu0 %v2033
        %v2073 = vpop.f32.mrf.mxu0
        %v2074 = vadd.f32 0.0, %v2073
        %2075 = vmatmul.f32.gmra.mxu0 %v2035
        %v2076 = vpop.f32.mrf.mxu0
        %v2077 = vadd.f32 0.0, %v2076
        %2078 = vmatmul.f32.gmra.mxu0 %v2037
        %v2079 = vpop.f32.mrf.mxu0
        %v2080 = vadd.f32 0.0, %v2079
        %2081 = vmatmul.f32.gmra.mxu0 %v2039
        %v2082 = vpop.f32.mrf.mxu0
        %v2083 = vadd.f32 0.0, %v2082
        %2084 = vdwg.mxu0
        %v2085 = vadd.f32 %v1974, %v2062
        %v2086 = vadd.f32 %v1977, %v2065
        %v2087 = vadd.f32 %v1980, %v2068
        %v2088 = vadd.f32 %v1983, %v2071
        %v2089 = vadd.f32 %v1986, %v2074
        %v2090 = vadd.f32 %v1989, %v2077
        %v2091 = vadd.f32 %v1992, %v2080
        %v2092 = vadd.f32 %v1995, %v2083
        %vm2093 = vcmask 1044480
        %v2094 = vrot.slane %v1806, 3
        %v2095 = vrot.slane %v1807, 3
        %v2096 = vsel %vm2093, %v2094, %v2095
        %v2097 = vrot.slane %v1808, 3
        %v2098 = vrot.slane %v1809, 3
        %v2099 = vsel %vm2093, %v2097, %v2098
        %v2100 = vrot.slane %v1810, 3
        %v2101 = vrot.slane %v1811, 3
        %v2102 = vsel %vm2093, %v2100, %v2101
        %v2103 = vrot.slane %v1812, 3
        %v2104 = vrot.slane %v1813, 3
        %v2105 = vsel %vm2093, %v2103, %v2104
        %v2106 = vrot.slane %v1814, 3
        %v2107 = vrot.slane %v1815, 3
        %v2108 = vsel %vm2093, %v2106, %v2107
        %v2109 = vrot.slane %v1816, 3
        %v2110 = vrot.slane %v1817, 3
        %v2111 = vsel %vm2093, %v2109, %v2110
        %v2112 = vrot.slane %v1818, 3
        %v2113 = vrot.slane %v1819, 3
        %v2114 = vsel %vm2093, %v2112, %v2113
        %v2115 = vrot.slane %v1820, 3
        %v2116 = vrot.slane %v1821, 3
        %v2117 = vsel %vm2093, %v2115, %v2116
        %s2118 = scalar_lea.vmem %s3, 48
        %v2119 = vld [vmem:[%s2118] sm:$0xff]
        %v2120 = vld [vmem:[%s2118 + $0x8] sm:$0x3]
        %v2121 = vsel %vm493, %v2096, 0
        %v2123 = vsel %vm493, %v2099, 0
        %v2125 = vsel %vm493, %v2102, 0
        %v2127 = vsel %vm493, %v2105, 0
        %v2129 = vsel %vm493, %v2108, 0
        %v2131 = vsel %vm493, %v2111, 0
        %v2133 = vsel %vm493, %v2114, 0
        %v2135 = vsel %vm493, %v2117, 0
        %v2138 = vsel %vm1892, %v2120, 0
        %2140 = vmatpush.msra.mxu0 0.0
        %2141 = vmatpush.msra.mxu0 0.0
        %2142 = vmatpush.msra.mxu0 0.0
        %2143 = vmatpush.msra.mxu0 0.0
        %2144 = vmatpush.msra.mxu0 0.0
        %2145 = vmatpush.msra.mxu0 0.0
        %2146 = vmatpush.msra.mxu0 0.0
        %2147 = vmatpush.msra.mxu0 0.0
        %2148 = vmatpush.msra.mxu0 0.0
        %2149 = vmatpush.msra.mxu0 0.0
        %2150 = vmatpush.msra.mxu0 0.0
        %2151 = vmatpush.msra.mxu0 0.0
        %2152 = vmatpush.msra.mxu0 0.0
        %2153 = vmatpush.msra.mxu0 0.0
        %2154 = vmatpush.msra.mxu0 %v2138
        %2155 = vmatpush.msra.mxu0 %v2119
        %2156 = vmatmul.f32.gmra.mxu0 %v2121
        %v2157 = vpop.f32.mrf.mxu0
        %v2158 = vadd.f32 0.0, %v2157
        %2159 = vmatmul.f32.gmra.mxu0 %v2123
        %v2160 = vpop.f32.mrf.mxu0
        %v2161 = vadd.f32 0.0, %v2160
        %2162 = vmatmul.f32.gmra.mxu0 %v2125
        %v2163 = vpop.f32.mrf.mxu0
        %v2164 = vadd.f32 0.0, %v2163
        %2165 = vmatmul.f32.gmra.mxu0 %v2127
        %v2166 = vpop.f32.mrf.mxu0
        %v2167 = vadd.f32 0.0, %v2166
        %2168 = vmatmul.f32.gmra.mxu0 %v2129
        %v2169 = vpop.f32.mrf.mxu0
        %v2170 = vadd.f32 0.0, %v2169
        %2171 = vmatmul.f32.gmra.mxu0 %v2131
        %v2172 = vpop.f32.mrf.mxu0
        %v2173 = vadd.f32 0.0, %v2172
        %2174 = vmatmul.f32.gmra.mxu0 %v2133
        %v2175 = vpop.f32.mrf.mxu0
        %v2176 = vadd.f32 0.0, %v2175
        %2177 = vmatmul.f32.gmra.mxu0 %v2135
        %v2178 = vpop.f32.mrf.mxu0
        %v2179 = vadd.f32 0.0, %v2178
        %2180 = vdwg.mxu0
        %v2181 = vadd.f32 %v2085, %v2158
        %v2182 = vadd.f32 %v2086, %v2161
        %v2183 = vadd.f32 %v2087, %v2164
        %v2184 = vadd.f32 %v2088, %v2167
        %v2185 = vadd.f32 %v2089, %v2170
        %v2186 = vadd.f32 %v2090, %v2173
        %v2187 = vadd.f32 %v2091, %v2176
        %v2188 = vadd.f32 %v2092, %v2179
        %vm2189 = vcmask 1043456
        %v2190 = vrot.slane %v1806, 4
        %v2191 = vrot.slane %v1807, 4
        %v2192 = vsel %vm2189, %v2190, %v2191
        %v2193 = vrot.slane %v1808, 4
        %v2194 = vrot.slane %v1809, 4
        %v2195 = vsel %vm2189, %v2193, %v2194
        %v2196 = vrot.slane %v1810, 4
        %v2197 = vrot.slane %v1811, 4
        %v2198 = vsel %vm2189, %v2196, %v2197
        %v2199 = vrot.slane %v1812, 4
        %v2200 = vrot.slane %v1813, 4
        %v2201 = vsel %vm2189, %v2199, %v2200
        %v2202 = vrot.slane %v1814, 4
        %v2203 = vrot.slane %v1815, 4
        %v2204 = vsel %vm2189, %v2202, %v2203
        %v2205 = vrot.slane %v1816, 4
        %v2206 = vrot.slane %v1817, 4
        %v2207 = vsel %vm2189, %v2205, %v2206
        %v2208 = vrot.slane %v1818, 4
        %v2209 = vrot.slane %v1819, 4
        %v2210 = vsel %vm2189, %v2208, %v2209
        %v2211 = vrot.slane %v1820, 4
        %v2212 = vrot.slane %v1821, 4
        %v2213 = vsel %vm2189, %v2211, %v2212
        %s2214 = scalar_lea.vmem %s3, 64
        %v2215 = vld [vmem:[%s2214] sm:$0xff]
        %v2216 = vld [vmem:[%s2214 + $0x8] sm:$0x3]
        %v2217 = vsel %vm493, %v2192, 0
        %v2219 = vsel %vm493, %v2195, 0
        %v2221 = vsel %vm493, %v2198, 0
        %v2223 = vsel %vm493, %v2201, 0
        %v2225 = vsel %vm493, %v2204, 0
        %v2227 = vsel %vm493, %v2207, 0
        %v2229 = vsel %vm493, %v2210, 0
        %v2231 = vsel %vm493, %v2213, 0
        %v2234 = vsel %vm1892, %v2216, 0
        %2236 = vmatpush.msra.mxu0 0.0
        %2237 = vmatpush.msra.mxu0 0.0
        %2238 = vmatpush.msra.mxu0 0.0
        %2239 = vmatpush.msra.mxu0 0.0
        %2240 = vmatpush.msra.mxu0 0.0
        %2241 = vmatpush.msra.mxu0 0.0
        %2242 = vmatpush.msra.mxu0 0.0
        %2243 = vmatpush.msra.mxu0 0.0
        %2244 = vmatpush.msra.mxu0 0.0
        %2245 = vmatpush.msra.mxu0 0.0
        %2246 = vmatpush.msra.mxu0 0.0
        %2247 = vmatpush.msra.mxu0 0.0
        %2248 = vmatpush.msra.mxu0 0.0
        %2249 = vmatpush.msra.mxu0 0.0
        %2250 = vmatpush.msra.mxu0 %v2234
        %2251 = vmatpush.msra.mxu0 %v2215
        %2252 = vmatmul.f32.gmra.mxu0 %v2217
        %v2253 = vpop.f32.mrf.mxu0
        %v2254 = vadd.f32 0.0, %v2253
        %2255 = vmatmul.f32.gmra.mxu0 %v2219
        %v2256 = vpop.f32.mrf.mxu0
        %v2257 = vadd.f32 0.0, %v2256
        %2258 = vmatmul.f32.gmra.mxu0 %v2221
        %v2259 = vpop.f32.mrf.mxu0
        %v2260 = vadd.f32 0.0, %v2259
        %2261 = vmatmul.f32.gmra.mxu0 %v2223
        %v2262 = vpop.f32.mrf.mxu0
        %v2263 = vadd.f32 0.0, %v2262
        %2264 = vmatmul.f32.gmra.mxu0 %v2225
        %v2265 = vpop.f32.mrf.mxu0
        %v2266 = vadd.f32 0.0, %v2265
        %2267 = vmatmul.f32.gmra.mxu0 %v2227
        %v2268 = vpop.f32.mrf.mxu0
        %v2269 = vadd.f32 0.0, %v2268
        %2270 = vmatmul.f32.gmra.mxu0 %v2229
        %v2271 = vpop.f32.mrf.mxu0
        %v2272 = vadd.f32 0.0, %v2271
        %2273 = vmatmul.f32.gmra.mxu0 %v2231
        %v2274 = vpop.f32.mrf.mxu0
        %v2275 = vadd.f32 0.0, %v2274
        %2276 = vdwg.mxu0
        %v2277 = vadd.f32 %v2181, %v2254
        %v2278 = vadd.f32 %v2182, %v2257
        %v2279 = vadd.f32 %v2183, %v2260
        %v2280 = vadd.f32 %v2184, %v2263
        %v2281 = vadd.f32 %v2185, %v2266
        %v2282 = vadd.f32 %v2186, %v2269
        %v2283 = vadd.f32 %v2187, %v2272
        %v2284 = vadd.f32 %v2188, %v2275
        %s2285 = scalar_lea.vmem %s3, 80
        %v2286 = vld [vmem:[%s2285] sm:$0xff]
        %v2287 = vld [vmem:[%s2285 + $0x8] sm:$0x3]
        %v2289 = vsel %vm493, %v1822, 0
        %v2292 = vsel %vm1892, %v2287, 0
        %2294 = vmatpush.msra.mxu0 0.0
        %2295 = vmatpush.msra.mxu0 0.0
        %2296 = vmatpush.msra.mxu0 0.0
        %2297 = vmatpush.msra.mxu0 0.0
        %2298 = vmatpush.msra.mxu0 0.0
        %2299 = vmatpush.msra.mxu0 0.0
        %2300 = vmatpush.msra.mxu0 0.0
        %2301 = vmatpush.msra.mxu0 0.0
        %2302 = vmatpush.msra.mxu0 0.0
        %2303 = vmatpush.msra.mxu0 0.0
        %2304 = vmatpush.msra.mxu0 0.0
        %2305 = vmatpush.msra.mxu0 0.0
        %2306 = vmatpush.msra.mxu0 0.0
        %2307 = vmatpush.msra.mxu0 0.0
        %2308 = vmatpush.msra.mxu0 %v2292
        %2309 = vmatpush.msra.mxu0 %v2286
        %2310 = vmatmul.f32.gmra.mxu0 %v1939
        %v2311 = vpop.f32.mrf.mxu0
        %v2312 = vadd.f32 0.0, %v2311
        %2313 = vmatmul.f32.gmra.mxu0 %v1941
        %v2314 = vpop.f32.mrf.mxu0
        %v2315 = vadd.f32 0.0, %v2314
        %2316 = vmatmul.f32.gmra.mxu0 %v1943
        %v2317 = vpop.f32.mrf.mxu0
        %v2318 = vadd.f32 0.0, %v2317
        %2319 = vmatmul.f32.gmra.mxu0 %v1945
        %v2320 = vpop.f32.mrf.mxu0
        %v2321 = vadd.f32 0.0, %v2320
        %2322 = vmatmul.f32.gmra.mxu0 %v1947
        %v2323 = vpop.f32.mrf.mxu0
        %v2324 = vadd.f32 0.0, %v2323
        %2325 = vmatmul.f32.gmra.mxu0 %v1949
        %v2326 = vpop.f32.mrf.mxu0
        %v2327 = vadd.f32 0.0, %v2326
        %2328 = vmatmul.f32.gmra.mxu0 %v1951
        %v2329 = vpop.f32.mrf.mxu0
        %v2330 = vadd.f32 0.0, %v2329
        %2331 = vmatmul.f32.gmra.mxu0 %v2289
        %v2332 = vpop.f32.mrf.mxu0
        %v2333 = vadd.f32 0.0, %v2332
        %2334 = vdwg.mxu0
        %v2335 = vadd.f32 %v2277, %v2312
        %v2336 = vadd.f32 %v2278, %v2315
        %v2337 = vadd.f32 %v2279, %v2318
        %v2338 = vadd.f32 %v2280, %v2321
        %v2339 = vadd.f32 %v2281, %v2324
        %v2340 = vadd.f32 %v2282, %v2327
        %v2341 = vadd.f32 %v2283, %v2330
        %v2342 = vadd.f32 %v2284, %v2333
        %v2344 = vrot.slane %v1822, 1
        %v2345 = vrot.slane %v1823, 1
        %v2346 = vsel %vm1834, %v2344, %v2345
        %s2347 = scalar_lea.vmem %s3, 96
        %v2348 = vld [vmem:[%s2347] sm:$0xff]
        %v2349 = vld [vmem:[%s2347 + $0x8] sm:$0x3]
        %v2350 = vsel %vm493, %v2346, 0
        %v2353 = vsel %vm1892, %v2349, 0
        %2355 = vmatpush.msra.mxu0 0.0
        %2356 = vmatpush.msra.mxu0 0.0
        %2357 = vmatpush.msra.mxu0 0.0
        %2358 = vmatpush.msra.mxu0 0.0
        %2359 = vmatpush.msra.mxu0 0.0
        %2360 = vmatpush.msra.mxu0 0.0
        %2361 = vmatpush.msra.mxu0 0.0
        %2362 = vmatpush.msra.mxu0 0.0
        %2363 = vmatpush.msra.mxu0 0.0
        %2364 = vmatpush.msra.mxu0 0.0
        %2365 = vmatpush.msra.mxu0 0.0
        %2366 = vmatpush.msra.mxu0 0.0
        %2367 = vmatpush.msra.mxu0 0.0
        %2368 = vmatpush.msra.mxu0 0.0
        %2369 = vmatpush.msra.mxu0 %v2353
        %2370 = vmatpush.msra.mxu0 %v2348
        %2371 = vmatmul.f32.gmra.mxu0 %v1878
        %v2372 = vpop.f32.mrf.mxu0
        %v2373 = vadd.f32 0.0, %v2372
        %2374 = vmatmul.f32.gmra.mxu0 %v1880
        %v2375 = vpop.f32.mrf.mxu0
        %v2376 = vadd.f32 0.0, %v2375
        %2377 = vmatmul.f32.gmra.mxu0 %v1882
        %v2378 = vpop.f32.mrf.mxu0
        %v2379 = vadd.f32 0.0, %v2378
        %2380 = vmatmul.f32.gmra.mxu0 %v1884
        %v2381 = vpop.f32.mrf.mxu0
        %v2382 = vadd.f32 0.0, %v2381
        %2383 = vmatmul.f32.gmra.mxu0 %v1886
        %v2384 = vpop.f32.mrf.mxu0
        %v2385 = vadd.f32 0.0, %v2384
        %2386 = vmatmul.f32.gmra.mxu0 %v1888
        %v2387 = vpop.f32.mrf.mxu0
        %v2388 = vadd.f32 0.0, %v2387
        %2389 = vmatmul.f32.gmra.mxu0 %v1890
        %v2390 = vpop.f32.mrf.mxu0
        %v2391 = vadd.f32 0.0, %v2390
        %2392 = vmatmul.f32.gmra.mxu0 %v2350
        %v2393 = vpop.f32.mrf.mxu0
        %v2394 = vadd.f32 0.0, %v2393
        %2395 = vdwg.mxu0
        %v2396 = vadd.f32 %v2335, %v2373
        %v2397 = vadd.f32 %v2336, %v2376
        %v2398 = vadd.f32 %v2337, %v2379
        %v2399 = vadd.f32 %v2338, %v2382
        %v2400 = vadd.f32 %v2339, %v2385
        %v2401 = vadd.f32 %v2340, %v2388
        %v2402 = vadd.f32 %v2341, %v2391
        %v2403 = vadd.f32 %v2342, %v2394
        %v2404 = vrot.slane %v1822, 2
        %v2405 = vrot.slane %v1823, 2
        %v2406 = vsel %vm1997, %v2404, %v2405
        %s2407 = scalar_lea.vmem %s3, 112
        %v2408 = vld [vmem:[%s2407] sm:$0xff]
        %v2409 = vld [vmem:[%s2407 + $0x8] sm:$0x3]
        %v2410 = vsel %vm493, %v2406, 0
        %v2413 = vsel %vm1892, %v2409, 0
        %2415 = vmatpush.msra.mxu0 0.0
        %2416 = vmatpush.msra.mxu0 0.0
        %2417 = vmatpush.msra.mxu0 0.0
        %2418 = vmatpush.msra.mxu0 0.0
        %2419 = vmatpush.msra.mxu0 0.0
        %2420 = vmatpush.msra.mxu0 0.0
        %2421 = vmatpush.msra.mxu0 0.0
        %2422 = vmatpush.msra.mxu0 0.0
        %2423 = vmatpush.msra.mxu0 0.0
        %2424 = vmatpush.msra.mxu0 0.0
        %2425 = vmatpush.msra.mxu0 0.0
        %2426 = vmatpush.msra.mxu0 0.0
        %2427 = vmatpush.msra.mxu0 0.0
        %2428 = vmatpush.msra.mxu0 0.0
        %2429 = vmatpush.msra.mxu0 %v2413
        %2430 = vmatpush.msra.mxu0 %v2408
        %2431 = vmatmul.f32.gmra.mxu0 %v2027
        %v2432 = vpop.f32.mrf.mxu0
        %v2433 = vadd.f32 0.0, %v2432
        %2434 = vmatmul.f32.gmra.mxu0 %v2029
        %v2435 = vpop.f32.mrf.mxu0
        %v2436 = vadd.f32 0.0, %v2435
        %2437 = vmatmul.f32.gmra.mxu0 %v2031
        %v2438 = vpop.f32.mrf.mxu0
        %v2439 = vadd.f32 0.0, %v2438
        %2440 = vmatmul.f32.gmra.mxu0 %v2033
        %v2441 = vpop.f32.mrf.mxu0
        %v2442 = vadd.f32 0.0, %v2441
        %2443 = vmatmul.f32.gmra.mxu0 %v2035
        %v2444 = vpop.f32.mrf.mxu0
        %v2445 = vadd.f32 0.0, %v2444
        %2446 = vmatmul.f32.gmra.mxu0 %v2037
        %v2447 = vpop.f32.mrf.mxu0
        %v2448 = vadd.f32 0.0, %v2447
        %2449 = vmatmul.f32.gmra.mxu0 %v2039
        %v2450 = vpop.f32.mrf.mxu0
        %v2451 = vadd.f32 0.0, %v2450
        %2452 = vmatmul.f32.gmra.mxu0 %v2410
        %v2453 = vpop.f32.mrf.mxu0
        %v2454 = vadd.f32 0.0, %v2453
        %2455 = vdwg.mxu0
        %v2456 = vadd.f32 %v2396, %v2433
        %v2457 = vadd.f32 %v2397, %v2436
        %v2458 = vadd.f32 %v2398, %v2439
        %v2459 = vadd.f32 %v2399, %v2442
        %v2460 = vadd.f32 %v2400, %v2445
        %v2461 = vadd.f32 %v2401, %v2448
        %v2462 = vadd.f32 %v2402, %v2451
        %v2463 = vadd.f32 %v2403, %v2454
        %v2464 = vrot.slane %v1822, 3
        %v2465 = vrot.slane %v1823, 3
        %v2466 = vsel %vm2093, %v2464, %v2465
        %s2467 = scalar_lea.vmem %s3, 128
        %v2468 = vld [vmem:[%s2467] sm:$0xff]
        %v2469 = vld [vmem:[%s2467 + $0x8] sm:$0x3]
        %v2470 = vsel %vm493, %v2466, 0
        %v2473 = vsel %vm1892, %v2469, 0
        %2475 = vmatpush.msra.mxu0 0.0
        %2476 = vmatpush.msra.mxu0 0.0
        %2477 = vmatpush.msra.mxu0 0.0
        %2478 = vmatpush.msra.mxu0 0.0
        %2479 = vmatpush.msra.mxu0 0.0
        %2480 = vmatpush.msra.mxu0 0.0
        %2481 = vmatpush.msra.mxu0 0.0
        %2482 = vmatpush.msra.mxu0 0.0
        %2483 = vmatpush.msra.mxu0 0.0
        %2484 = vmatpush.msra.mxu0 0.0
        %2485 = vmatpush.msra.mxu0 0.0
        %2486 = vmatpush.msra.mxu0 0.0
        %2487 = vmatpush.msra.mxu0 0.0
        %2488 = vmatpush.msra.mxu0 0.0
        %2489 = vmatpush.msra.mxu0 %v2473
        %2490 = vmatpush.msra.mxu0 %v2468
        %2491 = vmatmul.f32.gmra.mxu0 %v2123
        %v2492 = vpop.f32.mrf.mxu0
        %v2493 = vadd.f32 0.0, %v2492
        %2494 = vmatmul.f32.gmra.mxu0 %v2125
        %v2495 = vpop.f32.mrf.mxu0
        %v2496 = vadd.f32 0.0, %v2495
        %2497 = vmatmul.f32.gmra.mxu0 %v2127
        %v2498 = vpop.f32.mrf.mxu0
        %v2499 = vadd.f32 0.0, %v2498
        %2500 = vmatmul.f32.gmra.mxu0 %v2129
        %v2501 = vpop.f32.mrf.mxu0
        %v2502 = vadd.f32 0.0, %v2501
        %2503 = vmatmul.f32.gmra.mxu0 %v2131
        %v2504 = vpop.f32.mrf.mxu0
        %v2505 = vadd.f32 0.0, %v2504
        %2506 = vmatmul.f32.gmra.mxu0 %v2133
        %v2507 = vpop.f32.mrf.mxu0
        %v2508 = vadd.f32 0.0, %v2507
        %2509 = vmatmul.f32.gmra.mxu0 %v2135
        %v2510 = vpop.f32.mrf.mxu0
        %v2511 = vadd.f32 0.0, %v2510
        %2512 = vmatmul.f32.gmra.mxu0 %v2470
        %v2513 = vpop.f32.mrf.mxu0
        %v2514 = vadd.f32 0.0, %v2513
        %2515 = vdwg.mxu0
        %v2516 = vadd.f32 %v2456, %v2493
        %v2517 = vadd.f32 %v2457, %v2496
        %v2518 = vadd.f32 %v2458, %v2499
        %v2519 = vadd.f32 %v2459, %v2502
        %v2520 = vadd.f32 %v2460, %v2505
        %v2521 = vadd.f32 %v2461, %v2508
        %v2522 = vadd.f32 %v2462, %v2511
        %v2523 = vadd.f32 %v2463, %v2514
        %v2524 = vrot.slane %v1822, 4
        %v2525 = vrot.slane %v1823, 4
        %v2526 = vsel %vm2189, %v2524, %v2525
        %s2527 = scalar_lea.vmem %s3, 144
        %v2528 = vld [vmem:[%s2527] sm:$0xff]
        %v2529 = vld [vmem:[%s2527 + $0x8] sm:$0x3]
        %v2530 = vsel %vm493, %v2526, 0
        %v2533 = vsel %vm1892, %v2529, 0
        %2535 = vmatpush.msra.mxu0 0.0
        %2536 = vmatpush.msra.mxu0 0.0
        %2537 = vmatpush.msra.mxu0 0.0
        %2538 = vmatpush.msra.mxu0 0.0
        %2539 = vmatpush.msra.mxu0 0.0
        %2540 = vmatpush.msra.mxu0 0.0
        %2541 = vmatpush.msra.mxu0 0.0
        %2542 = vmatpush.msra.mxu0 0.0
        %2543 = vmatpush.msra.mxu0 0.0
        %2544 = vmatpush.msra.mxu0 0.0
        %2545 = vmatpush.msra.mxu0 0.0
        %2546 = vmatpush.msra.mxu0 0.0
        %2547 = vmatpush.msra.mxu0 0.0
        %2548 = vmatpush.msra.mxu0 0.0
        %2549 = vmatpush.msra.mxu0 %v2533
        %2550 = vmatpush.msra.mxu0 %v2528
        %2551 = vmatmul.f32.gmra.mxu0 %v2219
        %v2552 = vpop.f32.mrf.mxu0
        %v2553 = vadd.f32 0.0, %v2552
        %2554 = vmatmul.f32.gmra.mxu0 %v2221
        %v2555 = vpop.f32.mrf.mxu0
        %v2556 = vadd.f32 0.0, %v2555
        %2557 = vmatmul.f32.gmra.mxu0 %v2223
        %v2558 = vpop.f32.mrf.mxu0
        %v2559 = vadd.f32 0.0, %v2558
        %2560 = vmatmul.f32.gmra.mxu0 %v2225
        %v2561 = vpop.f32.mrf.mxu0
        %v2562 = vadd.f32 0.0, %v2561
        %2563 = vmatmul.f32.gmra.mxu0 %v2227
        %v2564 = vpop.f32.mrf.mxu0
        %v2565 = vadd.f32 0.0, %v2564
        %2566 = vmatmul.f32.gmra.mxu0 %v2229
        %v2567 = vpop.f32.mrf.mxu0
        %v2568 = vadd.f32 0.0, %v2567
        %2569 = vmatmul.f32.gmra.mxu0 %v2231
        %v2570 = vpop.f32.mrf.mxu0
        %v2571 = vadd.f32 0.0, %v2570
        %2572 = vmatmul.f32.gmra.mxu0 %v2530
        %v2573 = vpop.f32.mrf.mxu0
        %v2574 = vadd.f32 0.0, %v2573
        %2575 = vdwg.mxu0
        %v2576 = vadd.f32 %v2516, %v2553
        %v2577 = vadd.f32 %v2517, %v2556
        %v2578 = vadd.f32 %v2518, %v2559
        %v2579 = vadd.f32 %v2519, %v2562
        %v2580 = vadd.f32 %v2520, %v2565
        %v2581 = vadd.f32 %v2521, %v2568
        %v2582 = vadd.f32 %v2522, %v2571
        %v2583 = vadd.f32 %v2523, %v2574
        %s2584 = scalar_lea.vmem %s3, 160
        %v2585 = vld [vmem:[%s2584] sm:$0xff]
        %v2586 = vld [vmem:[%s2584 + $0x8] sm:$0x3]
        %v2588 = vsel %vm493, %v1824, 0
        %v2591 = vsel %vm1892, %v2586, 0
        %2593 = vmatpush.msra.mxu0 0.0
        %2594 = vmatpush.msra.mxu0 0.0
        %2595 = vmatpush.msra.mxu0 0.0
        %2596 = vmatpush.msra.mxu0 0.0
        %2597 = vmatpush.msra.mxu0 0.0
        %2598 = vmatpush.msra.mxu0 0.0
        %2599 = vmatpush.msra.mxu0 0.0
        %2600 = vmatpush.msra.mxu0 0.0
        %2601 = vmatpush.msra.mxu0 0.0
        %2602 = vmatpush.msra.mxu0 0.0
        %2603 = vmatpush.msra.mxu0 0.0
        %2604 = vmatpush.msra.mxu0 0.0
        %2605 = vmatpush.msra.mxu0 0.0
        %2606 = vmatpush.msra.mxu0 0.0
        %2607 = vmatpush.msra.mxu0 %v2591
        %2608 = vmatpush.msra.mxu0 %v2585
        %2609 = vmatmul.f32.gmra.mxu0 %v1941
        %v2610 = vpop.f32.mrf.mxu0
        %v2611 = vadd.f32 0.0, %v2610
        %2612 = vmatmul.f32.gmra.mxu0 %v1943
        %v2613 = vpop.f32.mrf.mxu0
        %v2614 = vadd.f32 0.0, %v2613
        %2615 = vmatmul.f32.gmra.mxu0 %v1945
        %v2616 = vpop.f32.mrf.mxu0
        %v2617 = vadd.f32 0.0, %v2616
        %2618 = vmatmul.f32.gmra.mxu0 %v1947
        %v2619 = vpop.f32.mrf.mxu0
        %v2620 = vadd.f32 0.0, %v2619
        %2621 = vmatmul.f32.gmra.mxu0 %v1949
        %v2622 = vpop.f32.mrf.mxu0
        %v2623 = vadd.f32 0.0, %v2622
        %2624 = vmatmul.f32.gmra.mxu0 %v1951
        %v2625 = vpop.f32.mrf.mxu0
        %v2626 = vadd.f32 0.0, %v2625
        %2627 = vmatmul.f32.gmra.mxu0 %v2289
        %v2628 = vpop.f32.mrf.mxu0
        %v2629 = vadd.f32 0.0, %v2628
        %2630 = vmatmul.f32.gmra.mxu0 %v2588
        %v2631 = vpop.f32.mrf.mxu0
        %v2632 = vadd.f32 0.0, %v2631
        %2633 = vdwg.mxu0
        %v2634 = vadd.f32 %v2576, %v2611
        %v2635 = vadd.f32 %v2577, %v2614
        %v2636 = vadd.f32 %v2578, %v2617
        %v2637 = vadd.f32 %v2579, %v2620
        %v2638 = vadd.f32 %v2580, %v2623
        %v2639 = vadd.f32 %v2581, %v2626
        %v2640 = vadd.f32 %v2582, %v2629
        %v2641 = vadd.f32 %v2583, %v2632
        %v2643 = vrot.slane %v1824, 1
        %v2644 = vrot.slane %v1825, 1
        %v2645 = vsel %vm1834, %v2643, %v2644
        %s2646 = scalar_lea.vmem %s3, 176
        %v2647 = vld [vmem:[%s2646] sm:$0xff]
        %v2648 = vld [vmem:[%s2646 + $0x8] sm:$0x3]
        %v2649 = vsel %vm493, %v2645, 0
        %v2652 = vsel %vm1892, %v2648, 0
        %2654 = vmatpush.msra.mxu0 0.0
        %2655 = vmatpush.msra.mxu0 0.0
        %2656 = vmatpush.msra.mxu0 0.0
        %2657 = vmatpush.msra.mxu0 0.0
        %2658 = vmatpush.msra.mxu0 0.0
        %2659 = vmatpush.msra.mxu0 0.0
        %2660 = vmatpush.msra.mxu0 0.0
        %2661 = vmatpush.msra.mxu0 0.0
        %2662 = vmatpush.msra.mxu0 0.0
        %2663 = vmatpush.msra.mxu0 0.0
        %2664 = vmatpush.msra.mxu0 0.0
        %2665 = vmatpush.msra.mxu0 0.0
        %2666 = vmatpush.msra.mxu0 0.0
        %2667 = vmatpush.msra.mxu0 0.0
        %2668 = vmatpush.msra.mxu0 %v2652
        %2669 = vmatpush.msra.mxu0 %v2647
        %2670 = vmatmul.f32.gmra.mxu0 %v1880
        %v2671 = vpop.f32.mrf.mxu0
        %v2672 = vadd.f32 0.0, %v2671
        %2673 = vmatmul.f32.gmra.mxu0 %v1882
        %v2674 = vpop.f32.mrf.mxu0
        %v2675 = vadd.f32 0.0, %v2674
        %2676 = vmatmul.f32.gmra.mxu0 %v1884
        %v2677 = vpop.f32.mrf.mxu0
        %v2678 = vadd.f32 0.0, %v2677
        %2679 = vmatmul.f32.gmra.mxu0 %v1886
        %v2680 = vpop.f32.mrf.mxu0
        %v2681 = vadd.f32 0.0, %v2680
        %2682 = vmatmul.f32.gmra.mxu0 %v1888
        %v2683 = vpop.f32.mrf.mxu0
        %v2684 = vadd.f32 0.0, %v2683
        %2685 = vmatmul.f32.gmra.mxu0 %v1890
        %v2686 = vpop.f32.mrf.mxu0
        %v2687 = vadd.f32 0.0, %v2686
        %2688 = vmatmul.f32.gmra.mxu0 %v2350
        %v2689 = vpop.f32.mrf.mxu0
        %v2690 = vadd.f32 0.0, %v2689
        %2691 = vmatmul.f32.gmra.mxu0 %v2649
        %v2692 = vpop.f32.mrf.mxu0
        %v2693 = vadd.f32 0.0, %v2692
        %2694 = vdwg.mxu0
        %v2695 = vadd.f32 %v2634, %v2672
        %v2696 = vadd.f32 %v2635, %v2675
        %v2697 = vadd.f32 %v2636, %v2678
        %v2698 = vadd.f32 %v2637, %v2681
        %v2699 = vadd.f32 %v2638, %v2684
        %v2700 = vadd.f32 %v2639, %v2687
        %v2701 = vadd.f32 %v2640, %v2690
        %v2702 = vadd.f32 %v2641, %v2693
        %v2703 = vrot.slane %v1824, 2
        %v2704 = vrot.slane %v1825, 2
        %v2705 = vsel %vm1997, %v2703, %v2704
        %s2706 = scalar_lea.vmem %s3, 192
        %v2707 = vld [vmem:[%s2706] sm:$0xff]
        %v2708 = vld [vmem:[%s2706 + $0x8] sm:$0x3]
        %v2709 = vsel %vm493, %v2705, 0
        %v2712 = vsel %vm1892, %v2708, 0
        %2714 = vmatpush.msra.mxu0 0.0
        %2715 = vmatpush.msra.mxu0 0.0
        %2716 = vmatpush.msra.mxu0 0.0
        %2717 = vmatpush.msra.mxu0 0.0
        %2718 = vmatpush.msra.mxu0 0.0
        %2719 = vmatpush.msra.mxu0 0.0
        %2720 = vmatpush.msra.mxu0 0.0
        %2721 = vmatpush.msra.mxu0 0.0
        %2722 = vmatpush.msra.mxu0 0.0
        %2723 = vmatpush.msra.mxu0 0.0
        %2724 = vmatpush.msra.mxu0 0.0
        %2725 = vmatpush.msra.mxu0 0.0
        %2726 = vmatpush.msra.mxu0 0.0
        %2727 = vmatpush.msra.mxu0 0.0
        %2728 = vmatpush.msra.mxu0 %v2712
        %2729 = vmatpush.msra.mxu0 %v2707
        %2730 = vmatmul.f32.gmra.mxu0 %v2029
        %v2731 = vpop.f32.mrf.mxu0
        %v2732 = vadd.f32 0.0, %v2731
        %2733 = vmatmul.f32.gmra.mxu0 %v2031
        %v2734 = vpop.f32.mrf.mxu0
        %v2735 = vadd.f32 0.0, %v2734
        %2736 = vmatmul.f32.gmra.mxu0 %v2033
        %v2737 = vpop.f32.mrf.mxu0
        %v2738 = vadd.f32 0.0, %v2737
        %2739 = vmatmul.f32.gmra.mxu0 %v2035
        %v2740 = vpop.f32.mrf.mxu0
        %v2741 = vadd.f32 0.0, %v2740
        %2742 = vmatmul.f32.gmra.mxu0 %v2037
        %v2743 = vpop.f32.mrf.mxu0
        %v2744 = vadd.f32 0.0, %v2743
        %2745 = vmatmul.f32.gmra.mxu0 %v2039
        %v2746 = vpop.f32.mrf.mxu0
        %v2747 = vadd.f32 0.0, %v2746
        %2748 = vmatmul.f32.gmra.mxu0 %v2410
        %v2749 = vpop.f32.mrf.mxu0
        %v2750 = vadd.f32 0.0, %v2749
        %2751 = vmatmul.f32.gmra.mxu0 %v2709
        %v2752 = vpop.f32.mrf.mxu0
        %v2753 = vadd.f32 0.0, %v2752
        %2754 = vdwg.mxu0
        %v2755 = vadd.f32 %v2695, %v2732
        %v2756 = vadd.f32 %v2696, %v2735
        %v2757 = vadd.f32 %v2697, %v2738
        %v2758 = vadd.f32 %v2698, %v2741
        %v2759 = vadd.f32 %v2699, %v2744
        %v2760 = vadd.f32 %v2700, %v2747
        %v2761 = vadd.f32 %v2701, %v2750
        %v2762 = vadd.f32 %v2702, %v2753
        %v2763 = vrot.slane %v1824, 3
        %v2764 = vrot.slane %v1825, 3
        %v2765 = vsel %vm2093, %v2763, %v2764
        %s2766 = scalar_lea.vmem %s3, 208
        %v2767 = vld [vmem:[%s2766] sm:$0xff]
        %v2768 = vld [vmem:[%s2766 + $0x8] sm:$0x3]
        %v2769 = vsel %vm493, %v2765, 0
        %v2772 = vsel %vm1892, %v2768, 0
        %2774 = vmatpush.msra.mxu0 0.0
        %2775 = vmatpush.msra.mxu0 0.0
        %2776 = vmatpush.msra.mxu0 0.0
        %2777 = vmatpush.msra.mxu0 0.0
        %2778 = vmatpush.msra.mxu0 0.0
        %2779 = vmatpush.msra.mxu0 0.0
        %2780 = vmatpush.msra.mxu0 0.0
        %2781 = vmatpush.msra.mxu0 0.0
        %2782 = vmatpush.msra.mxu0 0.0
        %2783 = vmatpush.msra.mxu0 0.0
        %2784 = vmatpush.msra.mxu0 0.0
        %2785 = vmatpush.msra.mxu0 0.0
        %2786 = vmatpush.msra.mxu0 0.0
        %2787 = vmatpush.msra.mxu0 0.0
        %2788 = vmatpush.msra.mxu0 %v2772
        %2789 = vmatpush.msra.mxu0 %v2767
        %2790 = vmatmul.f32.gmra.mxu0 %v2125
        %v2791 = vpop.f32.mrf.mxu0
        %v2792 = vadd.f32 0.0, %v2791
        %2793 = vmatmul.f32.gmra.mxu0 %v2127
        %v2794 = vpop.f32.mrf.mxu0
        %v2795 = vadd.f32 0.0, %v2794
        %2796 = vmatmul.f32.gmra.mxu0 %v2129
        %v2797 = vpop.f32.mrf.mxu0
        %v2798 = vadd.f32 0.0, %v2797
        %2799 = vmatmul.f32.gmra.mxu0 %v2131
        %v2800 = vpop.f32.mrf.mxu0
        %v2801 = vadd.f32 0.0, %v2800
        %2802 = vmatmul.f32.gmra.mxu0 %v2133
        %v2803 = vpop.f32.mrf.mxu0
        %v2804 = vadd.f32 0.0, %v2803
        %2805 = vmatmul.f32.gmra.mxu0 %v2135
        %v2806 = vpop.f32.mrf.mxu0
        %v2807 = vadd.f32 0.0, %v2806
        %2808 = vmatmul.f32.gmra.mxu0 %v2470
        %v2809 = vpop.f32.mrf.mxu0
        %v2810 = vadd.f32 0.0, %v2809
        %2811 = vmatmul.f32.gmra.mxu0 %v2769
        %v2812 = vpop.f32.mrf.mxu0
        %v2813 = vadd.f32 0.0, %v2812
        %2814 = vdwg.mxu0
        %v2815 = vadd.f32 %v2755, %v2792
        %v2816 = vadd.f32 %v2756, %v2795
        %v2817 = vadd.f32 %v2757, %v2798
        %v2818 = vadd.f32 %v2758, %v2801
        %v2819 = vadd.f32 %v2759, %v2804
        %v2820 = vadd.f32 %v2760, %v2807
        %v2821 = vadd.f32 %v2761, %v2810
        %v2822 = vadd.f32 %v2762, %v2813
        %v2823 = vrot.slane %v1824, 4
        %v2824 = vrot.slane %v1825, 4
        %v2825 = vsel %vm2189, %v2823, %v2824
        %s2826 = scalar_lea.vmem %s3, 224
        %v2827 = vld [vmem:[%s2826] sm:$0xff]
        %v2828 = vld [vmem:[%s2826 + $0x8] sm:$0x3]
        %v2829 = vsel %vm493, %v2825, 0
        %v2832 = vsel %vm1892, %v2828, 0
        %2834 = vmatpush.msra.mxu0 0.0
        %2835 = vmatpush.msra.mxu0 0.0
        %2836 = vmatpush.msra.mxu0 0.0
        %2837 = vmatpush.msra.mxu0 0.0
        %2838 = vmatpush.msra.mxu0 0.0
        %2839 = vmatpush.msra.mxu0 0.0
        %2840 = vmatpush.msra.mxu0 0.0
        %2841 = vmatpush.msra.mxu0 0.0
        %2842 = vmatpush.msra.mxu0 0.0
        %2843 = vmatpush.msra.mxu0 0.0
        %2844 = vmatpush.msra.mxu0 0.0
        %2845 = vmatpush.msra.mxu0 0.0
        %2846 = vmatpush.msra.mxu0 0.0
        %2847 = vmatpush.msra.mxu0 0.0
        %2848 = vmatpush.msra.mxu0 %v2832
        %2849 = vmatpush.msra.mxu0 %v2827
        %2850 = vmatmul.f32.gmra.mxu0 %v2221
        %v2851 = vpop.f32.mrf.mxu0
        %v2852 = vadd.f32 0.0, %v2851
        %2853 = vmatmul.f32.gmra.mxu0 %v2223
        %v2854 = vpop.f32.mrf.mxu0
        %v2855 = vadd.f32 0.0, %v2854
        %2856 = vmatmul.f32.gmra.mxu0 %v2225
        %v2857 = vpop.f32.mrf.mxu0
        %v2858 = vadd.f32 0.0, %v2857
        %2859 = vmatmul.f32.gmra.mxu0 %v2227
        %v2860 = vpop.f32.mrf.mxu0
        %v2861 = vadd.f32 0.0, %v2860
        %2862 = vmatmul.f32.gmra.mxu0 %v2229
        %v2863 = vpop.f32.mrf.mxu0
        %v2864 = vadd.f32 0.0, %v2863
        %2865 = vmatmul.f32.gmra.mxu0 %v2231
        %v2866 = vpop.f32.mrf.mxu0
        %v2867 = vadd.f32 0.0, %v2866
        %2868 = vmatmul.f32.gmra.mxu0 %v2530
        %v2869 = vpop.f32.mrf.mxu0
        %v2870 = vadd.f32 0.0, %v2869
        %2871 = vmatmul.f32.gmra.mxu0 %v2829
        %v2872 = vpop.f32.mrf.mxu0
        %v2873 = vadd.f32 0.0, %v2872
        %2874 = vdwg.mxu0
        %v2875 = vadd.f32 %v2815, %v2852
        %v2876 = vadd.f32 %v2816, %v2855
        %v2877 = vadd.f32 %v2817, %v2858
        %v2878 = vadd.f32 %v2818, %v2861
        %v2879 = vadd.f32 %v2819, %v2864
        %v2880 = vadd.f32 %v2820, %v2867
        %v2881 = vadd.f32 %v2821, %v2870
        %v2882 = vadd.f32 %v2822, %v2873
        %s2883 = scalar_lea.vmem %s3, 240
        %v2884 = vld [vmem:[%s2883] sm:$0xff]
        %v2885 = vld [vmem:[%s2883 + $0x8] sm:$0x3]
        %v2887 = vsel %vm493, %v1826, 0
        %v2890 = vsel %vm1892, %v2885, 0
        %2892 = vmatpush.msra.mxu0 0.0
        %2893 = vmatpush.msra.mxu0 0.0
        %2894 = vmatpush.msra.mxu0 0.0
        %2895 = vmatpush.msra.mxu0 0.0
        %2896 = vmatpush.msra.mxu0 0.0
        %2897 = vmatpush.msra.mxu0 0.0
        %2898 = vmatpush.msra.mxu0 0.0
        %2899 = vmatpush.msra.mxu0 0.0
        %2900 = vmatpush.msra.mxu0 0.0
        %2901 = vmatpush.msra.mxu0 0.0
        %2902 = vmatpush.msra.mxu0 0.0
        %2903 = vmatpush.msra.mxu0 0.0
        %2904 = vmatpush.msra.mxu0 0.0
        %2905 = vmatpush.msra.mxu0 0.0
        %2906 = vmatpush.msra.mxu0 %v2890
        %2907 = vmatpush.msra.mxu0 %v2884
        %2908 = vmatmul.f32.gmra.mxu0 %v1943
        %v2909 = vpop.f32.mrf.mxu0
        %v2910 = vadd.f32 0.0, %v2909
        %2911 = vmatmul.f32.gmra.mxu0 %v1945
        %v2912 = vpop.f32.mrf.mxu0
        %v2913 = vadd.f32 0.0, %v2912
        %2914 = vmatmul.f32.gmra.mxu0 %v1947
        %v2915 = vpop.f32.mrf.mxu0
        %v2916 = vadd.f32 0.0, %v2915
        %2917 = vmatmul.f32.gmra.mxu0 %v1949
        %v2918 = vpop.f32.mrf.mxu0
        %v2919 = vadd.f32 0.0, %v2918
        %2920 = vmatmul.f32.gmra.mxu0 %v1951
        %v2921 = vpop.f32.mrf.mxu0
        %v2922 = vadd.f32 0.0, %v2921
        %2923 = vmatmul.f32.gmra.mxu0 %v2289
        %v2924 = vpop.f32.mrf.mxu0
        %v2925 = vadd.f32 0.0, %v2924
        %2926 = vmatmul.f32.gmra.mxu0 %v2588
        %v2927 = vpop.f32.mrf.mxu0
        %v2928 = vadd.f32 0.0, %v2927
        %2929 = vmatmul.f32.gmra.mxu0 %v2887
        %v2930 = vpop.f32.mrf.mxu0
        %v2931 = vadd.f32 0.0, %v2930
        %2932 = vdwg.mxu0
        %v2933 = vadd.f32 %v2875, %v2910
        %v2934 = vadd.f32 %v2876, %v2913
        %v2935 = vadd.f32 %v2877, %v2916
        %v2936 = vadd.f32 %v2878, %v2919
        %v2937 = vadd.f32 %v2879, %v2922
        %v2938 = vadd.f32 %v2880, %v2925
        %v2939 = vadd.f32 %v2881, %v2928
        %v2940 = vadd.f32 %v2882, %v2931
        %v2942 = vrot.slane %v1826, 1
        %v2943 = vrot.slane %v1827, 1
        %v2944 = vsel %vm1834, %v2942, %v2943
        %s2945 = scalar_lea.vmem %s3, 256
        %v2946 = vld [vmem:[%s2945] sm:$0xff]
        %v2947 = vld [vmem:[%s2945 + $0x8] sm:$0x3]
        %v2948 = vsel %vm493, %v2944, 0
        %v2951 = vsel %vm1892, %v2947, 0
        %2953 = vmatpush.msra.mxu0 0.0
        %2954 = vmatpush.msra.mxu0 0.0
        %2955 = vmatpush.msra.mxu0 0.0
        %2956 = vmatpush.msra.mxu0 0.0
        %2957 = vmatpush.msra.mxu0 0.0
        %2958 = vmatpush.msra.mxu0 0.0
        %2959 = vmatpush.msra.mxu0 0.0
        %2960 = vmatpush.msra.mxu0 0.0
        %2961 = vmatpush.msra.mxu0 0.0
        %2962 = vmatpush.msra.mxu0 0.0
        %2963 = vmatpush.msra.mxu0 0.0
        %2964 = vmatpush.msra.mxu0 0.0
        %2965 = vmatpush.msra.mxu0 0.0
        %2966 = vmatpush.msra.mxu0 0.0
        %2967 = vmatpush.msra.mxu0 %v2951
        %2968 = vmatpush.msra.mxu0 %v2946
        %2969 = vmatmul.f32.gmra.mxu0 %v1882
        %v2970 = vpop.f32.mrf.mxu0
        %v2971 = vadd.f32 0.0, %v2970
        %2972 = vmatmul.f32.gmra.mxu0 %v1884
        %v2973 = vpop.f32.mrf.mxu0
        %v2974 = vadd.f32 0.0, %v2973
        %2975 = vmatmul.f32.gmra.mxu0 %v1886
        %v2976 = vpop.f32.mrf.mxu0
        %v2977 = vadd.f32 0.0, %v2976
        %2978 = vmatmul.f32.gmra.mxu0 %v1888
        %v2979 = vpop.f32.mrf.mxu0
        %v2980 = vadd.f32 0.0, %v2979
        %2981 = vmatmul.f32.gmra.mxu0 %v1890
        %v2982 = vpop.f32.mrf.mxu0
        %v2983 = vadd.f32 0.0, %v2982
        %2984 = vmatmul.f32.gmra.mxu0 %v2350
        %v2985 = vpop.f32.mrf.mxu0
        %v2986 = vadd.f32 0.0, %v2985
        %2987 = vmatmul.f32.gmra.mxu0 %v2649
        %v2988 = vpop.f32.mrf.mxu0
        %v2989 = vadd.f32 0.0, %v2988
        %2990 = vmatmul.f32.gmra.mxu0 %v2948
        %v2991 = vpop.f32.mrf.mxu0
        %v2992 = vadd.f32 0.0, %v2991
        %2993 = vdwg.mxu0
        %v2994 = vadd.f32 %v2933, %v2971
        %v2995 = vadd.f32 %v2934, %v2974
        %v2996 = vadd.f32 %v2935, %v2977
        %v2997 = vadd.f32 %v2936, %v2980
        %v2998 = vadd.f32 %v2937, %v2983
        %v2999 = vadd.f32 %v2938, %v2986
        %v3000 = vadd.f32 %v2939, %v2989
        %v3001 = vadd.f32 %v2940, %v2992
        %v3002 = vrot.slane %v1826, 2
        %v3003 = vrot.slane %v1827, 2
        %v3004 = vsel %vm1997, %v3002, %v3003
        %s3005 = scalar_lea.vmem %s3, 272
        %v3006 = vld [vmem:[%s3005] sm:$0xff]
        %v3007 = vld [vmem:[%s3005 + $0x8] sm:$0x3]
        %v3008 = vsel %vm493, %v3004, 0
        %v3011 = vsel %vm1892, %v3007, 0
        %3013 = vmatpush.msra.mxu0 0.0
        %3014 = vmatpush.msra.mxu0 0.0
        %3015 = vmatpush.msra.mxu0 0.0
        %3016 = vmatpush.msra.mxu0 0.0
        %3017 = vmatpush.msra.mxu0 0.0
        %3018 = vmatpush.msra.mxu0 0.0
        %3019 = vmatpush.msra.mxu0 0.0
        %3020 = vmatpush.msra.mxu0 0.0
        %3021 = vmatpush.msra.mxu0 0.0
        %3022 = vmatpush.msra.mxu0 0.0
        %3023 = vmatpush.msra.mxu0 0.0
        %3024 = vmatpush.msra.mxu0 0.0
        %3025 = vmatpush.msra.mxu0 0.0
        %3026 = vmatpush.msra.mxu0 0.0
        %3027 = vmatpush.msra.mxu0 %v3011
        %3028 = vmatpush.msra.mxu0 %v3006
        %3029 = vmatmul.f32.gmra.mxu0 %v2031
        %v3030 = vpop.f32.mrf.mxu0
        %v3031 = vadd.f32 0.0, %v3030
        %3032 = vmatmul.f32.gmra.mxu0 %v2033
        %v3033 = vpop.f32.mrf.mxu0
        %v3034 = vadd.f32 0.0, %v3033
        %3035 = vmatmul.f32.gmra.mxu0 %v2035
        %v3036 = vpop.f32.mrf.mxu0
        %v3037 = vadd.f32 0.0, %v3036
        %3038 = vmatmul.f32.gmra.mxu0 %v2037
        %v3039 = vpop.f32.mrf.mxu0
        %v3040 = vadd.f32 0.0, %v3039
        %3041 = vmatmul.f32.gmra.mxu0 %v2039
        %v3042 = vpop.f32.mrf.mxu0
        %v3043 = vadd.f32 0.0, %v3042
        %3044 = vmatmul.f32.gmra.mxu0 %v2410
        %v3045 = vpop.f32.mrf.mxu0
        %v3046 = vadd.f32 0.0, %v3045
        %3047 = vmatmul.f32.gmra.mxu0 %v2709
        %v3048 = vpop.f32.mrf.mxu0
        %v3049 = vadd.f32 0.0, %v3048
        %3050 = vmatmul.f32.gmra.mxu0 %v3008
        %v3051 = vpop.f32.mrf.mxu0
        %v3052 = vadd.f32 0.0, %v3051
        %3053 = vdwg.mxu0
        %v3054 = vadd.f32 %v2994, %v3031
        %v3055 = vadd.f32 %v2995, %v3034
        %v3056 = vadd.f32 %v2996, %v3037
        %v3057 = vadd.f32 %v2997, %v3040
        %v3058 = vadd.f32 %v2998, %v3043
        %v3059 = vadd.f32 %v2999, %v3046
        %v3060 = vadd.f32 %v3000, %v3049
        %v3061 = vadd.f32 %v3001, %v3052
        %v3062 = vrot.slane %v1826, 3
        %v3063 = vrot.slane %v1827, 3
        %v3064 = vsel %vm2093, %v3062, %v3063
        %s3065 = scalar_lea.vmem %s3, 288
        %v3066 = vld [vmem:[%s3065] sm:$0xff]
        %v3067 = vld [vmem:[%s3065 + $0x8] sm:$0x3]
        %v3068 = vsel %vm493, %v3064, 0
        %v3071 = vsel %vm1892, %v3067, 0
        %3073 = vmatpush.msra.mxu0 0.0
        %3074 = vmatpush.msra.mxu0 0.0
        %3075 = vmatpush.msra.mxu0 0.0
        %3076 = vmatpush.msra.mxu0 0.0
        %3077 = vmatpush.msra.mxu0 0.0
        %3078 = vmatpush.msra.mxu0 0.0
        %3079 = vmatpush.msra.mxu0 0.0
        %3080 = vmatpush.msra.mxu0 0.0
        %3081 = vmatpush.msra.mxu0 0.0
        %3082 = vmatpush.msra.mxu0 0.0
        %3083 = vmatpush.msra.mxu0 0.0
        %3084 = vmatpush.msra.mxu0 0.0
        %3085 = vmatpush.msra.mxu0 0.0
        %3086 = vmatpush.msra.mxu0 0.0
        %3087 = vmatpush.msra.mxu0 %v3071
        %3088 = vmatpush.msra.mxu0 %v3066
        %3089 = vmatmul.f32.gmra.mxu0 %v2127
        %v3090 = vpop.f32.mrf.mxu0
        %v3091 = vadd.f32 0.0, %v3090
        %3092 = vmatmul.f32.gmra.mxu0 %v2129
        %v3093 = vpop.f32.mrf.mxu0
        %v3094 = vadd.f32 0.0, %v3093
        %3095 = vmatmul.f32.gmra.mxu0 %v2131
        %v3096 = vpop.f32.mrf.mxu0
        %v3097 = vadd.f32 0.0, %v3096
        %3098 = vmatmul.f32.gmra.mxu0 %v2133
        %v3099 = vpop.f32.mrf.mxu0
        %v3100 = vadd.f32 0.0, %v3099
        %3101 = vmatmul.f32.gmra.mxu0 %v2135
        %v3102 = vpop.f32.mrf.mxu0
        %v3103 = vadd.f32 0.0, %v3102
        %3104 = vmatmul.f32.gmra.mxu0 %v2470
        %v3105 = vpop.f32.mrf.mxu0
        %v3106 = vadd.f32 0.0, %v3105
        %3107 = vmatmul.f32.gmra.mxu0 %v2769
        %v3108 = vpop.f32.mrf.mxu0
        %v3109 = vadd.f32 0.0, %v3108
        %3110 = vmatmul.f32.gmra.mxu0 %v3068
        %v3111 = vpop.f32.mrf.mxu0
        %v3112 = vadd.f32 0.0, %v3111
        %3113 = vdwg.mxu0
        %v3114 = vadd.f32 %v3054, %v3091
        %v3115 = vadd.f32 %v3055, %v3094
        %v3116 = vadd.f32 %v3056, %v3097
        %v3117 = vadd.f32 %v3057, %v3100
        %v3118 = vadd.f32 %v3058, %v3103
        %v3119 = vadd.f32 %v3059, %v3106
        %v3120 = vadd.f32 %v3060, %v3109
        %v3121 = vadd.f32 %v3061, %v3112
        %v3122 = vrot.slane %v1826, 4
        %v3123 = vrot.slane %v1827, 4
        %v3124 = vsel %vm2189, %v3122, %v3123
        %s3125 = scalar_lea.vmem %s3, 304
        %v3126 = vld [vmem:[%s3125] sm:$0xff]
        %v3127 = vld [vmem:[%s3125 + $0x8] sm:$0x3]
        %v3128 = vsel %vm493, %v3124, 0
        %v3131 = vsel %vm1892, %v3127, 0
        %3133 = vmatpush.msra.mxu0 0.0
        %3134 = vmatpush.msra.mxu0 0.0
        %3135 = vmatpush.msra.mxu0 0.0
        %3136 = vmatpush.msra.mxu0 0.0
        %3137 = vmatpush.msra.mxu0 0.0
        %3138 = vmatpush.msra.mxu0 0.0
        %3139 = vmatpush.msra.mxu0 0.0
        %3140 = vmatpush.msra.mxu0 0.0
        %3141 = vmatpush.msra.mxu0 0.0
        %3142 = vmatpush.msra.mxu0 0.0
        %3143 = vmatpush.msra.mxu0 0.0
        %3144 = vmatpush.msra.mxu0 0.0
        %3145 = vmatpush.msra.mxu0 0.0
        %3146 = vmatpush.msra.mxu0 0.0
        %3147 = vmatpush.msra.mxu0 %v3131
        %3148 = vmatpush.msra.mxu0 %v3126
        %3149 = vmatmul.f32.gmra.mxu0 %v2223
        %v3150 = vpop.f32.mrf.mxu0
        %v3151 = vadd.f32 0.0, %v3150
        %3152 = vmatmul.f32.gmra.mxu0 %v2225
        %v3153 = vpop.f32.mrf.mxu0
        %v3154 = vadd.f32 0.0, %v3153
        %3155 = vmatmul.f32.gmra.mxu0 %v2227
        %v3156 = vpop.f32.mrf.mxu0
        %v3157 = vadd.f32 0.0, %v3156
        %3158 = vmatmul.f32.gmra.mxu0 %v2229
        %v3159 = vpop.f32.mrf.mxu0
        %v3160 = vadd.f32 0.0, %v3159
        %3161 = vmatmul.f32.gmra.mxu0 %v2231
        %v3162 = vpop.f32.mrf.mxu0
        %v3163 = vadd.f32 0.0, %v3162
        %3164 = vmatmul.f32.gmra.mxu0 %v2530
        %v3165 = vpop.f32.mrf.mxu0
        %v3166 = vadd.f32 0.0, %v3165
        %3167 = vmatmul.f32.gmra.mxu0 %v2829
        %v3168 = vpop.f32.mrf.mxu0
        %v3169 = vadd.f32 0.0, %v3168
        %3170 = vmatmul.f32.gmra.mxu0 %v3128
        %v3171 = vpop.f32.mrf.mxu0
        %v3172 = vadd.f32 0.0, %v3171
        %3173 = vdwg.mxu0
        %v3174 = vadd.f32 %v3114, %v3151
        %v3175 = vadd.f32 %v3115, %v3154
        %v3176 = vadd.f32 %v3116, %v3157
        %v3177 = vadd.f32 %v3117, %v3160
        %v3178 = vadd.f32 %v3118, %v3163
        %v3179 = vadd.f32 %v3119, %v3166
        %v3180 = vadd.f32 %v3120, %v3169
        %v3181 = vadd.f32 %v3121, %v3172
        %s3182 = scalar_lea.vmem %s3, 320
        %v3183 = vld [vmem:[%s3182] sm:$0xff]
        %v3184 = vld [vmem:[%s3182 + $0x8] sm:$0x3]
        %v3186 = vsel %vm493, %v1828, 0
        %v3189 = vsel %vm1892, %v3184, 0
        %3191 = vmatpush.msra.mxu0 0.0
        %3192 = vmatpush.msra.mxu0 0.0
        %3193 = vmatpush.msra.mxu0 0.0
        %3194 = vmatpush.msra.mxu0 0.0
        %3195 = vmatpush.msra.mxu0 0.0
        %3196 = vmatpush.msra.mxu0 0.0
        %3197 = vmatpush.msra.mxu0 0.0
        %3198 = vmatpush.msra.mxu0 0.0
        %3199 = vmatpush.msra.mxu0 0.0
        %3200 = vmatpush.msra.mxu0 0.0
        %3201 = vmatpush.msra.mxu0 0.0
        %3202 = vmatpush.msra.mxu0 0.0
        %3203 = vmatpush.msra.mxu0 0.0
        %3204 = vmatpush.msra.mxu0 0.0
        %3205 = vmatpush.msra.mxu0 %v3189
        %3206 = vmatpush.msra.mxu0 %v3183
        %3207 = vmatmul.f32.gmra.mxu0 %v1945
        %v3208 = vpop.f32.mrf.mxu0
        %v3209 = vadd.f32 0.0, %v3208
        %3210 = vmatmul.f32.gmra.mxu0 %v1947
        %v3211 = vpop.f32.mrf.mxu0
        %v3212 = vadd.f32 0.0, %v3211
        %3213 = vmatmul.f32.gmra.mxu0 %v1949
        %v3214 = vpop.f32.mrf.mxu0
        %v3215 = vadd.f32 0.0, %v3214
        %3216 = vmatmul.f32.gmra.mxu0 %v1951
        %v3217 = vpop.f32.mrf.mxu0
        %v3218 = vadd.f32 0.0, %v3217
        %3219 = vmatmul.f32.gmra.mxu0 %v2289
        %v3220 = vpop.f32.mrf.mxu0
        %v3221 = vadd.f32 0.0, %v3220
        %3222 = vmatmul.f32.gmra.mxu0 %v2588
        %v3223 = vpop.f32.mrf.mxu0
        %v3224 = vadd.f32 0.0, %v3223
        %3225 = vmatmul.f32.gmra.mxu0 %v2887
        %v3226 = vpop.f32.mrf.mxu0
        %v3227 = vadd.f32 0.0, %v3226
        %3228 = vmatmul.f32.gmra.mxu0 %v3186
        %v3229 = vpop.f32.mrf.mxu0
        %v3230 = vadd.f32 0.0, %v3229
        %3231 = vdwg.mxu0
        %v3232 = vadd.f32 %v3174, %v3209
        %v3233 = vadd.f32 %v3175, %v3212
        %v3234 = vadd.f32 %v3176, %v3215
        %v3235 = vadd.f32 %v3177, %v3218
        %v3236 = vadd.f32 %v3178, %v3221
        %v3237 = vadd.f32 %v3179, %v3224
        %v3238 = vadd.f32 %v3180, %v3227
        %v3239 = vadd.f32 %v3181, %v3230
        %v3241 = vrot.slane %v1828, 1
        %v3242 = vrot.slane %v1829, 1
        %v3243 = vsel %vm1834, %v3241, %v3242
        %s3244 = scalar_lea.vmem %s3, 336
        %v3245 = vld [vmem:[%s3244] sm:$0xff]
        %v3246 = vld [vmem:[%s3244 + $0x8] sm:$0x3]
        %v3247 = vsel %vm493, %v3243, 0
        %v3250 = vsel %vm1892, %v3246, 0
        %3252 = vmatpush.msra.mxu0 0.0
        %3253 = vmatpush.msra.mxu0 0.0
        %3254 = vmatpush.msra.mxu0 0.0
        %3255 = vmatpush.msra.mxu0 0.0
        %3256 = vmatpush.msra.mxu0 0.0
        %3257 = vmatpush.msra.mxu0 0.0
        %3258 = vmatpush.msra.mxu0 0.0
        %3259 = vmatpush.msra.mxu0 0.0
        %3260 = vmatpush.msra.mxu0 0.0
        %3261 = vmatpush.msra.mxu0 0.0
        %3262 = vmatpush.msra.mxu0 0.0
        %3263 = vmatpush.msra.mxu0 0.0
        %3264 = vmatpush.msra.mxu0 0.0
        %3265 = vmatpush.msra.mxu0 0.0
        %3266 = vmatpush.msra.mxu0 %v3250
        %3267 = vmatpush.msra.mxu0 %v3245
        %3268 = vmatmul.f32.gmra.mxu0 %v1884
        %v3269 = vpop.f32.mrf.mxu0
        %v3270 = vadd.f32 0.0, %v3269
        %3271 = vmatmul.f32.gmra.mxu0 %v1886
        %v3272 = vpop.f32.mrf.mxu0
        %v3273 = vadd.f32 0.0, %v3272
        %3274 = vmatmul.f32.gmra.mxu0 %v1888
        %v3275 = vpop.f32.mrf.mxu0
        %v3276 = vadd.f32 0.0, %v3275
        %3277 = vmatmul.f32.gmra.mxu0 %v1890
        %v3278 = vpop.f32.mrf.mxu0
        %v3279 = vadd.f32 0.0, %v3278
        %3280 = vmatmul.f32.gmra.mxu0 %v2350
        %v3281 = vpop.f32.mrf.mxu0
        %v3282 = vadd.f32 0.0, %v3281
        %3283 = vmatmul.f32.gmra.mxu0 %v2649
        %v3284 = vpop.f32.mrf.mxu0
        %v3285 = vadd.f32 0.0, %v3284
        %3286 = vmatmul.f32.gmra.mxu0 %v2948
        %v3287 = vpop.f32.mrf.mxu0
        %v3288 = vadd.f32 0.0, %v3287
        %3289 = vmatmul.f32.gmra.mxu0 %v3247
        %v3290 = vpop.f32.mrf.mxu0
        %v3291 = vadd.f32 0.0, %v3290
        %3292 = vdwg.mxu0
        %v3293 = vadd.f32 %v3232, %v3270
        %v3294 = vadd.f32 %v3233, %v3273
        %v3295 = vadd.f32 %v3234, %v3276
        %v3296 = vadd.f32 %v3235, %v3279
        %v3297 = vadd.f32 %v3236, %v3282
        %v3298 = vadd.f32 %v3237, %v3285
        %v3299 = vadd.f32 %v3238, %v3288
        %v3300 = vadd.f32 %v3239, %v3291
        %v3301 = vrot.slane %v1828, 2
        %v3302 = vrot.slane %v1829, 2
        %v3303 = vsel %vm1997, %v3301, %v3302
        %s3304 = scalar_lea.vmem %s3, 352
        %v3305 = vld [vmem:[%s3304] sm:$0xff]
        %v3306 = vld [vmem:[%s3304 + $0x8] sm:$0x3]
        %v3307 = vsel %vm493, %v3303, 0
        %v3310 = vsel %vm1892, %v3306, 0
        %3312 = vmatpush.msra.mxu0 0.0
        %3313 = vmatpush.msra.mxu0 0.0
        %3314 = vmatpush.msra.mxu0 0.0
        %3315 = vmatpush.msra.mxu0 0.0
        %3316 = vmatpush.msra.mxu0 0.0
        %3317 = vmatpush.msra.mxu0 0.0
        %3318 = vmatpush.msra.mxu0 0.0
        %3319 = vmatpush.msra.mxu0 0.0
        %3320 = vmatpush.msra.mxu0 0.0
        %3321 = vmatpush.msra.mxu0 0.0
        %3322 = vmatpush.msra.mxu0 0.0
        %3323 = vmatpush.msra.mxu0 0.0
        %3324 = vmatpush.msra.mxu0 0.0
        %3325 = vmatpush.msra.mxu0 0.0
        %3326 = vmatpush.msra.mxu0 %v3310
        %3327 = vmatpush.msra.mxu0 %v3305
        %3328 = vmatmul.f32.gmra.mxu0 %v2033
        %v3329 = vpop.f32.mrf.mxu0
        %v3330 = vadd.f32 0.0, %v3329
        %3331 = vmatmul.f32.gmra.mxu0 %v2035
        %v3332 = vpop.f32.mrf.mxu0
        %v3333 = vadd.f32 0.0, %v3332
        %3334 = vmatmul.f32.gmra.mxu0 %v2037
        %v3335 = vpop.f32.mrf.mxu0
        %v3336 = vadd.f32 0.0, %v3335
        %3337 = vmatmul.f32.gmra.mxu0 %v2039
        %v3338 = vpop.f32.mrf.mxu0
        %v3339 = vadd.f32 0.0, %v3338
        %3340 = vmatmul.f32.gmra.mxu0 %v2410
        %v3341 = vpop.f32.mrf.mxu0
        %v3342 = vadd.f32 0.0, %v3341
        %3343 = vmatmul.f32.gmra.mxu0 %v2709
        %v3344 = vpop.f32.mrf.mxu0
        %v3345 = vadd.f32 0.0, %v3344
        %3346 = vmatmul.f32.gmra.mxu0 %v3008
        %v3347 = vpop.f32.mrf.mxu0
        %v3348 = vadd.f32 0.0, %v3347
        %3349 = vmatmul.f32.gmra.mxu0 %v3307
        %v3350 = vpop.f32.mrf.mxu0
        %v3351 = vadd.f32 0.0, %v3350
        %3352 = vdwg.mxu0
        %v3353 = vadd.f32 %v3293, %v3330
        %v3354 = vadd.f32 %v3294, %v3333
        %v3355 = vadd.f32 %v3295, %v3336
        %v3356 = vadd.f32 %v3296, %v3339
        %v3357 = vadd.f32 %v3297, %v3342
        %v3358 = vadd.f32 %v3298, %v3345
        %v3359 = vadd.f32 %v3299, %v3348
        %v3360 = vadd.f32 %v3300, %v3351
        %v3361 = vrot.slane %v1828, 3
        %v3362 = vrot.slane %v1829, 3
        %v3363 = vsel %vm2093, %v3361, %v3362
        %s3364 = scalar_lea.vmem %s3, 368
        %v3365 = vld [vmem:[%s3364] sm:$0xff]
        %v3366 = vld [vmem:[%s3364 + $0x8] sm:$0x3]
        %v3367 = vsel %vm493, %v3363, 0
        %v3370 = vsel %vm1892, %v3366, 0
        %3372 = vmatpush.msra.mxu0 0.0
        %3373 = vmatpush.msra.mxu0 0.0
        %3374 = vmatpush.msra.mxu0 0.0
        %3375 = vmatpush.msra.mxu0 0.0
        %3376 = vmatpush.msra.mxu0 0.0
        %3377 = vmatpush.msra.mxu0 0.0
        %3378 = vmatpush.msra.mxu0 0.0
        %3379 = vmatpush.msra.mxu0 0.0
        %3380 = vmatpush.msra.mxu0 0.0
        %3381 = vmatpush.msra.mxu0 0.0
        %3382 = vmatpush.msra.mxu0 0.0
        %3383 = vmatpush.msra.mxu0 0.0
        %3384 = vmatpush.msra.mxu0 0.0
        %3385 = vmatpush.msra.mxu0 0.0
        %3386 = vmatpush.msra.mxu0 %v3370
        %3387 = vmatpush.msra.mxu0 %v3365
        %3388 = vmatmul.f32.gmra.mxu0 %v2129
        %v3389 = vpop.f32.mrf.mxu0
        %v3390 = vadd.f32 0.0, %v3389
        %3391 = vmatmul.f32.gmra.mxu0 %v2131
        %v3392 = vpop.f32.mrf.mxu0
        %v3393 = vadd.f32 0.0, %v3392
        %3394 = vmatmul.f32.gmra.mxu0 %v2133
        %v3395 = vpop.f32.mrf.mxu0
        %v3396 = vadd.f32 0.0, %v3395
        %3397 = vmatmul.f32.gmra.mxu0 %v2135
        %v3398 = vpop.f32.mrf.mxu0
        %v3399 = vadd.f32 0.0, %v3398
        %3400 = vmatmul.f32.gmra.mxu0 %v2470
        %v3401 = vpop.f32.mrf.mxu0
        %v3402 = vadd.f32 0.0, %v3401
        %3403 = vmatmul.f32.gmra.mxu0 %v2769
        %v3404 = vpop.f32.mrf.mxu0
        %v3405 = vadd.f32 0.0, %v3404
        %3406 = vmatmul.f32.gmra.mxu0 %v3068
        %v3407 = vpop.f32.mrf.mxu0
        %v3408 = vadd.f32 0.0, %v3407
        %3409 = vmatmul.f32.gmra.mxu0 %v3367
        %v3410 = vpop.f32.mrf.mxu0
        %v3411 = vadd.f32 0.0, %v3410
        %3412 = vdwg.mxu0
        %v3413 = vadd.f32 %v3353, %v3390
        %v3414 = vadd.f32 %v3354, %v3393
        %v3415 = vadd.f32 %v3355, %v3396
        %v3416 = vadd.f32 %v3356, %v3399
        %v3417 = vadd.f32 %v3357, %v3402
        %v3418 = vadd.f32 %v3358, %v3405
        %v3419 = vadd.f32 %v3359, %v3408
        %v3420 = vadd.f32 %v3360, %v3411
        %v3421 = vrot.slane %v1828, 4
        %v3422 = vrot.slane %v1829, 4
        %v3423 = vsel %vm2189, %v3421, %v3422
        %s3424 = scalar_lea.vmem %s3, 384
        %v3425 = vld [vmem:[%s3424] sm:$0xff]
        %v3426 = vld [vmem:[%s3424 + $0x8] sm:$0x3]
        %v3427 = vsel %vm493, %v3423, 0
        %v3430 = vsel %vm1892, %v3426, 0
        %3432 = vmatpush.msra.mxu0 0.0
        %3433 = vmatpush.msra.mxu0 0.0
        %3434 = vmatpush.msra.mxu0 0.0
        %3435 = vmatpush.msra.mxu0 0.0
        %3436 = vmatpush.msra.mxu0 0.0
        %3437 = vmatpush.msra.mxu0 0.0
        %3438 = vmatpush.msra.mxu0 0.0
        %3439 = vmatpush.msra.mxu0 0.0
        %3440 = vmatpush.msra.mxu0 0.0
        %3441 = vmatpush.msra.mxu0 0.0
        %3442 = vmatpush.msra.mxu0 0.0
        %3443 = vmatpush.msra.mxu0 0.0
        %3444 = vmatpush.msra.mxu0 0.0
        %3445 = vmatpush.msra.mxu0 0.0
        %3446 = vmatpush.msra.mxu0 %v3430
        %3447 = vmatpush.msra.mxu0 %v3425
        %3448 = vmatmul.f32.gmra.mxu0 %v2225
        %v3449 = vpop.f32.mrf.mxu0
        %v3450 = vadd.f32 0.0, %v3449
        %3451 = vmatmul.f32.gmra.mxu0 %v2227
        %v3452 = vpop.f32.mrf.mxu0
        %v3453 = vadd.f32 0.0, %v3452
        %3454 = vmatmul.f32.gmra.mxu0 %v2229
        %v3455 = vpop.f32.mrf.mxu0
        %v3456 = vadd.f32 0.0, %v3455
        %3457 = vmatmul.f32.gmra.mxu0 %v2231
        %v3458 = vpop.f32.mrf.mxu0
        %v3459 = vadd.f32 0.0, %v3458
        %3460 = vmatmul.f32.gmra.mxu0 %v2530
        %v3461 = vpop.f32.mrf.mxu0
        %v3462 = vadd.f32 0.0, %v3461
        %3463 = vmatmul.f32.gmra.mxu0 %v2829
        %v3464 = vpop.f32.mrf.mxu0
        %v3465 = vadd.f32 0.0, %v3464
        %3466 = vmatmul.f32.gmra.mxu0 %v3128
        %v3467 = vpop.f32.mrf.mxu0
        %v3468 = vadd.f32 0.0, %v3467
        %3469 = vmatmul.f32.gmra.mxu0 %v3427
        %v3470 = vpop.f32.mrf.mxu0
        %v3471 = vadd.f32 0.0, %v3470
        %3472 = vdwg.mxu0
        %v3473 = vadd.f32 %v3413, %v3450
        %v3474 = vadd.f32 %v3414, %v3453
        %v3475 = vadd.f32 %v3415, %v3456
        %v3476 = vadd.f32 %v3416, %v3459
        %v3477 = vadd.f32 %v3417, %v3462
        %v3478 = vadd.f32 %v3418, %v3465
        %v3479 = vadd.f32 %v3419, %v3468
        %v3480 = vadd.f32 %v3420, %v3471
        %v3481 = vld [vmem:[%s4] sm:$0x1]
        %v3483 = vperm.slane %v3481, 0
        %v3485 = vadd.f32 %v3473, %v3483
        %v3486 = vadd.f32 %v3474, %v3483
        %v3487 = vadd.f32 %v3475, %v3483
        %v3488 = vadd.f32 %v3476, %v3483
        %v3489 = vadd.f32 %v3477, %v3483
        %v3490 = vadd.f32 %v3478, %v3483
        %v3491 = vadd.f32 %v3479, %v3483
        %v3492 = vadd.f32 %v3480, %v3483
        %v3493 = vmax.f32 %v3485, 0.0
        %v3494 = vmax.f32 %v3486, 0.0
        %v3495 = vmax.f32 %v3487, 0.0
        %v3496 = vmax.f32 %v3488, 0.0
        %v3497 = vmax.f32 %v3489, 0.0
        %v3498 = vmax.f32 %v3490, 0.0
        %v3499 = vmax.f32 %v3491, 0.0
        %v3500 = vmax.f32 %v3492, 0.0
        %v3501 = vld [vmem:[%s6] sm:$0x1]
        %v3502 = vmax.f32 %v3493, %v3494
        %vm3503 = vcmask 64512
        %v3504 = vsel %vm3503, %v341, 0
        %3506 = vmatpush.msra.mxu0 0.0
        %3507 = vmatpush.msra.mxu0 0.0
        %3508 = vmatpush.msra.mxu0 0.0
        %3509 = vmatpush.msra.mxu0 0.0
        %3510 = vmatpush.msra.mxu0 0.0
        %3511 = vmatpush.msra.mxu0 0.0
        %3512 = vmatpush.msra.mxu0 0.0
        %3513 = vmatpush.msra.mxu0 0.0
        %3514 = vmatpush.msra.mxu0 0.0
        %3515 = vmatpush.msra.mxu0 0.0
        %3516 = vmatpush.msra.mxu0 0.0
        %3517 = vmatpush.msra.mxu0 0.0
        %3518 = vmatpush.msra.mxu0 0.0
        %3519 = vmatpush.msra.mxu0 0.0
        %3520 = vmatpush.msra.mxu0 0.0
        %3521 = vmatpush.msra.mxu0 %v3502
        %3522 = vmatmul.f32.gmra.mxu0 %v3504
        %v3523 = vpop.f32.mrf.mxu0
        %v3524 = vadd.f32 0.0, %v3523
        %3525 = vdwg.mxu0
        %v3526 = vsel %vm3503, %v349, 0
        %3528 = vmatpush.msra.mxu0 0.0
        %3529 = vmatpush.msra.mxu0 0.0
        %3530 = vmatpush.msra.mxu0 0.0
        %3531 = vmatpush.msra.mxu0 0.0
        %3532 = vmatpush.msra.mxu0 0.0
        %3533 = vmatpush.msra.mxu0 0.0
        %3534 = vmatpush.msra.mxu0 0.0
        %3535 = vmatpush.msra.mxu0 0.0
        %3536 = vmatpush.msra.mxu0 0.0
        %3537 = vmatpush.msra.mxu0 0.0
        %3538 = vmatpush.msra.mxu0 0.0
        %3539 = vmatpush.msra.mxu0 0.0
        %3540 = vmatpush.msra.mxu0 0.0
        %3541 = vmatpush.msra.mxu0 0.0
        %3542 = vmatpush.msra.mxu0 0.0
        %3543 = vmatpush.msra.mxu0 %v3502
        %3544 = vmatmul.f32.gmra.mxu0 %v3526
        %v3545 = vpop.f32.mrf.mxu0
        %v3546 = vadd.f32 0.0, %v3545
        %3547 = vdwg.mxu0
        %v3548 = vmax.f32 %v3524, %v3546
        %v3549 = vld [vmem:[%s5] sm:$0xff]
        %v3550 = vld [vmem:[%s5 + $0x8] sm:$0xff]
        %v3551 = vld [vmem:[%s5 + $0x10] sm:$0xf]
        %vm3552 = vcmask 162816
        %v3554 = vsel %vm3552, %v3548, 0
        %v3557 = vsel %vm2189, %v3551, 0
        %3559 = vmatpush.msra.mxu0 0.0
        %3560 = vmatpush.msra.mxu0 0.0
        %3561 = vmatpush.msra.mxu0 0.0
        %3562 = vmatpush.msra.mxu0 0.0
        %3563 = vmatpush.msra.mxu0 0.0
        %3564 = vmatpush.msra.mxu0 0.0
        %3565 = vmatpush.msra.mxu0 0.0
        %3566 = vmatpush.msra.mxu0 0.0
        %3567 = vmatpush.msra.mxu0 0.0
        %3568 = vmatpush.msra.mxu0 0.0
        %3569 = vmatpush.msra.mxu0 0.0
        %3570 = vmatpush.msra.mxu0 0.0
        %3571 = vmatpush.msra.mxu0 0.0
        %3572 = vmatpush.msra.mxu0 %v3557
        %3573 = vmatpush.msra.mxu0 %v3550
        %3574 = vmatpush.msra.mxu0 %v3549
        %3575 = vmatmul.f32.gmra.mxu0 %v3554
        %v3576 = vpop.f32.mrf.mxu0
        %v3577 = vadd.f32 0.0, %v3576
        %3578 = vdwg.mxu0
        %v3579 = vadd.f32 %v3501, %v3577
        %s3580 = scalar_lea.vmem %s5, 24
        %v3581 = vld [vmem:[%s3580] sm:$0xff]
        %v3582 = vld [vmem:[%s3580 + $0x8] sm:$0xff]
        %v3583 = vld [vmem:[%s3580 + $0x10] sm:$0xf]
        %v3584 = vrot.slane %v3548, 1
        %v3585 = vsel %vm3552, %v3584, 0
        %v3588 = vsel %vm2189, %v3583, 0
        %3590 = vmatpush.msra.mxu0 0.0
        %3591 = vmatpush.msra.mxu0 0.0
        %3592 = vmatpush.msra.mxu0 0.0
        %3593 = vmatpush.msra.mxu0 0.0
        %3594 = vmatpush.msra.mxu0 0.0
        %3595 = vmatpush.msra.mxu0 0.0
        %3596 = vmatpush.msra.mxu0 0.0
        %3597 = vmatpush.msra.mxu0 0.0
        %3598 = vmatpush.msra.mxu0 0.0
        %3599 = vmatpush.msra.mxu0 0.0
        %3600 = vmatpush.msra.mxu0 0.0
        %3601 = vmatpush.msra.mxu0 0.0
        %3602 = vmatpush.msra.mxu0 0.0
        %3603 = vmatpush.msra.mxu0 %v3588
        %3604 = vmatpush.msra.mxu0 %v3582
        %3605 = vmatpush.msra.mxu0 %v3581
        %3606 = vmatmul.f32.gmra.mxu0 %v3585
        %v3607 = vpop.f32.mrf.mxu0
        %v3608 = vadd.f32 0.0, %v3607
        %3609 = vdwg.mxu0
        %v3610 = vadd.f32 %v3579, %v3608
        %s3611 = scalar_lea.vmem %s5, 48
        %v3612 = vld [vmem:[%s3611] sm:$0xff]
        %v3613 = vld [vmem:[%s3611 + $0x8] sm:$0xff]
        %v3614 = vld [vmem:[%s3611 + $0x10] sm:$0xf]
        %v3615 = vrot.slane %v3548, 2
        %v3616 = vsel %vm3552, %v3615, 0
        %v3619 = vsel %vm2189, %v3614, 0
        %3621 = vmatpush.msra.mxu0 0.0
        %3622 = vmatpush.msra.mxu0 0.0
        %3623 = vmatpush.msra.mxu0 0.0
        %3624 = vmatpush.msra.mxu0 0.0
        %3625 = vmatpush.msra.mxu0 0.0
        %3626 = vmatpush.msra.mxu0 0.0
        %3627 = vmatpush.msra.mxu0 0.0
        %3628 = vmatpush.msra.mxu0 0.0
        %3629 = vmatpush.msra.mxu0 0.0
        %3630 = vmatpush.msra.mxu0 0.0
        %3631 = vmatpush.msra.mxu0 0.0
        %3632 = vmatpush.msra.mxu0 0.0
        %3633 = vmatpush.msra.mxu0 0.0
        %3634 = vmatpush.msra.mxu0 %v3619
        %3635 = vmatpush.msra.mxu0 %v3613
        %3636 = vmatpush.msra.mxu0 %v3612
        %3637 = vmatmul.f32.gmra.mxu0 %v3616
        %v3638 = vpop.f32.mrf.mxu0
        %v3639 = vadd.f32 0.0, %v3638
        %3640 = vdwg.mxu0
        %v3641 = vadd.f32 %v3610, %v3639
        %s3642 = scalar_lea.vmem %s5, 72
        %v3643 = vld [vmem:[%s3642] sm:$0xff]
        %v3644 = vld [vmem:[%s3642 + $0x8] sm:$0xff]
        %v3645 = vld [vmem:[%s3642 + $0x10] sm:$0xf]
        %v3646 = vrot.slane %v3548, 3
        %v3647 = vsel %vm3552, %v3646, 0
        %v3650 = vsel %vm2189, %v3645, 0
        %3652 = vmatpush.msra.mxu0 0.0
        %3653 = vmatpush.msra.mxu0 0.0
        %3654 = vmatpush.msra.mxu0 0.0
        %3655 = vmatpush.msra.mxu0 0.0
        %3656 = vmatpush.msra.mxu0 0.0
        %3657 = vmatpush.msra.mxu0 0.0
        %3658 = vmatpush.msra.mxu0 0.0
        %3659 = vmatpush.msra.mxu0 0.0
        %3660 = vmatpush.msra.mxu0 0.0
        %3661 = vmatpush.msra.mxu0 0.0
        %3662 = vmatpush.msra.mxu0 0.0
        %3663 = vmatpush.msra.mxu0 0.0
        %3664 = vmatpush.msra.mxu0 0.0
        %3665 = vmatpush.msra.mxu0 %v3650
        %3666 = vmatpush.msra.mxu0 %v3644
        %3667 = vmatpush.msra.mxu0 %v3643
        %3668 = vmatmul.f32.gmra.mxu0 %v3647
        %v3669 = vpop.f32.mrf.mxu0
        %v3670 = vadd.f32 0.0, %v3669
        %3671 = vdwg.mxu0
        %v3672 = vadd.f32 %v3641, %v3670
        %v3673 = vmax.f32 %v3495, %v3496
        %3674 = vmatpush.msra.mxu0 0.0
        %3675 = vmatpush.msra.mxu0 0.0
        %3676 = vmatpush.msra.mxu0 0.0
        %3677 = vmatpush.msra.mxu0 0.0
        %3678 = vmatpush.msra.mxu0 0.0
        %3679 = vmatpush.msra.mxu0 0.0
        %3680 = vmatpush.msra.mxu0 0.0
        %3681 = vmatpush.msra.mxu0 0.0
        %3682 = vmatpush.msra.mxu0 0.0
        %3683 = vmatpush.msra.mxu0 0.0
        %3684 = vmatpush.msra.mxu0 0.0
        %3685 = vmatpush.msra.mxu0 0.0
        %3686 = vmatpush.msra.mxu0 0.0
        %3687 = vmatpush.msra.mxu0 0.0
        %3688 = vmatpush.msra.mxu0 0.0
        %3689 = vmatpush.msra.mxu0 %v3673
        %3690 = vmatmul.f32.gmra.mxu0 %v3504
        %v3691 = vpop.f32.mrf.mxu0
        %v3692 = vadd.f32 0.0, %v3691
        %3693 = vdwg.mxu0
        %3694 = vmatpush.msra.mxu0 0.0
        %3695 = vmatpush.msra.mxu0 0.0
        %3696 = vmatpush.msra.mxu0 0.0
        %3697 = vmatpush.msra.mxu0 0.0
        %3698 = vmatpush.msra.mxu0 0.0
        %3699 = vmatpush.msra.mxu0 0.0
        %3700 = vmatpush.msra.mxu0 0.0
        %3701 = vmatpush.msra.mxu0 0.0
        %3702 = vmatpush.msra.mxu0 0.0
        %3703 = vmatpush.msra.mxu0 0.0
        %3704 = vmatpush.msra.mxu0 0.0
        %3705 = vmatpush.msra.mxu0 0.0
        %3706 = vmatpush.msra.mxu0 0.0
        %3707 = vmatpush.msra.mxu0 0.0
        %3708 = vmatpush.msra.mxu0 0.0
        %3709 = vmatpush.msra.mxu0 %v3673
        %3710 = vmatmul.f32.gmra.mxu0 %v3526
        %v3711 = vpop.f32.mrf.mxu0
        %v3712 = vadd.f32 0.0, %v3711
        %3713 = vdwg.mxu0
        %v3714 = vmax.f32 %v3692, %v3712
        %s3715 = scalar_lea.vmem %s5, 96
        %v3716 = vld [vmem:[%s3715] sm:$0xff]
        %v3717 = vld [vmem:[%s3715 + $0x8] sm:$0xff]
        %v3718 = vld [vmem:[%s3715 + $0x10] sm:$0xf]
        %v3720 = vsel %vm3552, %v3714, 0
        %v3723 = vsel %vm2189, %v3718, 0
        %3725 = vmatpush.msra.mxu0 0.0
        %3726 = vmatpush.msra.mxu0 0.0
        %3727 = vmatpush.msra.mxu0 0.0
        %3728 = vmatpush.msra.mxu0 0.0
        %3729 = vmatpush.msra.mxu0 0.0
        %3730 = vmatpush.msra.mxu0 0.0
        %3731 = vmatpush.msra.mxu0 0.0
        %3732 = vmatpush.msra.mxu0 0.0
        %3733 = vmatpush.msra.mxu0 0.0
        %3734 = vmatpush.msra.mxu0 0.0
        %3735 = vmatpush.msra.mxu0 0.0
        %3736 = vmatpush.msra.mxu0 0.0
        %3737 = vmatpush.msra.mxu0 0.0
        %3738 = vmatpush.msra.mxu0 %v3723
        %3739 = vmatpush.msra.mxu0 %v3717
        %3740 = vmatpush.msra.mxu0 %v3716
        %3741 = vmatmul.f32.gmra.mxu0 %v3720
        %v3742 = vpop.f32.mrf.mxu0
        %v3743 = vadd.f32 0.0, %v3742
        %3744 = vdwg.mxu0
        %v3745 = vadd.f32 %v3672, %v3743
        %s3746 = scalar_lea.vmem %s5, 120
        %v3747 = vld [vmem:[%s3746] sm:$0xff]
        %v3748 = vld [vmem:[%s3746 + $0x8] sm:$0xff]
        %v3749 = vld [vmem:[%s3746 + $0x10] sm:$0xf]
        %v3750 = vrot.slane %v3714, 1
        %v3751 = vsel %vm3552, %v3750, 0
        %v3754 = vsel %vm2189, %v3749, 0
        %3756 = vmatpush.msra.mxu0 0.0
        %3757 = vmatpush.msra.mxu0 0.0
        %3758 = vmatpush.msra.mxu0 0.0
        %3759 = vmatpush.msra.mxu0 0.0
        %3760 = vmatpush.msra.mxu0 0.0
        %3761 = vmatpush.msra.mxu0 0.0
        %3762 = vmatpush.msra.mxu0 0.0
        %3763 = vmatpush.msra.mxu0 0.0
        %3764 = vmatpush.msra.mxu0 0.0
        %3765 = vmatpush.msra.mxu0 0.0
        %3766 = vmatpush.msra.mxu0 0.0
        %3767 = vmatpush.msra.mxu0 0.0
        %3768 = vmatpush.msra.mxu0 0.0
        %3769 = vmatpush.msra.mxu0 %v3754
        %3770 = vmatpush.msra.mxu0 %v3748
        %3771 = vmatpush.msra.mxu0 %v3747
        %3772 = vmatmul.f32.gmra.mxu0 %v3751
        %v3773 = vpop.f32.mrf.mxu0
        %v3774 = vadd.f32 0.0, %v3773
        %3775 = vdwg.mxu0
        %v3776 = vadd.f32 %v3745, %v3774
        %s3777 = scalar_lea.vmem %s5, 144
        %v3778 = vld [vmem:[%s3777] sm:$0xff]
        %v3779 = vld [vmem:[%s3777 + $0x8] sm:$0xff]
        %v3780 = vld [vmem:[%s3777 + $0x10] sm:$0xf]
        %v3781 = vrot.slane %v3714, 2
        %v3782 = vsel %vm3552, %v3781, 0
        %v3785 = vsel %vm2189, %v3780, 0
        %3787 = vmatpush.msra.mxu0 0.0
        %3788 = vmatpush.msra.mxu0 0.0
        %3789 = vmatpush.msra.mxu0 0.0
        %3790 = vmatpush.msra.mxu0 0.0
        %3791 = vmatpush.msra.mxu0 0.0
        %3792 = vmatpush.msra.mxu0 0.0
        %3793 = vmatpush.msra.mxu0 0.0
        %3794 = vmatpush.msra.mxu0 0.0
        %3795 = vmatpush.msra.mxu0 0.0
        %3796 = vmatpush.msra.mxu0 0.0
        %3797 = vmatpush.msra.mxu0 0.0
        %3798 = vmatpush.msra.mxu0 0.0
        %3799 = vmatpush.msra.mxu0 0.0
        %3800 = vmatpush.msra.mxu0 %v3785
        %3801 = vmatpush.msra.mxu0 %v3779
        %3802 = vmatpush.msra.mxu0 %v3778
        %3803 = vmatmul.f32.gmra.mxu0 %v3782
        %v3804 = vpop.f32.mrf.mxu0
        %v3805 = vadd.f32 0.0, %v3804
        %3806 = vdwg.mxu0
        %v3807 = vadd.f32 %v3776, %v3805
        %s3808 = scalar_lea.vmem %s5, 168
        %v3809 = vld [vmem:[%s3808] sm:$0xff]
        %v3810 = vld [vmem:[%s3808 + $0x8] sm:$0xff]
        %v3811 = vld [vmem:[%s3808 + $0x10] sm:$0xf]
        %v3812 = vrot.slane %v3714, 3
        %v3813 = vsel %vm3552, %v3812, 0
        %v3816 = vsel %vm2189, %v3811, 0
        %3818 = vmatpush.msra.mxu0 0.0
        %3819 = vmatpush.msra.mxu0 0.0
        %3820 = vmatpush.msra.mxu0 0.0
        %3821 = vmatpush.msra.mxu0 0.0
        %3822 = vmatpush.msra.mxu0 0.0
        %3823 = vmatpush.msra.mxu0 0.0
        %3824 = vmatpush.msra.mxu0 0.0
        %3825 = vmatpush.msra.mxu0 0.0
        %3826 = vmatpush.msra.mxu0 0.0
        %3827 = vmatpush.msra.mxu0 0.0
        %3828 = vmatpush.msra.mxu0 0.0
        %3829 = vmatpush.msra.mxu0 0.0
        %3830 = vmatpush.msra.mxu0 0.0
        %3831 = vmatpush.msra.mxu0 %v3816
        %3832 = vmatpush.msra.mxu0 %v3810
        %3833 = vmatpush.msra.mxu0 %v3809
        %3834 = vmatmul.f32.gmra.mxu0 %v3813
        %v3835 = vpop.f32.mrf.mxu0
        %v3836 = vadd.f32 0.0, %v3835
        %3837 = vdwg.mxu0
        %v3838 = vadd.f32 %v3807, %v3836
        %v3839 = vmax.f32 %v3497, %v3498
        %3840 = vmatpush.msra.mxu0 0.0
        %3841 = vmatpush.msra.mxu0 0.0
        %3842 = vmatpush.msra.mxu0 0.0
        %3843 = vmatpush.msra.mxu0 0.0
        %3844 = vmatpush.msra.mxu0 0.0
        %3845 = vmatpush.msra.mxu0 0.0
        %3846 = vmatpush.msra.mxu0 0.0
        %3847 = vmatpush.msra.mxu0 0.0
        %3848 = vmatpush.msra.mxu0 0.0
        %3849 = vmatpush.msra.mxu0 0.0
        %3850 = vmatpush.msra.mxu0 0.0
        %3851 = vmatpush.msra.mxu0 0.0
        %3852 = vmatpush.msra.mxu0 0.0
        %3853 = vmatpush.msra.mxu0 0.0
        %3854 = vmatpush.msra.mxu0 0.0
        %3855 = vmatpush.msra.mxu0 %v3839
        %3856 = vmatmul.f32.gmra.mxu0 %v3504
        %v3857 = vpop.f32.mrf.mxu0
        %v3858 = vadd.f32 0.0, %v3857
        %3859 = vdwg.mxu0
        %3860 = vmatpush.msra.mxu0 0.0
        %3861 = vmatpush.msra.mxu0 0.0
        %3862 = vmatpush.msra.mxu0 0.0
        %3863 = vmatpush.msra.mxu0 0.0
        %3864 = vmatpush.msra.mxu0 0.0
        %3865 = vmatpush.msra.mxu0 0.0
        %3866 = vmatpush.msra.mxu0 0.0
        %3867 = vmatpush.msra.mxu0 0.0
        %3868 = vmatpush.msra.mxu0 0.0
        %3869 = vmatpush.msra.mxu0 0.0
        %3870 = vmatpush.msra.mxu0 0.0
        %3871 = vmatpush.msra.mxu0 0.0
        %3872 = vmatpush.msra.mxu0 0.0
        %3873 = vmatpush.msra.mxu0 0.0
        %3874 = vmatpush.msra.mxu0 0.0
        %3875 = vmatpush.msra.mxu0 %v3839
        %3876 = vmatmul.f32.gmra.mxu0 %v3526
        %v3877 = vpop.f32.mrf.mxu0
        %v3878 = vadd.f32 0.0, %v3877
        %3879 = vdwg.mxu0
        %v3880 = vmax.f32 %v3858, %v3878
        %s3881 = scalar_lea.vmem %s5, 192
        %v3882 = vld [vmem:[%s3881] sm:$0xff]
        %v3883 = vld [vmem:[%s3881 + $0x8] sm:$0xff]
        %v3884 = vld [vmem:[%s3881 + $0x10] sm:$0xf]
        %v3886 = vsel %vm3552, %v3880, 0
        %v3889 = vsel %vm2189, %v3884, 0
        %3891 = vmatpush.msra.mxu0 0.0
        %3892 = vmatpush.msra.mxu0 0.0
        %3893 = vmatpush.msra.mxu0 0.0
        %3894 = vmatpush.msra.mxu0 0.0
        %3895 = vmatpush.msra.mxu0 0.0
        %3896 = vmatpush.msra.mxu0 0.0
        %3897 = vmatpush.msra.mxu0 0.0
        %3898 = vmatpush.msra.mxu0 0.0
        %3899 = vmatpush.msra.mxu0 0.0
        %3900 = vmatpush.msra.mxu0 0.0
        %3901 = vmatpush.msra.mxu0 0.0
        %3902 = vmatpush.msra.mxu0 0.0
        %3903 = vmatpush.msra.mxu0 0.0
        %3904 = vmatpush.msra.mxu0 %v3889
        %3905 = vmatpush.msra.mxu0 %v3883
        %3906 = vmatpush.msra.mxu0 %v3882
        %3907 = vmatmul.f32.gmra.mxu0 %v3886
        %v3908 = vpop.f32.mrf.mxu0
        %v3909 = vadd.f32 0.0, %v3908
        %3910 = vdwg.mxu0
        %v3911 = vadd.f32 %v3838, %v3909
        %s3912 = scalar_lea.vmem %s5, 216
        %v3913 = vld [vmem:[%s3912] sm:$0xff]
        %v3914 = vld [vmem:[%s3912 + $0x8] sm:$0xff]
        %v3915 = vld [vmem:[%s3912 + $0x10] sm:$0xf]
        %v3916 = vrot.slane %v3880, 1
        %v3917 = vsel %vm3552, %v3916, 0
        %v3920 = vsel %vm2189, %v3915, 0
        %3922 = vmatpush.msra.mxu0 0.0
        %3923 = vmatpush.msra.mxu0 0.0
        %3924 = vmatpush.msra.mxu0 0.0
        %3925 = vmatpush.msra.mxu0 0.0
        %3926 = vmatpush.msra.mxu0 0.0
        %3927 = vmatpush.msra.mxu0 0.0
        %3928 = vmatpush.msra.mxu0 0.0
        %3929 = vmatpush.msra.mxu0 0.0
        %3930 = vmatpush.msra.mxu0 0.0
        %3931 = vmatpush.msra.mxu0 0.0
        %3932 = vmatpush.msra.mxu0 0.0
        %3933 = vmatpush.msra.mxu0 0.0
        %3934 = vmatpush.msra.mxu0 0.0
        %3935 = vmatpush.msra.mxu0 %v3920
        %3936 = vmatpush.msra.mxu0 %v3914
        %3937 = vmatpush.msra.mxu0 %v3913
        %3938 = vmatmul.f32.gmra.mxu0 %v3917
        %v3939 = vpop.f32.mrf.mxu0
        %v3940 = vadd.f32 0.0, %v3939
        %3941 = vdwg.mxu0
        %v3942 = vadd.f32 %v3911, %v3940
        %s3943 = scalar_lea.vmem %s5, 240
        %v3944 = vld [vmem:[%s3943] sm:$0xff]
        %v3945 = vld [vmem:[%s3943 + $0x8] sm:$0xff]
        %v3946 = vld [vmem:[%s3943 + $0x10] sm:$0xf]
        %v3947 = vrot.slane %v3880, 2
        %v3948 = vsel %vm3552, %v3947, 0
        %v3951 = vsel %vm2189, %v3946, 0
        %3953 = vmatpush.msra.mxu0 0.0
        %3954 = vmatpush.msra.mxu0 0.0
        %3955 = vmatpush.msra.mxu0 0.0
        %3956 = vmatpush.msra.mxu0 0.0
        %3957 = vmatpush.msra.mxu0 0.0
        %3958 = vmatpush.msra.mxu0 0.0
        %3959 = vmatpush.msra.mxu0 0.0
        %3960 = vmatpush.msra.mxu0 0.0
        %3961 = vmatpush.msra.mxu0 0.0
        %3962 = vmatpush.msra.mxu0 0.0
        %3963 = vmatpush.msra.mxu0 0.0
        %3964 = vmatpush.msra.mxu0 0.0
        %3965 = vmatpush.msra.mxu0 0.0
        %3966 = vmatpush.msra.mxu0 %v3951
        %3967 = vmatpush.msra.mxu0 %v3945
        %3968 = vmatpush.msra.mxu0 %v3944
        %3969 = vmatmul.f32.gmra.mxu0 %v3948
        %v3970 = vpop.f32.mrf.mxu0
        %v3971 = vadd.f32 0.0, %v3970
        %3972 = vdwg.mxu0
        %v3973 = vadd.f32 %v3942, %v3971
        %s3974 = scalar_lea.vmem %s5, 264
        %v3975 = vld [vmem:[%s3974] sm:$0xff]
        %v3976 = vld [vmem:[%s3974 + $0x8] sm:$0xff]
        %v3977 = vld [vmem:[%s3974 + $0x10] sm:$0xf]
        %v3978 = vrot.slane %v3880, 3
        %v3979 = vsel %vm3552, %v3978, 0
        %v3982 = vsel %vm2189, %v3977, 0
        %3984 = vmatpush.msra.mxu0 0.0
        %3985 = vmatpush.msra.mxu0 0.0
        %3986 = vmatpush.msra.mxu0 0.0
        %3987 = vmatpush.msra.mxu0 0.0
        %3988 = vmatpush.msra.mxu0 0.0
        %3989 = vmatpush.msra.mxu0 0.0
        %3990 = vmatpush.msra.mxu0 0.0
        %3991 = vmatpush.msra.mxu0 0.0
        %3992 = vmatpush.msra.mxu0 0.0
        %3993 = vmatpush.msra.mxu0 0.0
        %3994 = vmatpush.msra.mxu0 0.0
        %3995 = vmatpush.msra.mxu0 0.0
        %3996 = vmatpush.msra.mxu0 0.0
        %3997 = vmatpush.msra.mxu0 %v3982
        %3998 = vmatpush.msra.mxu0 %v3976
        %3999 = vmatpush.msra.mxu0 %v3975
        %4000 = vmatmul.f32.gmra.mxu0 %v3979
        %v4001 = vpop.f32.mrf.mxu0
        %v4002 = vadd.f32 0.0, %v4001
        %4003 = vdwg.mxu0
        %v4004 = vadd.f32 %v3973, %v4002
        %v4005 = vmax.f32 %v3499, %v3500
        %4006 = vmatpush.msra.mxu0 0.0
        %4007 = vmatpush.msra.mxu0 0.0
        %4008 = vmatpush.msra.mxu0 0.0
        %4009 = vmatpush.msra.mxu0 0.0
        %4010 = vmatpush.msra.mxu0 0.0
        %4011 = vmatpush.msra.mxu0 0.0
        %4012 = vmatpush.msra.mxu0 0.0
        %4013 = vmatpush.msra.mxu0 0.0
        %4014 = vmatpush.msra.mxu0 0.0
        %4015 = vmatpush.msra.mxu0 0.0
        %4016 = vmatpush.msra.mxu0 0.0
        %4017 = vmatpush.msra.mxu0 0.0
        %4018 = vmatpush.msra.mxu0 0.0
        %4019 = vmatpush.msra.mxu0 0.0
        %4020 = vmatpush.msra.mxu0 0.0
        %4021 = vmatpush.msra.mxu0 %v4005
        %4022 = vmatmul.f32.gmra.mxu0 %v3504
        %v4023 = vpop.f32.mrf.mxu0
        %v4024 = vadd.f32 0.0, %v4023
        %4025 = vdwg.mxu0
        %4026 = vmatpush.msra.mxu0 0.0
        %4027 = vmatpush.msra.mxu0 0.0
        %4028 = vmatpush.msra.mxu0 0.0
        %4029 = vmatpush.msra.mxu0 0.0
        %4030 = vmatpush.msra.mxu0 0.0
        %4031 = vmatpush.msra.mxu0 0.0
        %4032 = vmatpush.msra.mxu0 0.0
        %4033 = vmatpush.msra.mxu0 0.0
        %4034 = vmatpush.msra.mxu0 0.0
        %4035 = vmatpush.msra.mxu0 0.0
        %4036 = vmatpush.msra.mxu0 0.0
        %4037 = vmatpush.msra.mxu0 0.0
        %4038 = vmatpush.msra.mxu0 0.0
        %4039 = vmatpush.msra.mxu0 0.0
        %4040 = vmatpush.msra.mxu0 0.0
        %4041 = vmatpush.msra.mxu0 %v4005
        %4042 = vmatmul.f32.gmra.mxu0 %v3526
        %v4043 = vpop.f32.mrf.mxu0
        %v4044 = vadd.f32 0.0, %v4043
        %4045 = vdwg.mxu0
        %v4046 = vmax.f32 %v4024, %v4044
        %s4047 = scalar_lea.vmem %s5, 288
        %v4048 = vld [vmem:[%s4047] sm:$0xff]
        %v4049 = vld [vmem:[%s4047 + $0x8] sm:$0xff]
        %v4050 = vld [vmem:[%s4047 + $0x10] sm:$0xf]
        %v4052 = vsel %vm3552, %v4046, 0
        %v4055 = vsel %vm2189, %v4050, 0
        %4057 = vmatpush.msra.mxu0 0.0
        %4058 = vmatpush.msra.mxu0 0.0
        %4059 = vmatpush.msra.mxu0 0.0
        %4060 = vmatpush.msra.mxu0 0.0
        %4061 = vmatpush.msra.mxu0 0.0
        %4062 = vmatpush.msra.mxu0 0.0
        %4063 = vmatpush.msra.mxu0 0.0
        %4064 = vmatpush.msra.mxu0 0.0
        %4065 = vmatpush.msra.mxu0 0.0
        %4066 = vmatpush.msra.mxu0 0.0
        %4067 = vmatpush.msra.mxu0 0.0
        %4068 = vmatpush.msra.mxu0 0.0
        %4069 = vmatpush.msra.mxu0 0.0
        %4070 = vmatpush.msra.mxu0 %v4055
        %4071 = vmatpush.msra.mxu0 %v4049
        %4072 = vmatpush.msra.mxu0 %v4048
        %4073 = vmatmul.f32.gmra.mxu0 %v4052
        %v4074 = vpop.f32.mrf.mxu0
        %v4075 = vadd.f32 0.0, %v4074
        %4076 = vdwg.mxu0
        %v4077 = vadd.f32 %v4004, %v4075
        %s4078 = scalar_lea.vmem %s5, 312
        %v4079 = vld [vmem:[%s4078] sm:$0xff]
        %v4080 = vld [vmem:[%s4078 + $0x8] sm:$0xff]
        %v4081 = vld [vmem:[%s4078 + $0x10] sm:$0xf]
        %v4082 = vrot.slane %v4046, 1
        %v4083 = vsel %vm3552, %v4082, 0
        %v4086 = vsel %vm2189, %v4081, 0
        %4088 = vmatpush.msra.mxu0 0.0
        %4089 = vmatpush.msra.mxu0 0.0
        %4090 = vmatpush.msra.mxu0 0.0
        %4091 = vmatpush.msra.mxu0 0.0
        %4092 = vmatpush.msra.mxu0 0.0
        %4093 = vmatpush.msra.mxu0 0.0
        %4094 = vmatpush.msra.mxu0 0.0
        %4095 = vmatpush.msra.mxu0 0.0
        %4096 = vmatpush.msra.mxu0 0.0
        %4097 = vmatpush.msra.mxu0 0.0
        %4098 = vmatpush.msra.mxu0 0.0
        %4099 = vmatpush.msra.mxu0 0.0
        %4100 = vmatpush.msra.mxu0 0.0
        %4101 = vmatpush.msra.mxu0 %v4086
        %4102 = vmatpush.msra.mxu0 %v4080
        %4103 = vmatpush.msra.mxu0 %v4079
        %4104 = vmatmul.f32.gmra.mxu0 %v4083
        %v4105 = vpop.f32.mrf.mxu0
        %v4106 = vadd.f32 0.0, %v4105
        %4107 = vdwg.mxu0
        %v4108 = vadd.f32 %v4077, %v4106
        %s4109 = scalar_lea.vmem %s5, 336
        %v4110 = vld [vmem:[%s4109] sm:$0xff]
        %v4111 = vld [vmem:[%s4109 + $0x8] sm:$0xff]
        %v4112 = vld [vmem:[%s4109 + $0x10] sm:$0xf]
        %v4113 = vrot.slane %v4046, 2
        %v4114 = vsel %vm3552, %v4113, 0
        %v4117 = vsel %vm2189, %v4112, 0
        %4119 = vmatpush.msra.mxu0 0.0
        %4120 = vmatpush.msra.mxu0 0.0
        %4121 = vmatpush.msra.mxu0 0.0
        %4122 = vmatpush.msra.mxu0 0.0
        %4123 = vmatpush.msra.mxu0 0.0
        %4124 = vmatpush.msra.mxu0 0.0
        %4125 = vmatpush.msra.mxu0 0.0
        %4126 = vmatpush.msra.mxu0 0.0
        %4127 = vmatpush.msra.mxu0 0.0
        %4128 = vmatpush.msra.mxu0 0.0
        %4129 = vmatpush.msra.mxu0 0.0
        %4130 = vmatpush.msra.mxu0 0.0
        %4131 = vmatpush.msra.mxu0 0.0
        %4132 = vmatpush.msra.mxu0 %v4117
        %4133 = vmatpush.msra.mxu0 %v4111
        %4134 = vmatpush.msra.mxu0 %v4110
        %4135 = vmatmul.f32.gmra.mxu0 %v4114
        %v4136 = vpop.f32.mrf.mxu0
        %v4137 = vadd.f32 0.0, %v4136
        %4138 = vdwg.mxu0
        %v4139 = vadd.f32 %v4108, %v4137
        %s4140 = scalar_lea.vmem %s5, 360
        %v4141 = vld [vmem:[%s4140] sm:$0xff]
        %v4142 = vld [vmem:[%s4140 + $0x8] sm:$0xff]
        %v4143 = vld [vmem:[%s4140 + $0x10] sm:$0xf]
        %v4144 = vrot.slane %v4046, 3
        %v4145 = vsel %vm3552, %v4144, 0
        %v4148 = vsel %vm2189, %v4143, 0
        %4150 = vmatpush.msra.mxu0 0.0
        %4151 = vmatpush.msra.mxu0 0.0
        %4152 = vmatpush.msra.mxu0 0.0
        %4153 = vmatpush.msra.mxu0 0.0
        %4154 = vmatpush.msra.mxu0 0.0
        %4155 = vmatpush.msra.mxu0 0.0
        %4156 = vmatpush.msra.mxu0 0.0
        %4157 = vmatpush.msra.mxu0 0.0
        %4158 = vmatpush.msra.mxu0 0.0
        %4159 = vmatpush.msra.mxu0 0.0
        %4160 = vmatpush.msra.mxu0 0.0
        %4161 = vmatpush.msra.mxu0 0.0
        %4162 = vmatpush.msra.mxu0 0.0
        %4163 = vmatpush.msra.mxu0 %v4148
        %4164 = vmatpush.msra.mxu0 %v4142
        %4165 = vmatpush.msra.mxu0 %v4141
        %4166 = vmatmul.f32.gmra.mxu0 %v4145
        %v4167 = vpop.f32.mrf.mxu0
        %v4168 = vadd.f32 0.0, %v4167
        %4169 = vdwg.mxu0
        %v4170 = vadd.f32 %v4139, %v4168
        %v4171 = vmax.f32 %v4170, 0.0
        %v4172 = vld [vmem:[%s7] sm:$0xff]
        %v4173 = vld [vmem:[%s7 + $0x8] sm:$0xff]
        %v4174 = vld [vmem:[%s7 + $0x10] sm:$0xff]
        %v4175 = vld [vmem:[%s7 + $0x18] sm:$0xff]
        %v4176 = vld [vmem:[%s7 + $0x20] sm:$0xff]
        %v4177 = vld [vmem:[%s7 + $0x28] sm:$0xff]
        %v4178 = vld [vmem:[%s7 + $0x30] sm:$0x3]
        %v4179 = vld [vmem:[%s8] sm:$0x1]
        %vm4180 = vcmask 408576
        %v4182 = vsel %vm4180, %v4171, 0
        %v4185 = vsel %vm1892, %v4178, 0
        %4187 = vmatpush.msra.mxu0 0.0
        %4188 = vmatpush.msra.mxu0 0.0
        %4189 = vmatpush.msra.mxu0 0.0
        %4190 = vmatpush.msra.mxu0 0.0
        %4191 = vmatpush.msra.mxu0 0.0
        %4192 = vmatpush.msra.mxu0 0.0
        %4193 = vmatpush.msra.mxu0 0.0
        %4194 = vmatpush.msra.mxu0 0.0
        %4195 = vmatpush.msra.mxu0 0.0
        %4196 = vmatpush.msra.mxu0 %v4185
        %4197 = vmatpush.msra.mxu0 %v4177
        %4198 = vmatpush.msra.mxu0 %v4176
        %4199 = vmatpush.msra.mxu0 %v4175
        %4200 = vmatpush.msra.mxu0 %v4174
        %4201 = vmatpush.msra.mxu0 %v4173
        %4202 = vmatpush.msra.mxu0 %v4172
        %4203 = vmatmul.f32.gmra.mxu0 %v4182
        %v4204 = vpop.f32.mrf.mxu0
        %v4205 = vadd.f32 %v4179, %v4204
        %4206 = vdwg.mxu0
        %vm4207 = vcmask 73728
        %v4208 = vsel %vm4207, %v4205, -inf
        %4209 = vmax.xlane.f32.xlu0 %v4208
        %v4210 = vpop.xlane.xlu0 %4209
        %v4211 = vsub.f32 %v4205, %v4210
        %v4212 = vmul.f32 %v4211, 1.442695
        %v4213 = vpow.pop %v4212
        %v4214 = vsel %vm4207, %v4213, 0.0
        %4215 = vadd.xlane.f32.xlu0 %v4214
        %v4216 = vpop.xlane.xlu0 %4215
        %v4217 = vrcp.pop %v4216
        %v4218 = vmul.f32 %v4213, %v4217
        %4219 = vst.msk [vmem:[%s324] sm:$0x1] %vm4207, %v4218
        %s4220 = sand.u32 %s225, 1
        %s4221 = scalar_lea.sflag [#allocation4], %s4220
        %s4222 = sand.u32 %s225, 1
        %s4223 = scalar_lea.vmem [#allocation3], %s4222
        // Predicated region
        $region57: #{cnn_forward.1} parent=55 // pred_check
          %p4224 = pneg %p235
        $region58: #{cnn_forward.1} parent=55 // pred_check_branch
          %4226 = sbr.rel (%p4224) target = $region60
        $region59: #{cnn_forward.1} parent=55 // pred_region
          %4228 = vsyncadd %s4221, 0
          %s4229 = scalar_lea.hbm %s9, %s23
          %s4231 = sshll.u32 %s4223, 4
          %s4232 = int_to_ptr.vmem [resolvable:$true] %s4231
          %s4233 = sshll.u32 %s4229, 4
          %s4234 = int_to_ptr.hbm [resolvable:$true] %s4233
          %4236 = dma.vmem_to_hbm [thread:$0]  %s4232, 16, %s4234, %s4221
        $region60: #{cnn_forward.1} parent=55 // pred_fallthru
          _
      $region56: #{cnn_forward.1} parent=5 // pred_fallthru
        _
      %p4237 = scmp.le.s32.totalorder 2, %s18
      // Predicated region
      $region61: #{cnn_forward.1} parent=5 // pred_check
        %p4238 = pneg %p4237
      $region62: #{cnn_forward.1} parent=5 // pred_check_branch
        %4240 = sbr.rel (%p4238) target = $region64
      $region63: #{cnn_forward.1} parent=5 // pred_region
        %s4241 = ssub.s32 %s18, 2
        // Predicated region
        $region65: #{cnn_forward.1} parent=63 // pred_check
          %p4242 = pneg %p241
        $region66: #{cnn_forward.1} parent=63 // pred_check_branch
          %4244 = sbr.rel (%p4242) target = $region68
        $region67: #{cnn_forward.1} parent=63 // pred_region
          %s4245 = sand.u32 %s226, 1
          %s4246 = scalar_lea.sflag [#allocation4], %s4245
          %s4247 = sand.u32 %s226, 1
          %s4248 = scalar_lea.vmem [#allocation3], %s4247
          %4250 = dma.done %s4246, 16
        $region68: #{cnn_forward.1} parent=63 // pred_fallthru
          _
      $region64: #{cnn_forward.1} parent=5 // pred_fallthru
        _
    $region6: #{cnn_forward.1} parent=1 // loop_footer
      %s22 = sadd.s32 1, %s18
    $region7: #{cnn_forward.1} parent=1 // loop_footer_branch
      %17 = sbr.rel target = $region3
    $region8: #{cnn_forward.1} parent=1 // loop_exit
      _
    %4251 = vsyncpa [#allocation4], 1
    %s4252 = scalar_lea.sflag [#allocation4], 1
    %4253 = vsyncpa %s4252, 1

</llo_original>
